<compile_context>
chip_gen: v7x
topology: tpu7x:2x2x1
jax: 0.10.0
libtpu: 0.0.40
codegen_flags: <defaults>
</compile_context>

<pallas_src>
import jax
import jax.numpy as jnp
import numpy as np
from jax.experimental import pallas as pl
from jax.experimental.pallas import tpu as pltpu


def attention_lstm_kernel(feat_ref, emb_ref,
                          wa_ref, ba_ref, ua_ref, bu_ref, va_ref, bv_ref,
                          wxe_ref, wxc_ref, wxh_ref, blstm_ref,
                          wfc_ref, bfc_ref,
                          wh0_ref, bh0_ref, wc0_ref, bc0_ref,
                          out_ref, aw_ref,
                          hs_ref):
    T, B, L = aw_ref.shape
    F = feat_ref.shape[2]
    H = ua_ref.shape[0]

    feats = feat_ref[...]                                    # (B, L, F) bf16
    feats_f32 = feats.astype(jnp.float32)

    # ---- init_hidden(features): h0 / c0 from the mean annotation (once) ----
    mean_feat = jnp.mean(feats_f32, axis=1).astype(jnp.bfloat16)          # (B, F)
    h = jnp.dot(mean_feat, wh0_ref[...],
                preferred_element_type=jnp.float32) + bh0_ref[...]        # (B, H)
    c = jnp.dot(mean_feat, wc0_ref[...],
                preferred_element_type=jnp.float32) + bc0_ref[...]        # (B, H)

    # ---- hoisted, time-invariant attention term: a1 = W_a(features) + b_a ----
    a1 = (jnp.dot(feats.reshape(B * L, F), wa_ref[...],
                  preferred_element_type=jnp.float32)
          + ba_ref[...]).reshape(B, L, H)                                 # (B, L, H)

    va = va_ref[...][None, :, :]                                          # (1, 1, H)
    bv = bv_ref[...]                                                      # (1, 1)

    # ---- word-embedding contribution to LSTM gates for ALL steps (off the
    #      recurrent path): one (T*B, D) x (D, 4H) matmul, biases folded in ----
    gx_all = jnp.dot(emb_ref[...], wxe_ref[...],
                     preferred_element_type=jnp.float32) + blstm_ref[...]  # (T*B, 4H)

    for t in range(T):                                   # static unroll, T small
        h_bf = h.astype(jnp.bfloat16)

        # h-only matmuls: gate-hidden contribution overlaps with attention.
        gh = jnp.dot(h_bf, wxh_ref[...],
                     preferred_element_type=jnp.float32)                  # (B, 4H)
        a2 = jnp.dot(h_bf, ua_ref[...],
                     preferred_element_type=jnp.float32) + bu_ref[...]    # (B, H)

        # ---- Bahdanau attention ----
        att = jnp.tanh(a1 + a2[:, None, :])                               # (B, L, H)
        score = jnp.sum(att * va, axis=2) + bv                            # (B, L)
        m = jnp.max(score, axis=1, keepdims=True)
        e = jnp.exp(score - m)
        aw = e * pl.reciprocal(jnp.sum(e, axis=1, keepdims=True), approx=True)
        context = jnp.sum(aw[:, :, None] * feats_f32, axis=1)             # (B, F)

        # ---- LSTMCell gates: precomputed embed part + hidden part + context part ----
        gc = jnp.dot(context.astype(jnp.bfloat16), wxc_ref[...],
                     preferred_element_type=jnp.float32)                  # (B, 4H)
        gates = gx_all[t * B:(t + 1) * B, :] + gh + gc                    # (B, 4H)
        i_g = jax.nn.sigmoid(gates[:, 0:H])
        f_g = jax.nn.sigmoid(gates[:, H:2 * H])
        g_g = jnp.tanh(gates[:, 2 * H:3 * H])
        o_g = jax.nn.sigmoid(gates[:, 3 * H:4 * H])
        c = f_g * c + i_g * g_g
        h = o_g * jnp.tanh(c)
        # TODO(synk): nn.Dropout(p=0.5) is identity here (eval mode); training-mode RNG dropout omitted.
        # TODO(synk): scheduled-sampling branch (np.random < sample_prob, log_softmax/topk,
        # re-embedding of the sampled token) is not taken in this deterministic path.

        hs_ref[pl.ds(t * B, B), :] = h
        aw_ref[t] = aw

    # ---- FC head, batched over all steps: one (T*B, H) x (H, V) MXU matmul ----
    logits = jnp.dot(hs_ref[...].astype(jnp.bfloat16), wfc_ref[...],
                     preferred_element_type=jnp.float32) + bfc_ref[...]   # (T*B, V)
    out_ref[...] = logits


def init_params(key, num_features, embedding_dim, hidden_dim, vocab_size):
    F, D, H, V = num_features, embedding_dim, hidden_dim, vocab_size
    keys = jax.random.split(key, 18)

    def rnd(k, shape, scale=0.1):
        return (scale * jax.random.normal(k, shape)).astype(jnp.float32)

    return dict(
        emb=rnd(keys[0], (V, D)),
        w_a=rnd(keys[1], (H, F)), b_a=rnd(keys[2], (H,)),
        u_a=rnd(keys[3], (H, H)), b_u=rnd(keys[4], (H,)),
        v_a=rnd(keys[5], (1, H)), b_v=rnd(keys[6], (1,)),
        w_ih=rnd(keys[7], (4 * H, D + F)), b_ih=rnd(keys[8], (4 * H,)),
        w_hh=rnd(keys[9], (4 * H, H)), b_hh=rnd(keys[10], (4 * H,)),
        w_fc=rnd(keys[11], (V, H)), b_fc=rnd(keys[12], (V,)),
        w_init_h=rnd(keys[13], (H, F)), b_init_h=rnd(keys[14], (H,)),
        w_init_c=rnd(keys[15], (H, F)), b_init_c=rnd(keys[16], (H,)),
    )


def attention_lstm_forward(captions, features, params):
    B, L, F = features.shape
    T = captions.shape[1]
    V, D = params['emb'].shape
    H = params['u_a'].shape[0]
    wdt = jnp.bfloat16

    # Embedding lookup (glue) + reproduce in-place zeroing of embed[:, 0, :],
    # then pre-shift by one step so step t reads row t; flatten to (T*B, D).
    embed = params['emb'][captions]                           # (B, T, D)
    embed = embed.at[:, 0, :].set(0.0)
    emb_tbd = jnp.transpose(embed, (1, 0, 2))                 # (T, B, D)
    emb_shift = jnp.concatenate(
        [jnp.zeros((1, B, D), embed.dtype), emb_tbd[:-1]], axis=0)
    emb_flat = emb_shift.reshape(T * B, D).astype(wdt)

    # Pre-transposed (x @ W layout), pre-split, bf16-cast weights; biases stay f32.
    wa_t = params['w_a'].T.astype(wdt)                        # (F, H)
    ba = params['b_a'].reshape(1, H)
    ua_t = params['u_a'].T.astype(wdt)                        # (H, H)
    bu = params['b_u'].reshape(1, H)
    va = params['v_a']                                        # (1, H) f32 (elementwise)
    bv = params['b_v'].reshape(1, 1)
    w_ih_t = params['w_ih'].T                                 # (D+F, 4H)
    wxe = w_ih_t[:D].astype(wdt)                              # (D, 4H) embed part
    wxc = w_ih_t[D:].astype(wdt)                              # (F, 4H) context part
    wxh = params['w_hh'].T.astype(wdt)                        # (H, 4H) hidden part
    blstm = (params['b_ih'] + params['b_hh']).reshape(1, 4 * H)
    wfc_t = params['w_fc'].T.astype(wdt)                      # (H, V)
    bfc = params['b_fc'].reshape(1, V)
    wh0_t = params['w_init_h'].T.astype(wdt)                  # (F, H)
    bh0 = params['b_init_h'].reshape(1, H)
    wc0_t = params['w_init_c'].T.astype(wdt)
    bc0 = params['b_init_c'].reshape(1, H)

    inputs = (features.astype(wdt), emb_flat,
              wa_t, ba, ua_t, bu, va, bv,
              wxe, wxc, wxh, blstm,
              wfc_t, bfc, wh0_t, bh0, wc0_t, bc0)

    # No grid: whole decode in one invocation, everything resident in VMEM,
    # outputs flushed to HBM once.
    out_flat, aw_tbl = pl.pallas_call(
        attention_lstm_kernel,
        out_shape=(jax.ShapeDtypeStruct((T * B, V), jnp.float32),   # lane-dense V
                   jax.ShapeDtypeStruct((T, B, L), jnp.float32)),
        scratch_shapes=[pltpu.VMEM((T * B, H), jnp.float32)],       # staged h states
        compiler_params=pltpu.CompilerParams(vmem_limit_bytes=64 * 1024 * 1024),
    )(*inputs)

    outputs = jnp.transpose(out_flat.reshape(T, B, V), (1, 0, 2))   # (B, T, V)
    atten_weights = jnp.transpose(aw_tbl, (1, 0, 2))                # (B, T, L)
    return outputs, atten_weights


def reference_forward(captions, features, params):
    """Pure-JAX f32 reference mirroring the torch forward (sample_prob=0, eval mode)."""
    B, L, F = features.shape
    T = captions.shape[1]
    V, D = params['emb'].shape
    H = params['u_a'].shape[0]
    embed = params['emb'][captions]
    embed = embed.at[:, 0, :].set(0.0)
    mean_feat = jnp.mean(features, axis=1)
    h = mean_feat @ params['w_init_h'].T + params['b_init_h']
    c = mean_feat @ params['w_init_c'].T + params['b_init_c']
    outs, aws = [], []
    for t in range(T):
        we = jnp.zeros((B, D), jnp.float32) if t == 0 else embed[:, t - 1, :]
        a1 = jnp.einsum('blf,hf->blh', features, params['w_a']) + params['b_a']
        a2 = h @ params['u_a'].T + params['b_u']
        att = jnp.tanh(a1 + a2[:, None, :])
        score = jnp.einsum('blh,oh->blo', att, params['v_a'])[..., 0] + params['b_v'][0]
        aw = jax.nn.softmax(score, axis=1)
        context = jnp.sum(aw[:, :, None] * features, axis=1)
        x = jnp.concatenate([we, context], axis=1)
        gates = x @ params['w_ih'].T + params['b_ih'] + h @ params['w_hh'].T + params['b_hh']
        i_g = jax.nn.sigmoid(gates[:, :H])
        f_g = jax.nn.sigmoid(gates[:, H:2 * H])
        g_g = jnp.tanh(gates[:, 2 * H:3 * H])
        o_g = jax.nn.sigmoid(gates[:, 3 * H:])
        c = f_g * c + i_g * g_g
        h = o_g * jnp.tanh(c)
        outs.append(h @ params['w_fc'].T + params['b_fc'])
        aws.append(aw)
    return jnp.stack(outs, axis=1), jnp.stack(aws, axis=1)


if __name__ == "__main__":
    # num_features=32, embedding_dim=32, hidden_dim=32, vocab_size=128
    B, L, F, D, H, V, T = 2, 16, 32, 32, 32, 128, 8
    key = jax.random.PRNGKey(0)
    kp, kc, kf = jax.random.split(key, 3)

    params = init_params(kp, F, D, H, V)
    captions = jax.random.randint(kc, (B, T), 0, V, dtype=jnp.int32)
    features = (0.5 * jax.random.normal(kf, (B, L, F))).astype(jnp.float32)

    outputs, atten_weights = attention_lstm_forward(captions, features, params)
    outputs, atten_weights = jax.block_until_ready((outputs, atten_weights))

    ref_out, ref_aw = reference_forward(captions, features, params)
    # Tolerance loosened vs. pure-f32 because weights/features feed the MXU in bf16
    # (f32 accumulation); observed error is O(1e-3), well inside 2e-2.
    np.testing.assert_allclose(np.asarray(outputs), np.asarray(ref_out), rtol=2e-2, atol=2e-2)
    np.testing.assert_allclose(np.asarray(atten_weights), np.asarray(ref_aw), rtol=2e-2, atol=2e-2)

    print("KERNEL_OK")
</pallas_src>

<mosaic_0001>
module attributes {stable_mosaic.version = 11 : i64} {
  func.func @attention_lstm_kernel(%arg0: memref<2x16x32xbf16, #tpu.memory_space<vmem>>, %arg1: memref<16x32xbf16, #tpu.memory_space<vmem>>, %arg2: memref<32x32xbf16, #tpu.memory_space<vmem>>, %arg3: memref<1x32xf32, #tpu.memory_space<vmem>>, %arg4: memref<32x32xbf16, #tpu.memory_space<vmem>>, %arg5: memref<1x32xf32, #tpu.memory_space<vmem>>, %arg6: memref<1x32xf32, #tpu.memory_space<vmem>>, %arg7: memref<1x1xf32, #tpu.memory_space<vmem>>, %arg8: memref<32x128xbf16, #tpu.memory_space<vmem>>, %arg9: memref<32x128xbf16, #tpu.memory_space<vmem>>, %arg10: memref<32x128xbf16, #tpu.memory_space<vmem>>, %arg11: memref<1x128xf32, #tpu.memory_space<vmem>>, %arg12: memref<32x128xbf16, #tpu.memory_space<vmem>>, %arg13: memref<1x128xf32, #tpu.memory_space<vmem>>, %arg14: memref<32x32xbf16, #tpu.memory_space<vmem>>, %arg15: memref<1x32xf32, #tpu.memory_space<vmem>>, %arg16: memref<32x32xbf16, #tpu.memory_space<vmem>>, %arg17: memref<1x32xf32, #tpu.memory_space<vmem>>, %arg18: memref<16x128xf32, #tpu.memory_space<vmem>>, %arg19: memref<8x2x16xf32, #tpu.memory_space<vmem>>, %arg20: memref<16x32xf32, #tpu.memory_space<vmem>>) attributes {dimension_semantics = [], scalar_prefetch = 0 : i64, scratch_operands = 1 : i64, tpu.core_type = #tpu.core_type<tc>} {
    %c0 = arith.constant 0 : index
    %c0_0 = arith.constant 0 : index
    %c0_1 = arith.constant 0 : index
    %0 = vector.load %arg0[%c0, %c0_0, %c0_1] : memref<2x16x32xbf16, #tpu.memory_space<vmem>>, vector<2x16x32xbf16>
    %1 = arith.extf %0 : vector<2x16x32xbf16> to vector<2x16x32xf32>
    %cst = arith.constant dense<0.000000e+00> : vector<2x32xf32>
    %2 = vector.multi_reduction <add>, %1, %cst [1] : vector<2x16x32xf32> to vector<2x32xf32>
    %cst_2 = arith.constant 1.600000e+01 : f32
    %3 = vector.broadcast %cst_2 : f32 to vector<2x32xf32>
    %4 = arith.divf %2, %3 : vector<2x32xf32>
    %5 = arith.truncf %4 : vector<2x32xf32> to vector<2x32xbf16>
    %c0_3 = arith.constant 0 : index
    %c0_4 = arith.constant 0 : index
    %6 = vector.load %arg14[%c0_3, %c0_4] : memref<32x32xbf16, #tpu.memory_space<vmem>>, vector<32x32xbf16>
    %cst_5 = arith.constant dense<0.000000e+00> : vector<2x32xf32>
    %7 = tpu.matmul %5, %6, %cst_5 {dimension_numbers = #tpu.dot_dimension_numbers<[1], [0], [0], [1], [0, 0, 1, 1], [], []>} : vector<2x32xbf16>, vector<32x32xbf16>, vector<2x32xf32> -> vector<2x32xf32>
    %c0_6 = arith.constant 0 : index
    %c0_7 = arith.constant 0 : index
    %8 = vector.load %arg15[%c0_6, %c0_7] : memref<1x32xf32, #tpu.memory_space<vmem>>, vector<1x32xf32>
    %9 = vector.broadcast %8 : vector<1x32xf32> to vector<2x32xf32>
    %10 = arith.addf %7, %9 : vector<2x32xf32>
    %c0_8 = arith.constant 0 : index
    %c0_9 = arith.constant 0 : index
    %11 = vector.load %arg16[%c0_8, %c0_9] : memref<32x32xbf16, #tpu.memory_space<vmem>>, vector<32x32xbf16>
    %cst_10 = arith.constant dense<0.000000e+00> : vector<2x32xf32>
    %12 = tpu.matmul %5, %11, %cst_10 {dimension_numbers = #tpu.dot_dimension_numbers<[1], [0], [0], [1], [0, 0, 1, 1], [], []>} : vector<2x32xbf16>, vector<32x32xbf16>, vector<2x32xf32> -> vector<2x32xf32>
    %c0_11 = arith.constant 0 : index
    %c0_12 = arith.constant 0 : index
    %13 = vector.load %arg17[%c0_11, %c0_12] : memref<1x32xf32, #tpu.memory_space<vmem>>, vector<1x32xf32>
    %14 = vector.broadcast %13 : vector<1x32xf32> to vector<2x32xf32>
    %15 = arith.addf %12, %14 : vector<2x32xf32>
    %16 = vector.shape_cast %0 : vector<2x16x32xbf16> to vector<32x32xbf16>
    %c0_13 = arith.constant 0 : index
    %c0_14 = arith.constant 0 : index
    %17 = vector.load %arg2[%c0_13, %c0_14] : memref<32x32xbf16, #tpu.memory_space<vmem>>, vector<32x32xbf16>
    %cst_15 = arith.constant dense<0.000000e+00> : vector<32x32xf32>
    %18 = tpu.matmul %16, %17, %cst_15 {dimension_numbers = #tpu.dot_dimension_numbers<[1], [0], [0], [1], [0, 0, 1, 1], [], []>} : vector<32x32xbf16>, vector<32x32xbf16>, vector<32x32xf32> -> vector<32x32xf32>
    %c0_16 = arith.constant 0 : index
    %c0_17 = arith.constant 0 : index
    %19 = vector.load %arg3[%c0_16, %c0_17] : memref<1x32xf32, #tpu.memory_space<vmem>>, vector<1x32xf32>
    %20 = vector.broadcast %19 : vector<1x32xf32> to vector<32x32xf32>
    %21 = arith.addf %18, %20 : vector<32x32xf32>
    %22 = vector.shape_cast %21 : vector<32x32xf32> to vector<2x16x32xf32>
    %c0_18 = arith.constant 0 : index
    %c0_19 = arith.constant 0 : index
    %23 = vector.load %arg6[%c0_18, %c0_19] : memref<1x32xf32, #tpu.memory_space<vmem>>, vector<1x32xf32>
    %24 = vector.shape_cast %23 : vector<1x32xf32> to vector<1x1x32xf32>
    %c0_20 = arith.constant 0 : index
    %c0_21 = arith.constant 0 : index
    %25 = vector.load %arg7[%c0_20, %c0_21] : memref<1x1xf32, #tpu.memory_space<vmem>>, vector<1x1xf32>
    %c0_22 = arith.constant 0 : index
    %c0_23 = arith.constant 0 : index
    %26 = vector.load %arg1[%c0_22, %c0_23] : memref<16x32xbf16, #tpu.memory_space<vmem>>, vector<16x32xbf16>
    %c0_24 = arith.constant 0 : index
    %c0_25 = arith.constant 0 : index
    %27 = vector.load %arg8[%c0_24, %c0_25] : memref<32x128xbf16, #tpu.memory_space<vmem>>, vector<32x128xbf16>
    %cst_26 = arith.constant dense<0.000000e+00> : vector<16x128xf32>
    %28 = tpu.matmul %26, %27, %cst_26 {dimension_numbers = #tpu.dot_dimension_numbers<[1], [0], [0], [1], [0, 0, 1, 1], [], []>} : vector<16x32xbf16>, vector<32x128xbf16>, vector<16x128xf32> -> vector<16x128xf32>
    %c0_27 = arith.constant 0 : index
    %c0_28 = arith.constant 0 : index
    %29 = vector.load %arg11[%c0_27, %c0_28] : memref<1x128xf32, #tpu.memory_space<vmem>>, vector<1x128xf32>
    %30 = vector.broadcast %29 : vector<1x128xf32> to vector<16x128xf32>
    %31 = arith.addf %28, %30 : vector<16x128xf32>
    %32 = arith.truncf %10 : vector<2x32xf32> to vector<2x32xbf16>
    %c0_29 = arith.constant 0 : index
    %c0_30 = arith.constant 0 : index
    %33 = vector.load %arg10[%c0_29, %c0_30] : memref<32x128xbf16, #tpu.memory_space<vmem>>, vector<32x128xbf16>
    %cst_31 = arith.constant dense<0.000000e+00> : vector<2x128xf32>
    %34 = tpu.matmul %32, %33, %cst_31 {dimension_numbers = #tpu.dot_dimension_numbers<[1], [0], [0], [1], [0, 0, 1, 1], [], []>} : vector<2x32xbf16>, vector<32x128xbf16>, vector<2x128xf32> -> vector<2x128xf32>
    %c0_32 = arith.constant 0 : index
    %c0_33 = arith.constant 0 : index
    %35 = vector.load %arg4[%c0_32, %c0_33] : memref<32x32xbf16, #tpu.memory_space<vmem>>, vector<32x32xbf16>
    %cst_34 = arith.constant dense<0.000000e+00> : vector<2x32xf32>
    %36 = tpu.matmul %32, %35, %cst_34 {dimension_numbers = #tpu.dot_dimension_numbers<[1], [0], [0], [1], [0, 0, 1, 1], [], []>} : vector<2x32xbf16>, vector<32x32xbf16>, vector<2x32xf32> -> vector<2x32xf32>
    %c0_35 = arith.constant 0 : index
    %c0_36 = arith.constant 0 : index
    %37 = vector.load %arg5[%c0_35, %c0_36] : memref<1x32xf32, #tpu.memory_space<vmem>>, vector<1x32xf32>
    %38 = vector.broadcast %37 : vector<1x32xf32> to vector<2x32xf32>
    %39 = arith.addf %36, %38 : vector<2x32xf32>
    %40 = vector.shape_cast %39 : vector<2x32xf32> to vector<2x1x32xf32>
    %41 = vector.broadcast %40 : vector<2x1x32xf32> to vector<2x16x32xf32>
    %42 = arith.addf %22, %41 : vector<2x16x32xf32>
    %43 = math.tanh %42 : vector<2x16x32xf32>
    %44 = vector.broadcast %24 : vector<1x1x32xf32> to vector<2x16x32xf32>
    %45 = arith.mulf %43, %44 : vector<2x16x32xf32>
    %cst_37 = arith.constant dense<0.000000e+00> : vector<2x16xf32>
    %46 = vector.multi_reduction <add>, %45, %cst_37 [2] : vector<2x16x32xf32> to vector<2x16xf32>
    %47 = vector.broadcast %25 : vector<1x1xf32> to vector<2x16xf32>
    %48 = arith.addf %46, %47 : vector<2x16xf32>
    %cst_38 = arith.constant dense<0xFF800000> : vector<2xf32>
    %49 = vector.multi_reduction <maximumf>, %48, %cst_38 [1] : vector<2x16xf32> to vector<2xf32>
    %50 = vector.shape_cast %49 : vector<2xf32> to vector<2x1xf32>
    %51 = vector.broadcast %50 : vector<2x1xf32> to vector<2x16xf32>
    %52 = arith.subf %48, %51 : vector<2x16xf32>
    %53 = math.exp %52 : vector<2x16xf32>
    %cst_39 = arith.constant dense<0.000000e+00> : vector<2xf32>
    %54 = vector.multi_reduction <add>, %53, %cst_39 [1] : vector<2x16xf32> to vector<2xf32>
    %55 = vector.shape_cast %54 : vector<2xf32> to vector<2x1xf32>
    %56 = tpu.reciprocal %55 {approx = true} : vector<2x1xf32> -> vector<2x1xf32>
    %57 = vector.broadcast %56 : vector<2x1xf32> to vector<2x16xf32>
    %58 = arith.mulf %53, %57 : vector<2x16xf32>
    %59 = vector.shape_cast %58 : vector<2x16xf32> to vector<2x16x1xf32>
    %60 = vector.broadcast %59 : vector<2x16x1xf32> to vector<2x16x32xf32>
    %61 = arith.mulf %60, %1 : vector<2x16x32xf32>
    %cst_40 = arith.constant dense<0.000000e+00> : vector<2x32xf32>
    %62 = vector.multi_reduction <add>, %61, %cst_40 [1] : vector<2x16x32xf32> to vector<2x32xf32>
    %63 = arith.truncf %62 : vector<2x32xf32> to vector<2x32xbf16>
    %c0_41 = arith.constant 0 : index
    %c0_42 = arith.constant 0 : index
    %64 = vector.load %arg9[%c0_41, %c0_42] : memref<32x128xbf16, #tpu.memory_space<vmem>>, vector<32x128xbf16>
    %cst_43 = arith.constant dense<0.000000e+00> : vector<2x128xf32>
    %65 = tpu.matmul %63, %64, %cst_43 {dimension_numbers = #tpu.dot_dimension_numbers<[1], [0], [0], [1], [0, 0, 1, 1], [], []>} : vector<2x32xbf16>, vector<32x128xbf16>, vector<2x128xf32> -> vector<2x128xf32>
    %66 = vector.extract_strided_slice %31 {offsets = [0, 0], sizes = [2, 128], strides = [1, 1]} : vector<16x128xf32> to vector<2x128xf32>
    %67 = arith.addf %66, %34 : vector<2x128xf32>
    %68 = arith.addf %67, %65 : vector<2x128xf32>
    %69 = vector.extract_strided_slice %68 {offsets = [0, 0], sizes = [2, 32], strides = [1, 1]} : vector<2x128xf32> to vector<2x32xf32>
    %70 = arith.negf %69 : vector<2x32xf32>
    %71 = math.exp %70 : vector<2x32xf32>
    %cst_44 = arith.constant 1.000000e+00 : f32
    %72 = vector.broadcast %cst_44 : f32 to vector<2x32xf32>
    %73 = arith.addf %72, %71 : vector<2x32xf32>
    %74 = arith.divf %72, %73 : vector<2x32xf32>
    %75 = vector.extract_strided_slice %68 {offsets = [0, 32], sizes = [2, 32], strides = [1, 1]} : vector<2x128xf32> to vector<2x32xf32>
    %76 = arith.negf %75 : vector<2x32xf32>
    %77 = math.exp %76 : vector<2x32xf32>
    %cst_45 = arith.constant 1.000000e+00 : f32
    %78 = vector.broadcast %cst_45 : f32 to vector<2x32xf32>
    %79 = arith.addf %78, %77 : vector<2x32xf32>
    %80 = arith.divf %78, %79 : vector<2x32xf32>
    %81 = vector.extract_strided_slice %68 {offsets = [0, 64], sizes = [2, 32], strides = [1, 1]} : vector<2x128xf32> to vector<2x32xf32>
    %82 = math.tanh %81 : vector<2x32xf32>
    %83 = vector.extract_strided_slice %68 {offsets = [0, 96], sizes = [2, 32], strides = [1, 1]} : vector<2x128xf32> to vector<2x32xf32>
    %84 = arith.negf %83 : vector<2x32xf32>
    %85 = math.exp %84 : vector<2x32xf32>
    %cst_46 = arith.constant 1.000000e+00 : f32
    %86 = vector.broadcast %cst_46 : f32 to vector<2x32xf32>
    %87 = arith.addf %86, %85 : vector<2x32xf32>
    %88 = arith.divf %86, %87 : vector<2x32xf32>
    %89 = arith.mulf %80, %15 : vector<2x32xf32>
    %90 = arith.mulf %74, %82 : vector<2x32xf32>
    %91 = arith.addf %89, %90 : vector<2x32xf32>
    %92 = math.tanh %91 : vector<2x32xf32>
    %93 = arith.mulf %88, %92 : vector<2x32xf32>
    %c0_47 = arith.constant 0 : index
    %c0_48 = arith.constant 0 : index
    %94 = vector.load %arg20[%c0_47, %c0_48] : memref<16x32xf32, #tpu.memory_space<vmem>>, vector<2x32xf32>
    tpu.vector_store %arg20[%c0_47, %c0_48], %93 {strides = array<i32>} : memref<16x32xf32, #tpu.memory_space<vmem>>, vector<2x32xf32>,
    %c0_49 = arith.constant 0 : index
    %c0_50 = arith.constant 0 : index
    %c0_51 = arith.constant 0 : index
    %95 = vector.load %arg19[%c0_49, %c0_50, %c0_51] : memref<8x2x16xf32, #tpu.memory_space<vmem>>, vector<1x2x16xf32>
    %96 = vector.shape_cast %95 : vector<1x2x16xf32> to vector<2x16xf32>
    %97 = vector.shape_cast %58 : vector<2x16xf32> to vector<1x2x16xf32>
    tpu.vector_store %arg19[%c0_49, %c0_50, %c0_51], %97 {strides = array<i32>} : memref<8x2x16xf32, #tpu.memory_space<vmem>>, vector<1x2x16xf32>,
    %98 = arith.truncf %93 : vector<2x32xf32> to vector<2x32xbf16>
    %c0_52 = arith.constant 0 : index
    %c0_53 = arith.constant 0 : index
    %99 = vector.load %arg10[%c0_52, %c0_53] : memref<32x128xbf16, #tpu.memory_space<vmem>>, vector<32x128xbf16>
    %cst_54 = arith.constant dense<0.000000e+00> : vector<2x128xf32>
    %100 = tpu.matmul %98, %99, %cst_54 {dimension_numbers = #tpu.dot_dimension_numbers<[1], [0], [0], [1], [0, 0, 1, 1], [], []>} : vector<2x32xbf16>, vector<32x128xbf16>, vector<2x128xf32> -> vector<2x128xf32>
    %c0_55 = arith.constant 0 : index
    %c0_56 = arith.constant 0 : index
    %101 = vector.load %arg4[%c0_55, %c0_56] : memref<32x32xbf16, #tpu.memory_space<vmem>>, vector<32x32xbf16>
    %cst_57 = arith.constant dense<0.000000e+00> : vector<2x32xf32>
    %102 = tpu.matmul %98, %101, %cst_57 {dimension_numbers = #tpu.dot_dimension_numbers<[1], [0], [0], [1], [0, 0, 1, 1], [], []>} : vector<2x32xbf16>, vector<32x32xbf16>, vector<2x32xf32> -> vector<2x32xf32>
    %c0_58 = arith.constant 0 : index
    %c0_59 = arith.constant 0 : index
    %103 = vector.load %arg5[%c0_58, %c0_59] : memref<1x32xf32, #tpu.memory_space<vmem>>, vector<1x32xf32>
    %104 = vector.broadcast %103 : vector<1x32xf32> to vector<2x32xf32>
    %105 = arith.addf %102, %104 : vector<2x32xf32>
    %106 = vector.shape_cast %105 : vector<2x32xf32> to vector<2x1x32xf32>
    %107 = vector.broadcast %106 : vector<2x1x32xf32> to vector<2x16x32xf32>
    %108 = arith.addf %22, %107 : vector<2x16x32xf32>
    %109 = math.tanh %108 : vector<2x16x32xf32>
    %110 = vector.broadcast %24 : vector<1x1x32xf32> to vector<2x16x32xf32>
    %111 = arith.mulf %109, %110 : vector<2x16x32xf32>
    %cst_60 = arith.constant dense<0.000000e+00> : vector<2x16xf32>
    %112 = vector.multi_reduction <add>, %111, %cst_60 [2] : vector<2x16x32xf32> to vector<2x16xf32>
    %113 = vector.broadcast %25 : vector<1x1xf32> to vector<2x16xf32>
    %114 = arith.addf %112, %113 : vector<2x16xf32>
    %cst_61 = arith.constant dense<0xFF800000> : vector<2xf32>
    %115 = vector.multi_reduction <maximumf>, %114, %cst_61 [1] : vector<2x16xf32> to vector<2xf32>
    %116 = vector.shape_cast %115 : vector<2xf32> to vector<2x1xf32>
    %117 = vector.broadcast %116 : vector<2x1xf32> to vector<2x16xf32>
    %118 = arith.subf %114, %117 : vector<2x16xf32>
    %119 = math.exp %118 : vector<2x16xf32>
    %cst_62 = arith.constant dense<0.000000e+00> : vector<2xf32>
    %120 = vector.multi_reduction <add>, %119, %cst_62 [1] : vector<2x16xf32> to vector<2xf32>
    %121 = vector.shape_cast %120 : vector<2xf32> to vector<2x1xf32>
    %122 = tpu.reciprocal %121 {approx = true} : vector<2x1xf32> -> vector<2x1xf32>
    %123 = vector.broadcast %122 : vector<2x1xf32> to vector<2x16xf32>
    %124 = arith.mulf %119, %123 : vector<2x16xf32>
    %125 = vector.shape_cast %124 : vector<2x16xf32> to vector<2x16x1xf32>
    %126 = vector.broadcast %125 : vector<2x16x1xf32> to vector<2x16x32xf32>
    %127 = arith.mulf %126, %1 : vector<2x16x32xf32>
    %cst_63 = arith.constant dense<0.000000e+00> : vector<2x32xf32>
    %128 = vector.multi_reduction <add>, %127, %cst_63 [1] : vector<2x16x32xf32> to vector<2x32xf32>
    %129 = arith.truncf %128 : vector<2x32xf32> to vector<2x32xbf16>
    %c0_64 = arith.constant 0 : index
    %c0_65 = arith.constant 0 : index
    %130 = vector.load %arg9[%c0_64, %c0_65] : memref<32x128xbf16, #tpu.memory_space<vmem>>, vector<32x128xbf16>
    %cst_66 = arith.constant dense<0.000000e+00> : vector<2x128xf32>
    %131 = tpu.matmul %129, %130, %cst_66 {dimension_numbers = #tpu.dot_dimension_numbers<[1], [0], [0], [1], [0, 0, 1, 1], [], []>} : vector<2x32xbf16>, vector<32x128xbf16>, vector<2x128xf32> -> vector<2x128xf32>
    %132 = vector.extract_strided_slice %31 {offsets = [2, 0], sizes = [2, 128], strides = [1, 1]} : vector<16x128xf32> to vector<2x128xf32>
    %133 = arith.addf %132, %100 : vector<2x128xf32>
    %134 = arith.addf %133, %131 : vector<2x128xf32>
    %135 = vector.extract_strided_slice %134 {offsets = [0, 0], sizes = [2, 32], strides = [1, 1]} : vector<2x128xf32> to vector<2x32xf32>
    %136 = arith.negf %135 : vector<2x32xf32>
    %137 = math.exp %136 : vector<2x32xf32>
    %cst_67 = arith.constant 1.000000e+00 : f32
    %138 = vector.broadcast %cst_67 : f32 to vector<2x32xf32>
    %139 = arith.addf %138, %137 : vector<2x32xf32>
    %140 = arith.divf %138, %139 : vector<2x32xf32>
    %141 = vector.extract_strided_slice %134 {offsets = [0, 32], sizes = [2, 32], strides = [1, 1]} : vector<2x128xf32> to vector<2x32xf32>
    %142 = arith.negf %141 : vector<2x32xf32>
    %143 = math.exp %142 : vector<2x32xf32>
    %cst_68 = arith.constant 1.000000e+00 : f32
    %144 = vector.broadcast %cst_68 : f32 to vector<2x32xf32>
    %145 = arith.addf %144, %143 : vector<2x32xf32>
    %146 = arith.divf %144, %145 : vector<2x32xf32>
    %147 = vector.extract_strided_slice %134 {offsets = [0, 64], sizes = [2, 32], strides = [1, 1]} : vector<2x128xf32> to vector<2x32xf32>
    %148 = math.tanh %147 : vector<2x32xf32>
    %149 = vector.extract_strided_slice %134 {offsets = [0, 96], sizes = [2, 32], strides = [1, 1]} : vector<2x128xf32> to vector<2x32xf32>
    %150 = arith.negf %149 : vector<2x32xf32>
    %151 = math.exp %150 : vector<2x32xf32>
    %cst_69 = arith.constant 1.000000e+00 : f32
    %152 = vector.broadcast %cst_69 : f32 to vector<2x32xf32>
    %153 = arith.addf %152, %151 : vector<2x32xf32>
    %154 = arith.divf %152, %153 : vector<2x32xf32>
    %155 = arith.mulf %146, %91 : vector<2x32xf32>
    %156 = arith.mulf %140, %148 : vector<2x32xf32>
    %157 = arith.addf %155, %156 : vector<2x32xf32>
    %158 = math.tanh %157 : vector<2x32xf32>
    %159 = arith.mulf %154, %158 : vector<2x32xf32>
    %c2 = arith.constant 2 : index
    %c0_70 = arith.constant 0 : index
    %160 = vector.load %arg20[%c2, %c0_70] : memref<16x32xf32, #tpu.memory_space<vmem>>, vector<2x32xf32>
    tpu.vector_store %arg20[%c2, %c0_70], %159 {strides = array<i32>} : memref<16x32xf32, #tpu.memory_space<vmem>>, vector<2x32xf32>,
    %c1 = arith.constant 1 : index
    %c0_71 = arith.constant 0 : index
    %c0_72 = arith.constant 0 : index
    %161 = vector.load %arg19[%c1, %c0_71, %c0_72] : memref<8x2x16xf32, #tpu.memory_space<vmem>>, vector<1x2x16xf32>
    %162 = vector.shape_cast %161 : vector<1x2x16xf32> to vector<2x16xf32>
    %163 = vector.shape_cast %124 : vector<2x16xf32> to vector<1x2x16xf32>
    tpu.vector_store %arg19[%c1, %c0_71, %c0_72], %163 {strides = array<i32>} : memref<8x2x16xf32, #tpu.memory_space<vmem>>, vector<1x2x16xf32>,
    %164 = arith.truncf %159 : vector<2x32xf32> to vector<2x32xbf16>
    %c0_73 = arith.constant 0 : index
    %c0_74 = arith.constant 0 : index
    %165 = vector.load %arg10[%c0_73, %c0_74] : memref<32x128xbf16, #tpu.memory_space<vmem>>, vector<32x128xbf16>
    %cst_75 = arith.constant dense<0.000000e+00> : vector<2x128xf32>
    %166 = tpu.matmul %164, %165, %cst_75 {dimension_numbers = #tpu.dot_dimension_numbers<[1], [0], [0], [1], [0, 0, 1, 1], [], []>} : vector<2x32xbf16>, vector<32x128xbf16>, vector<2x128xf32> -> vector<2x128xf32>
    %c0_76 = arith.constant 0 : index
    %c0_77 = arith.constant 0 : index
    %167 = vector.load %arg4[%c0_76, %c0_77] : memref<32x32xbf16, #tpu.memory_space<vmem>>, vector<32x32xbf16>
    %cst_78 = arith.constant dense<0.000000e+00> : vector<2x32xf32>
    %168 = tpu.matmul %164, %167, %cst_78 {dimension_numbers = #tpu.dot_dimension_numbers<[1], [0], [0], [1], [0, 0, 1, 1], [], []>} : vector<2x32xbf16>, vector<32x32xbf16>, vector<2x32xf32> -> vector<2x32xf32>
    %c0_79 = arith.constant 0 : index
    %c0_80 = arith.constant 0 : index
    %169 = vector.load %arg5[%c0_79, %c0_80] : memref<1x32xf32, #tpu.memory_space<vmem>>, vector<1x32xf32>
    %170 = vector.broadcast %169 : vector<1x32xf32> to vector<2x32xf32>
    %171 = arith.addf %168, %170 : vector<2x32xf32>
    %172 = vector.shape_cast %171 : vector<2x32xf32> to vector<2x1x32xf32>
    %173 = vector.broadcast %172 : vector<2x1x32xf32> to vector<2x16x32xf32>
    %174 = arith.addf %22, %173 : vector<2x16x32xf32>
    %175 = math.tanh %174 : vector<2x16x32xf32>
    %176 = vector.broadcast %24 : vector<1x1x32xf32> to vector<2x16x32xf32>
    %177 = arith.mulf %175, %176 : vector<2x16x32xf32>
    %cst_81 = arith.constant dense<0.000000e+00> : vector<2x16xf32>
    %178 = vector.multi_reduction <add>, %177, %cst_81 [2] : vector<2x16x32xf32> to vector<2x16xf32>
    %179 = vector.broadcast %25 : vector<1x1xf32> to vector<2x16xf32>
    %180 = arith.addf %178, %179 : vector<2x16xf32>
    %cst_82 = arith.constant dense<0xFF800000> : vector<2xf32>
    %181 = vector.multi_reduction <maximumf>, %180, %cst_82 [1] : vector<2x16xf32> to vector<2xf32>
    %182 = vector.shape_cast %181 : vector<2xf32> to vector<2x1xf32>
    %183 = vector.broadcast %182 : vector<2x1xf32> to vector<2x16xf32>
    %184 = arith.subf %180, %183 : vector<2x16xf32>
    %185 = math.exp %184 : vector<2x16xf32>
    %cst_83 = arith.constant dense<0.000000e+00> : vector<2xf32>
    %186 = vector.multi_reduction <add>, %185, %cst_83 [1] : vector<2x16xf32> to vector<2xf32>
    %187 = vector.shape_cast %186 : vector<2xf32> to vector<2x1xf32>
    %188 = tpu.reciprocal %187 {approx = true} : vector<2x1xf32> -> vector<2x1xf32>
    %189 = vector.broadcast %188 : vector<2x1xf32> to vector<2x16xf32>
    %190 = arith.mulf %185, %189 : vector<2x16xf32>
    %191 = vector.shape_cast %190 : vector<2x16xf32> to vector<2x16x1xf32>
    %192 = vector.broadcast %191 : vector<2x16x1xf32> to vector<2x16x32xf32>
    %193 = arith.mulf %192, %1 : vector<2x16x32xf32>
    %cst_84 = arith.constant dense<0.000000e+00> : vector<2x32xf32>
    %194 = vector.multi_reduction <add>, %193, %cst_84 [1] : vector<2x16x32xf32> to vector<2x32xf32>
    %195 = arith.truncf %194 : vector<2x32xf32> to vector<2x32xbf16>
    %c0_85 = arith.constant 0 : index
    %c0_86 = arith.constant 0 : index
    %196 = vector.load %arg9[%c0_85, %c0_86] : memref<32x128xbf16, #tpu.memory_space<vmem>>, vector<32x128xbf16>
    %cst_87 = arith.constant dense<0.000000e+00> : vector<2x128xf32>
    %197 = tpu.matmul %195, %196, %cst_87 {dimension_numbers = #tpu.dot_dimension_numbers<[1], [0], [0], [1], [0, 0, 1, 1], [], []>} : vector<2x32xbf16>, vector<32x128xbf16>, vector<2x128xf32> -> vector<2x128xf32>
    %198 = vector.extract_strided_slice %31 {offsets = [4, 0], sizes = [2, 128], strides = [1, 1]} : vector<16x128xf32> to vector<2x128xf32>
    %199 = arith.addf %198, %166 : vector<2x128xf32>
    %200 = arith.addf %199, %197 : vector<2x128xf32>
    %201 = vector.extract_strided_slice %200 {offsets = [0, 0], sizes = [2, 32], strides = [1, 1]} : vector<2x128xf32> to vector<2x32xf32>
    %202 = arith.negf %201 : vector<2x32xf32>
    %203 = math.exp %202 : vector<2x32xf32>
    %cst_88 = arith.constant 1.000000e+00 : f32
    %204 = vector.broadcast %cst_88 : f32 to vector<2x32xf32>
    %205 = arith.addf %204, %203 : vector<2x32xf32>
    %206 = arith.divf %204, %205 : vector<2x32xf32>
    %207 = vector.extract_strided_slice %200 {offsets = [0, 32], sizes = [2, 32], strides = [1, 1]} : vector<2x128xf32> to vector<2x32xf32>
    %208 = arith.negf %207 : vector<2x32xf32>
    %209 = math.exp %208 : vector<2x32xf32>
    %cst_89 = arith.constant 1.000000e+00 : f32
    %210 = vector.broadcast %cst_89 : f32 to vector<2x32xf32>
    %211 = arith.addf %210, %209 : vector<2x32xf32>
    %212 = arith.divf %210, %211 : vector<2x32xf32>
    %213 = vector.extract_strided_slice %200 {offsets = [0, 64], sizes = [2, 32], strides = [1, 1]} : vector<2x128xf32> to vector<2x32xf32>
    %214 = math.tanh %213 : vector<2x32xf32>
    %215 = vector.extract_strided_slice %200 {offsets = [0, 96], sizes = [2, 32], strides = [1, 1]} : vector<2x128xf32> to vector<2x32xf32>
    %216 = arith.negf %215 : vector<2x32xf32>
    %217 = math.exp %216 : vector<2x32xf32>
    %cst_90 = arith.constant 1.000000e+00 : f32
    %218 = vector.broadcast %cst_90 : f32 to vector<2x32xf32>
    %219 = arith.addf %218, %217 : vector<2x32xf32>
    %220 = arith.divf %218, %219 : vector<2x32xf32>
    %221 = arith.mulf %212, %157 : vector<2x32xf32>
    %222 = arith.mulf %206, %214 : vector<2x32xf32>
    %223 = arith.addf %221, %222 : vector<2x32xf32>
    %224 = math.tanh %223 : vector<2x32xf32>
    %225 = arith.mulf %220, %224 : vector<2x32xf32>
    %c4 = arith.constant 4 : index
    %c0_91 = arith.constant 0 : index
    %226 = vector.load %arg20[%c4, %c0_91] : memref<16x32xf32, #tpu.memory_space<vmem>>, vector<2x32xf32>
    tpu.vector_store %arg20[%c4, %c0_91], %225 {strides = array<i32>} : memref<16x32xf32, #tpu.memory_space<vmem>>, vector<2x32xf32>,
    %c2_92 = arith.constant 2 : index
    %c0_93 = arith.constant 0 : index
    %c0_94 = arith.constant 0 : index
    %227 = vector.load %arg19[%c2_92, %c0_93, %c0_94] : memref<8x2x16xf32, #tpu.memory_space<vmem>>, vector<1x2x16xf32>
    %228 = vector.shape_cast %227 : vector<1x2x16xf32> to vector<2x16xf32>
    %229 = vector.shape_cast %190 : vector<2x16xf32> to vector<1x2x16xf32>
    tpu.vector_store %arg19[%c2_92, %c0_93, %c0_94], %229 {strides = array<i32>} : memref<8x2x16xf32, #tpu.memory_space<vmem>>, vector<1x2x16xf32>,
    %230 = arith.truncf %225 : vector<2x32xf32> to vector<2x32xbf16>
    %c0_95 = arith.constant 0 : index
    %c0_96 = arith.constant 0 : index
    %231 = vector.load %arg10[%c0_95, %c0_96] : memref<32x128xbf16, #tpu.memory_space<vmem>>, vector<32x128xbf16>
    %cst_97 = arith.constant dense<0.000000e+00> : vector<2x128xf32>
    %232 = tpu.matmul %230, %231, %cst_97 {dimension_numbers = #tpu.dot_dimension_numbers<[1], [0], [0], [1], [0, 0, 1, 1], [], []>} : vector<2x32xbf16>, vector<32x128xbf16>, vector<2x128xf32> -> vector<2x128xf32>
    %c0_98 = arith.constant 0 : index
    %c0_99 = arith.constant 0 : index
    %233 = vector.load %arg4[%c0_98, %c0_99] : memref<32x32xbf16, #tpu.memory_space<vmem>>, vector<32x32xbf16>
    %cst_100 = arith.constant dense<0.000000e+00> : vector<2x32xf32>
    %234 = tpu.matmul %230, %233, %cst_100 {dimension_numbers = #tpu.dot_dimension_numbers<[1], [0], [0], [1], [0, 0, 1, 1], [], []>} : vector<2x32xbf16>, vector<32x32xbf16>, vector<2x32xf32> -> vector<2x32xf32>
    %c0_101 = arith.constant 0 : index
    %c0_102 = arith.constant 0 : index
    %235 = vector.load %arg5[%c0_101, %c0_102] : memref<1x32xf32, #tpu.memory_space<vmem>>, vector<1x32xf32>
    %236 = vector.broadcast %235 : vector<1x32xf32> to vector<2x32xf32>
    %237 = arith.addf %234, %236 : vector<2x32xf32>
    %238 = vector.shape_cast %237 : vector<2x32xf32> to vector<2x1x32xf32>
    %239 = vector.broadcast %238 : vector<2x1x32xf32> to vector<2x16x32xf32>
    %240 = arith.addf %22, %239 : vector<2x16x32xf32>
    %241 = math.tanh %240 : vector<2x16x32xf32>
    %242 = vector.broadcast %24 : vector<1x1x32xf32> to vector<2x16x32xf32>
    %243 = arith.mulf %241, %242 : vector<2x16x32xf32>
    %cst_103 = arith.constant dense<0.000000e+00> : vector<2x16xf32>
    %244 = vector.multi_reduction <add>, %243, %cst_103 [2] : vector<2x16x32xf32> to vector<2x16xf32>
    %245 = vector.broadcast %25 : vector<1x1xf32> to vector<2x16xf32>
    %246 = arith.addf %244, %245 : vector<2x16xf32>
    %cst_104 = arith.constant dense<0xFF800000> : vector<2xf32>
    %247 = vector.multi_reduction <maximumf>, %246, %cst_104 [1] : vector<2x16xf32> to vector<2xf32>
    %248 = vector.shape_cast %247 : vector<2xf32> to vector<2x1xf32>
    %249 = vector.broadcast %248 : vector<2x1xf32> to vector<2x16xf32>
    %250 = arith.subf %246, %249 : vector<2x16xf32>
    %251 = math.exp %250 : vector<2x16xf32>
    %cst_105 = arith.constant dense<0.000000e+00> : vector<2xf32>
    %252 = vector.multi_reduction <add>, %251, %cst_105 [1] : vector<2x16xf32> to vector<2xf32>
    %253 = vector.shape_cast %252 : vector<2xf32> to vector<2x1xf32>
    %254 = tpu.reciprocal %253 {approx = true} : vector<2x1xf32> -> vector<2x1xf32>
    %255 = vector.broadcast %254 : vector<2x1xf32> to vector<2x16xf32>
    %256 = arith.mulf %251, %255 : vector<2x16xf32>
    %257 = vector.shape_cast %256 : vector<2x16xf32> to vector<2x16x1xf32>
    %258 = vector.broadcast %257 : vector<2x16x1xf32> to vector<2x16x32xf32>
    %259 = arith.mulf %258, %1 : vector<2x16x32xf32>
    %cst_106 = arith.constant dense<0.000000e+00> : vector<2x32xf32>
    %260 = vector.multi_reduction <add>, %259, %cst_106 [1] : vector<2x16x32xf32> to vector<2x32xf32>
    %261 = arith.truncf %260 : vector<2x32xf32> to vector<2x32xbf16>
    %c0_107 = arith.constant 0 : index
    %c0_108 = arith.constant 0 : index
    %262 = vector.load %arg9[%c0_107, %c0_108] : memref<32x128xbf16, #tpu.memory_space<vmem>>, vector<32x128xbf16>
    %cst_109 = arith.constant dense<0.000000e+00> : vector<2x128xf32>
    %263 = tpu.matmul %261, %262, %cst_109 {dimension_numbers = #tpu.dot_dimension_numbers<[1], [0], [0], [1], [0, 0, 1, 1], [], []>} : vector<2x32xbf16>, vector<32x128xbf16>, vector<2x128xf32> -> vector<2x128xf32>
    %264 = vector.extract_strided_slice %31 {offsets = [6, 0], sizes = [2, 128], strides = [1, 1]} : vector<16x128xf32> to vector<2x128xf32>
    %265 = arith.addf %264, %232 : vector<2x128xf32>
    %266 = arith.addf %265, %263 : vector<2x128xf32>
    %267 = vector.extract_strided_slice %266 {offsets = [0, 0], sizes = [2, 32], strides = [1, 1]} : vector<2x128xf32> to vector<2x32xf32>
    %268 = arith.negf %267 : vector<2x32xf32>
    %269 = math.exp %268 : vector<2x32xf32>
    %cst_110 = arith.constant 1.000000e+00 : f32
    %270 = vector.broadcast %cst_110 : f32 to vector<2x32xf32>
    %271 = arith.addf %270, %269 : vector<2x32xf32>
    %272 = arith.divf %270, %271 : vector<2x32xf32>
    %273 = vector.extract_strided_slice %266 {offsets = [0, 32], sizes = [2, 32], strides = [1, 1]} : vector<2x128xf32> to vector<2x32xf32>
    %274 = arith.negf %273 : vector<2x32xf32>
    %275 = math.exp %274 : vector<2x32xf32>
    %cst_111 = arith.constant 1.000000e+00 : f32
    %276 = vector.broadcast %cst_111 : f32 to vector<2x32xf32>
    %277 = arith.addf %276, %275 : vector<2x32xf32>
    %278 = arith.divf %276, %277 : vector<2x32xf32>
    %279 = vector.extract_strided_slice %266 {offsets = [0, 64], sizes = [2, 32], strides = [1, 1]} : vector<2x128xf32> to vector<2x32xf32>
    %280 = math.tanh %279 : vector<2x32xf32>
    %281 = vector.extract_strided_slice %266 {offsets = [0, 96], sizes = [2, 32], strides = [1, 1]} : vector<2x128xf32> to vector<2x32xf32>
    %282 = arith.negf %281 : vector<2x32xf32>
    %283 = math.exp %282 : vector<2x32xf32>
    %cst_112 = arith.constant 1.000000e+00 : f32
    %284 = vector.broadcast %cst_112 : f32 to vector<2x32xf32>
    %285 = arith.addf %284, %283 : vector<2x32xf32>
    %286 = arith.divf %284, %285 : vector<2x32xf32>
    %287 = arith.mulf %278, %223 : vector<2x32xf32>
    %288 = arith.mulf %272, %280 : vector<2x32xf32>
    %289 = arith.addf %287, %288 : vector<2x32xf32>
    %290 = math.tanh %289 : vector<2x32xf32>
    %291 = arith.mulf %286, %290 : vector<2x32xf32>
    %c6 = arith.constant 6 : index
    %c0_113 = arith.constant 0 : index
    %292 = vector.load %arg20[%c6, %c0_113] : memref<16x32xf32, #tpu.memory_space<vmem>>, vector<2x32xf32>
    tpu.vector_store %arg20[%c6, %c0_113], %291 {strides = array<i32>} : memref<16x32xf32, #tpu.memory_space<vmem>>, vector<2x32xf32>,
    %c3 = arith.constant 3 : index
    %c0_114 = arith.constant 0 : index
    %c0_115 = arith.constant 0 : index
    %293 = vector.load %arg19[%c3, %c0_114, %c0_115] : memref<8x2x16xf32, #tpu.memory_space<vmem>>, vector<1x2x16xf32>
    %294 = vector.shape_cast %293 : vector<1x2x16xf32> to vector<2x16xf32>
    %295 = vector.shape_cast %256 : vector<2x16xf32> to vector<1x2x16xf32>
    tpu.vector_store %arg19[%c3, %c0_114, %c0_115], %295 {strides = array<i32>} : memref<8x2x16xf32, #tpu.memory_space<vmem>>, vector<1x2x16xf32>,
    %296 = arith.truncf %291 : vector<2x32xf32> to vector<2x32xbf16>
    %c0_116 = arith.constant 0 : index
    %c0_117 = arith.constant 0 : index
    %297 = vector.load %arg10[%c0_116, %c0_117] : memref<32x128xbf16, #tpu.memory_space<vmem>>, vector<32x128xbf16>
    %cst_118 = arith.constant dense<0.000000e+00> : vector<2x128xf32>
    %298 = tpu.matmul %296, %297, %cst_118 {dimension_numbers = #tpu.dot_dimension_numbers<[1], [0], [0], [1], [0, 0, 1, 1], [], []>} : vector<2x32xbf16>, vector<32x128xbf16>, vector<2x128xf32> -> vector<2x128xf32>
    %c0_119 = arith.constant 0 : index
    %c0_120 = arith.constant 0 : index
    %299 = vector.load %arg4[%c0_119, %c0_120] : memref<32x32xbf16, #tpu.memory_space<vmem>>, vector<32x32xbf16>
    %cst_121 = arith.constant dense<0.000000e+00> : vector<2x32xf32>
    %300 = tpu.matmul %296, %299, %cst_121 {dimension_numbers = #tpu.dot_dimension_numbers<[1], [0], [0], [1], [0, 0, 1, 1], [], []>} : vector<2x32xbf16>, vector<32x32xbf16>, vector<2x32xf32> -> vector<2x32xf32>
    %c0_122 = arith.constant 0 : index
    %c0_123 = arith.constant 0 : index
    %301 = vector.load %arg5[%c0_122, %c0_123] : memref<1x32xf32, #tpu.memory_space<vmem>>, vector<1x32xf32>
    %302 = vector.broadcast %301 : vector<1x32xf32> to vector<2x32xf32>
    %303 = arith.addf %300, %302 : vector<2x32xf32>
    %304 = vector.shape_cast %303 : vector<2x32xf32> to vector<2x1x32xf32>
    %305 = vector.broadcast %304 : vector<2x1x32xf32> to vector<2x16x32xf32>
    %306 = arith.addf %22, %305 : vector<2x16x32xf32>
    %307 = math.tanh %306 : vector<2x16x32xf32>
    %308 = vector.broadcast %24 : vector<1x1x32xf32> to vector<2x16x32xf32>
    %309 = arith.mulf %307, %308 : vector<2x16x32xf32>
    %cst_124 = arith.constant dense<0.000000e+00> : vector<2x16xf32>
    %310 = vector.multi_reduction <add>, %309, %cst_124 [2] : vector<2x16x32xf32> to vector<2x16xf32>
    %311 = vector.broadcast %25 : vector<1x1xf32> to vector<2x16xf32>
    %312 = arith.addf %310, %311 : vector<2x16xf32>
    %cst_125 = arith.constant dense<0xFF800000> : vector<2xf32>
    %313 = vector.multi_reduction <maximumf>, %312, %cst_125 [1] : vector<2x16xf32> to vector<2xf32>
    %314 = vector.shape_cast %313 : vector<2xf32> to vector<2x1xf32>
    %315 = vector.broadcast %314 : vector<2x1xf32> to vector<2x16xf32>
    %316 = arith.subf %312, %315 : vector<2x16xf32>
    %317 = math.exp %316 : vector<2x16xf32>
    %cst_126 = arith.constant dense<0.000000e+00> : vector<2xf32>
    %318 = vector.multi_reduction <add>, %317, %cst_126 [1] : vector<2x16xf32> to vector<2xf32>
    %319 = vector.shape_cast %318 : vector<2xf32> to vector<2x1xf32>
    %320 = tpu.reciprocal %319 {approx = true} : vector<2x1xf32> -> vector<2x1xf32>
    %321 = vector.broadcast %320 : vector<2x1xf32> to vector<2x16xf32>
    %322 = arith.mulf %317, %321 : vector<2x16xf32>
    %323 = vector.shape_cast %322 : vector<2x16xf32> to vector<2x16x1xf32>
    %324 = vector.broadcast %323 : vector<2x16x1xf32> to vector<2x16x32xf32>
    %325 = arith.mulf %324, %1 : vector<2x16x32xf32>
    %cst_127 = arith.constant dense<0.000000e+00> : vector<2x32xf32>
    %326 = vector.multi_reduction <add>, %325, %cst_127 [1] : vector<2x16x32xf32> to vector<2x32xf32>
    %327 = arith.truncf %326 : vector<2x32xf32> to vector<2x32xbf16>
    %c0_128 = arith.constant 0 : index
    %c0_129 = arith.constant 0 : index
    %328 = vector.load %arg9[%c0_128, %c0_129] : memref<32x128xbf16, #tpu.memory_space<vmem>>, vector<32x128xbf16>
    %cst_130 = arith.constant dense<0.000000e+00> : vector<2x128xf32>
    %329 = tpu.matmul %327, %328, %cst_130 {dimension_numbers = #tpu.dot_dimension_numbers<[1], [0], [0], [1], [0, 0, 1, 1], [], []>} : vector<2x32xbf16>, vector<32x128xbf16>, vector<2x128xf32> -> vector<2x128xf32>
    %330 = vector.extract_strided_slice %31 {offsets = [8, 0], sizes = [2, 128], strides = [1, 1]} : vector<16x128xf32> to vector<2x128xf32>
    %331 = arith.addf %330, %298 : vector<2x128xf32>
    %332 = arith.addf %331, %329 : vector<2x128xf32>
    %333 = vector.extract_strided_slice %332 {offsets = [0, 0], sizes = [2, 32], strides = [1, 1]} : vector<2x128xf32> to vector<2x32xf32>
    %334 = arith.negf %333 : vector<2x32xf32>
    %335 = math.exp %334 : vector<2x32xf32>
    %cst_131 = arith.constant 1.000000e+00 : f32
    %336 = vector.broadcast %cst_131 : f32 to vector<2x32xf32>
    %337 = arith.addf %336, %335 : vector<2x32xf32>
    %338 = arith.divf %336, %337 : vector<2x32xf32>
    %339 = vector.extract_strided_slice %332 {offsets = [0, 32], sizes = [2, 32], strides = [1, 1]} : vector<2x128xf32> to vector<2x32xf32>
    %340 = arith.negf %339 : vector<2x32xf32>
    %341 = math.exp %340 : vector<2x32xf32>
    %cst_132 = arith.constant 1.000000e+00 : f32
    %342 = vector.broadcast %cst_132 : f32 to vector<2x32xf32>
    %343 = arith.addf %342, %341 : vector<2x32xf32>
    %344 = arith.divf %342, %343 : vector<2x32xf32>
    %345 = vector.extract_strided_slice %332 {offsets = [0, 64], sizes = [2, 32], strides = [1, 1]} : vector<2x128xf32> to vector<2x32xf32>
    %346 = math.tanh %345 : vector<2x32xf32>
    %347 = vector.extract_strided_slice %332 {offsets = [0, 96], sizes = [2, 32], strides = [1, 1]} : vector<2x128xf32> to vector<2x32xf32>
    %348 = arith.negf %347 : vector<2x32xf32>
    %349 = math.exp %348 : vector<2x32xf32>
    %cst_133 = arith.constant 1.000000e+00 : f32
    %350 = vector.broadcast %cst_133 : f32 to vector<2x32xf32>
    %351 = arith.addf %350, %349 : vector<2x32xf32>
    %352 = arith.divf %350, %351 : vector<2x32xf32>
    %353 = arith.mulf %344, %289 : vector<2x32xf32>
    %354 = arith.mulf %338, %346 : vector<2x32xf32>
    %355 = arith.addf %353, %354 : vector<2x32xf32>
    %356 = math.tanh %355 : vector<2x32xf32>
    %357 = arith.mulf %352, %356 : vector<2x32xf32>
    %c8 = arith.constant 8 : index
    %c0_134 = arith.constant 0 : index
    %358 = vector.load %arg20[%c8, %c0_134] : memref<16x32xf32, #tpu.memory_space<vmem>>, vector<2x32xf32>
    tpu.vector_store %arg20[%c8, %c0_134], %357 {strides = array<i32>} : memref<16x32xf32, #tpu.memory_space<vmem>>, vector<2x32xf32>,
    %c4_135 = arith.constant 4 : index
    %c0_136 = arith.constant 0 : index
    %c0_137 = arith.constant 0 : index
    %359 = vector.load %arg19[%c4_135, %c0_136, %c0_137] : memref<8x2x16xf32, #tpu.memory_space<vmem>>, vector<1x2x16xf32>
    %360 = vector.shape_cast %359 : vector<1x2x16xf32> to vector<2x16xf32>
    %361 = vector.shape_cast %322 : vector<2x16xf32> to vector<1x2x16xf32>
    tpu.vector_store %arg19[%c4_135, %c0_136, %c0_137], %361 {strides = array<i32>} : memref<8x2x16xf32, #tpu.memory_space<vmem>>, vector<1x2x16xf32>,
    %362 = arith.truncf %357 : vector<2x32xf32> to vector<2x32xbf16>
    %c0_138 = arith.constant 0 : index
    %c0_139 = arith.constant 0 : index
    %363 = vector.load %arg10[%c0_138, %c0_139] : memref<32x128xbf16, #tpu.memory_space<vmem>>, vector<32x128xbf16>
    %cst_140 = arith.constant dense<0.000000e+00> : vector<2x128xf32>
    %364 = tpu.matmul %362, %363, %cst_140 {dimension_numbers = #tpu.dot_dimension_numbers<[1], [0], [0], [1], [0, 0, 1, 1], [], []>} : vector<2x32xbf16>, vector<32x128xbf16>, vector<2x128xf32> -> vector<2x128xf32>
    %c0_141 = arith.constant 0 : index
    %c0_142 = arith.constant 0 : index
    %365 = vector.load %arg4[%c0_141, %c0_142] : memref<32x32xbf16, #tpu.memory_space<vmem>>, vector<32x32xbf16>
    %cst_143 = arith.constant dense<0.000000e+00> : vector<2x32xf32>
    %366 = tpu.matmul %362, %365, %cst_143 {dimension_numbers = #tpu.dot_dimension_numbers<[1], [0], [0], [1], [0, 0, 1, 1], [], []>} : vector<2x32xbf16>, vector<32x32xbf16>, vector<2x32xf32> -> vector<2x32xf32>
    %c0_144 = arith.constant 0 : index
    %c0_145 = arith.constant 0 : index
    %367 = vector.load %arg5[%c0_144, %c0_145] : memref<1x32xf32, #tpu.memory_space<vmem>>, vector<1x32xf32>
    %368 = vector.broadcast %367 : vector<1x32xf32> to vector<2x32xf32>
    %369 = arith.addf %366, %368 : vector<2x32xf32>
    %370 = vector.shape_cast %369 : vector<2x32xf32> to vector<2x1x32xf32>
    %371 = vector.broadcast %370 : vector<2x1x32xf32> to vector<2x16x32xf32>
    %372 = arith.addf %22, %371 : vector<2x16x32xf32>
    %373 = math.tanh %372 : vector<2x16x32xf32>
    %374 = vector.broadcast %24 : vector<1x1x32xf32> to vector<2x16x32xf32>
    %375 = arith.mulf %373, %374 : vector<2x16x32xf32>
    %cst_146 = arith.constant dense<0.000000e+00> : vector<2x16xf32>
    %376 = vector.multi_reduction <add>, %375, %cst_146 [2] : vector<2x16x32xf32> to vector<2x16xf32>
    %377 = vector.broadcast %25 : vector<1x1xf32> to vector<2x16xf32>
    %378 = arith.addf %376, %377 : vector<2x16xf32>
    %cst_147 = arith.constant dense<0xFF800000> : vector<2xf32>
    %379 = vector.multi_reduction <maximumf>, %378, %cst_147 [1] : vector<2x16xf32> to vector<2xf32>
    %380 = vector.shape_cast %379 : vector<2xf32> to vector<2x1xf32>
    %381 = vector.broadcast %380 : vector<2x1xf32> to vector<2x16xf32>
    %382 = arith.subf %378, %381 : vector<2x16xf32>
    %383 = math.exp %382 : vector<2x16xf32>
    %cst_148 = arith.constant dense<0.000000e+00> : vector<2xf32>
    %384 = vector.multi_reduction <add>, %383, %cst_148 [1] : vector<2x16xf32> to vector<2xf32>
    %385 = vector.shape_cast %384 : vector<2xf32> to vector<2x1xf32>
    %386 = tpu.reciprocal %385 {approx = true} : vector<2x1xf32> -> vector<2x1xf32>
    %387 = vector.broadcast %386 : vector<2x1xf32> to vector<2x16xf32>
    %388 = arith.mulf %383, %387 : vector<2x16xf32>
    %389 = vector.shape_cast %388 : vector<2x16xf32> to vector<2x16x1xf32>
    %390 = vector.broadcast %389 : vector<2x16x1xf32> to vector<2x16x32xf32>
    %391 = arith.mulf %390, %1 : vector<2x16x32xf32>
    %cst_149 = arith.constant dense<0.000000e+00> : vector<2x32xf32>
    %392 = vector.multi_reduction <add>, %391, %cst_149 [1] : vector<2x16x32xf32> to vector<2x32xf32>
    %393 = arith.truncf %392 : vector<2x32xf32> to vector<2x32xbf16>
    %c0_150 = arith.constant 0 : index
    %c0_151 = arith.constant 0 : index
    %394 = vector.load %arg9[%c0_150, %c0_151] : memref<32x128xbf16, #tpu.memory_space<vmem>>, vector<32x128xbf16>
    %cst_152 = arith.constant dense<0.000000e+00> : vector<2x128xf32>
    %395 = tpu.matmul %393, %394, %cst_152 {dimension_numbers = #tpu.dot_dimension_numbers<[1], [0], [0], [1], [0, 0, 1, 1], [], []>} : vector<2x32xbf16>, vector<32x128xbf16>, vector<2x128xf32> -> vector<2x128xf32>
    %396 = vector.extract_strided_slice %31 {offsets = [10, 0], sizes = [2, 128], strides = [1, 1]} : vector<16x128xf32> to vector<2x128xf32>
    %397 = arith.addf %396, %364 : vector<2x128xf32>
    %398 = arith.addf %397, %395 : vector<2x128xf32>
    %399 = vector.extract_strided_slice %398 {offsets = [0, 0], sizes = [2, 32], strides = [1, 1]} : vector<2x128xf32> to vector<2x32xf32>
    %400 = arith.negf %399 : vector<2x32xf32>
    %401 = math.exp %400 : vector<2x32xf32>
    %cst_153 = arith.constant 1.000000e+00 : f32
    %402 = vector.broadcast %cst_153 : f32 to vector<2x32xf32>
    %403 = arith.addf %402, %401 : vector<2x32xf32>
    %404 = arith.divf %402, %403 : vector<2x32xf32>
    %405 = vector.extract_strided_slice %398 {offsets = [0, 32], sizes = [2, 32], strides = [1, 1]} : vector<2x128xf32> to vector<2x32xf32>
    %406 = arith.negf %405 : vector<2x32xf32>
    %407 = math.exp %406 : vector<2x32xf32>
    %cst_154 = arith.constant 1.000000e+00 : f32
    %408 = vector.broadcast %cst_154 : f32 to vector<2x32xf32>
    %409 = arith.addf %408, %407 : vector<2x32xf32>
    %410 = arith.divf %408, %409 : vector<2x32xf32>
    %411 = vector.extract_strided_slice %398 {offsets = [0, 64], sizes = [2, 32], strides = [1, 1]} : vector<2x128xf32> to vector<2x32xf32>
    %412 = math.tanh %411 : vector<2x32xf32>
    %413 = vector.extract_strided_slice %398 {offsets = [0, 96], sizes = [2, 32], strides = [1, 1]} : vector<2x128xf32> to vector<2x32xf32>
    %414 = arith.negf %413 : vector<2x32xf32>
    %415 = math.exp %414 : vector<2x32xf32>
    %cst_155 = arith.constant 1.000000e+00 : f32
    %416 = vector.broadcast %cst_155 : f32 to vector<2x32xf32>
    %417 = arith.addf %416, %415 : vector<2x32xf32>
    %418 = arith.divf %416, %417 : vector<2x32xf32>
    %419 = arith.mulf %410, %355 : vector<2x32xf32>
    %420 = arith.mulf %404, %412 : vector<2x32xf32>
    %421 = arith.addf %419, %420 : vector<2x32xf32>
    %422 = math.tanh %421 : vector<2x32xf32>
    %423 = arith.mulf %418, %422 : vector<2x32xf32>
    %c10 = arith.constant 10 : index
    %c0_156 = arith.constant 0 : index
    %424 = vector.load %arg20[%c10, %c0_156] : memref<16x32xf32, #tpu.memory_space<vmem>>, vector<2x32xf32>
    tpu.vector_store %arg20[%c10, %c0_156], %423 {strides = array<i32>} : memref<16x32xf32, #tpu.memory_space<vmem>>, vector<2x32xf32>,
    %c5 = arith.constant 5 : index
    %c0_157 = arith.constant 0 : index
    %c0_158 = arith.constant 0 : index
    %425 = vector.load %arg19[%c5, %c0_157, %c0_158] : memref<8x2x16xf32, #tpu.memory_space<vmem>>, vector<1x2x16xf32>
    %426 = vector.shape_cast %425 : vector<1x2x16xf32> to vector<2x16xf32>
    %427 = vector.shape_cast %388 : vector<2x16xf32> to vector<1x2x16xf32>
    tpu.vector_store %arg19[%c5, %c0_157, %c0_158], %427 {strides = array<i32>} : memref<8x2x16xf32, #tpu.memory_space<vmem>>, vector<1x2x16xf32>,
    %428 = arith.truncf %423 : vector<2x32xf32> to vector<2x32xbf16>
    %c0_159 = arith.constant 0 : index
    %c0_160 = arith.constant 0 : index
    %429 = vector.load %arg10[%c0_159, %c0_160] : memref<32x128xbf16, #tpu.memory_space<vmem>>, vector<32x128xbf16>
    %cst_161 = arith.constant dense<0.000000e+00> : vector<2x128xf32>
    %430 = tpu.matmul %428, %429, %cst_161 {dimension_numbers = #tpu.dot_dimension_numbers<[1], [0], [0], [1], [0, 0, 1, 1], [], []>} : vector<2x32xbf16>, vector<32x128xbf16>, vector<2x128xf32> -> vector<2x128xf32>
    %c0_162 = arith.constant 0 : index
    %c0_163 = arith.constant 0 : index
    %431 = vector.load %arg4[%c0_162, %c0_163] : memref<32x32xbf16, #tpu.memory_space<vmem>>, vector<32x32xbf16>
    %cst_164 = arith.constant dense<0.000000e+00> : vector<2x32xf32>
    %432 = tpu.matmul %428, %431, %cst_164 {dimension_numbers = #tpu.dot_dimension_numbers<[1], [0], [0], [1], [0, 0, 1, 1], [], []>} : vector<2x32xbf16>, vector<32x32xbf16>, vector<2x32xf32> -> vector<2x32xf32>
    %c0_165 = arith.constant 0 : index
    %c0_166 = arith.constant 0 : index
    %433 = vector.load %arg5[%c0_165, %c0_166] : memref<1x32xf32, #tpu.memory_space<vmem>>, vector<1x32xf32>
    %434 = vector.broadcast %433 : vector<1x32xf32> to vector<2x32xf32>
    %435 = arith.addf %432, %434 : vector<2x32xf32>
    %436 = vector.shape_cast %435 : vector<2x32xf32> to vector<2x1x32xf32>
    %437 = vector.broadcast %436 : vector<2x1x32xf32> to vector<2x16x32xf32>
    %438 = arith.addf %22, %437 : vector<2x16x32xf32>
    %439 = math.tanh %438 : vector<2x16x32xf32>
    %440 = vector.broadcast %24 : vector<1x1x32xf32> to vector<2x16x32xf32>
    %441 = arith.mulf %439, %440 : vector<2x16x32xf32>
    %cst_167 = arith.constant dense<0.000000e+00> : vector<2x16xf32>
    %442 = vector.multi_reduction <add>, %441, %cst_167 [2] : vector<2x16x32xf32> to vector<2x16xf32>
    %443 = vector.broadcast %25 : vector<1x1xf32> to vector<2x16xf32>
    %444 = arith.addf %442, %443 : vector<2x16xf32>
    %cst_168 = arith.constant dense<0xFF800000> : vector<2xf32>
    %445 = vector.multi_reduction <maximumf>, %444, %cst_168 [1] : vector<2x16xf32> to vector<2xf32>
    %446 = vector.shape_cast %445 : vector<2xf32> to vector<2x1xf32>
    %447 = vector.broadcast %446 : vector<2x1xf32> to vector<2x16xf32>
    %448 = arith.subf %444, %447 : vector<2x16xf32>
    %449 = math.exp %448 : vector<2x16xf32>
    %cst_169 = arith.constant dense<0.000000e+00> : vector<2xf32>
    %450 = vector.multi_reduction <add>, %449, %cst_169 [1] : vector<2x16xf32> to vector<2xf32>
    %451 = vector.shape_cast %450 : vector<2xf32> to vector<2x1xf32>
    %452 = tpu.reciprocal %451 {approx = true} : vector<2x1xf32> -> vector<2x1xf32>
    %453 = vector.broadcast %452 : vector<2x1xf32> to vector<2x16xf32>
    %454 = arith.mulf %449, %453 : vector<2x16xf32>
    %455 = vector.shape_cast %454 : vector<2x16xf32> to vector<2x16x1xf32>
    %456 = vector.broadcast %455 : vector<2x16x1xf32> to vector<2x16x32xf32>
    %457 = arith.mulf %456, %1 : vector<2x16x32xf32>
    %cst_170 = arith.constant dense<0.000000e+00> : vector<2x32xf32>
    %458 = vector.multi_reduction <add>, %457, %cst_170 [1] : vector<2x16x32xf32> to vector<2x32xf32>
    %459 = arith.truncf %458 : vector<2x32xf32> to vector<2x32xbf16>
    %c0_171 = arith.constant 0 : index
    %c0_172 = arith.constant 0 : index
    %460 = vector.load %arg9[%c0_171, %c0_172] : memref<32x128xbf16, #tpu.memory_space<vmem>>, vector<32x128xbf16>
    %cst_173 = arith.constant dense<0.000000e+00> : vector<2x128xf32>
    %461 = tpu.matmul %459, %460, %cst_173 {dimension_numbers = #tpu.dot_dimension_numbers<[1], [0], [0], [1], [0, 0, 1, 1], [], []>} : vector<2x32xbf16>, vector<32x128xbf16>, vector<2x128xf32> -> vector<2x128xf32>
    %462 = vector.extract_strided_slice %31 {offsets = [12, 0], sizes = [2, 128], strides = [1, 1]} : vector<16x128xf32> to vector<2x128xf32>
    %463 = arith.addf %462, %430 : vector<2x128xf32>
    %464 = arith.addf %463, %461 : vector<2x128xf32>
    %465 = vector.extract_strided_slice %464 {offsets = [0, 0], sizes = [2, 32], strides = [1, 1]} : vector<2x128xf32> to vector<2x32xf32>
    %466 = arith.negf %465 : vector<2x32xf32>
    %467 = math.exp %466 : vector<2x32xf32>
    %cst_174 = arith.constant 1.000000e+00 : f32
    %468 = vector.broadcast %cst_174 : f32 to vector<2x32xf32>
    %469 = arith.addf %468, %467 : vector<2x32xf32>
    %470 = arith.divf %468, %469 : vector<2x32xf32>
    %471 = vector.extract_strided_slice %464 {offsets = [0, 32], sizes = [2, 32], strides = [1, 1]} : vector<2x128xf32> to vector<2x32xf32>
    %472 = arith.negf %471 : vector<2x32xf32>
    %473 = math.exp %472 : vector<2x32xf32>
    %cst_175 = arith.constant 1.000000e+00 : f32
    %474 = vector.broadcast %cst_175 : f32 to vector<2x32xf32>
    %475 = arith.addf %474, %473 : vector<2x32xf32>
    %476 = arith.divf %474, %475 : vector<2x32xf32>
    %477 = vector.extract_strided_slice %464 {offsets = [0, 64], sizes = [2, 32], strides = [1, 1]} : vector<2x128xf32> to vector<2x32xf32>
    %478 = math.tanh %477 : vector<2x32xf32>
    %479 = vector.extract_strided_slice %464 {offsets = [0, 96], sizes = [2, 32], strides = [1, 1]} : vector<2x128xf32> to vector<2x32xf32>
    %480 = arith.negf %479 : vector<2x32xf32>
    %481 = math.exp %480 : vector<2x32xf32>
    %cst_176 = arith.constant 1.000000e+00 : f32
    %482 = vector.broadcast %cst_176 : f32 to vector<2x32xf32>
    %483 = arith.addf %482, %481 : vector<2x32xf32>
    %484 = arith.divf %482, %483 : vector<2x32xf32>
    %485 = arith.mulf %476, %421 : vector<2x32xf32>
    %486 = arith.mulf %470, %478 : vector<2x32xf32>
    %487 = arith.addf %485, %486 : vector<2x32xf32>
    %488 = math.tanh %487 : vector<2x32xf32>
    %489 = arith.mulf %484, %488 : vector<2x32xf32>
    %c12 = arith.constant 12 : index
    %c0_177 = arith.constant 0 : index
    %490 = vector.load %arg20[%c12, %c0_177] : memref<16x32xf32, #tpu.memory_space<vmem>>, vector<2x32xf32>
    tpu.vector_store %arg20[%c12, %c0_177], %489 {strides = array<i32>} : memref<16x32xf32, #tpu.memory_space<vmem>>, vector<2x32xf32>,
    %c6_178 = arith.constant 6 : index
    %c0_179 = arith.constant 0 : index
    %c0_180 = arith.constant 0 : index
    %491 = vector.load %arg19[%c6_178, %c0_179, %c0_180] : memref<8x2x16xf32, #tpu.memory_space<vmem>>, vector<1x2x16xf32>
    %492 = vector.shape_cast %491 : vector<1x2x16xf32> to vector<2x16xf32>
    %493 = vector.shape_cast %454 : vector<2x16xf32> to vector<1x2x16xf32>
    tpu.vector_store %arg19[%c6_178, %c0_179, %c0_180], %493 {strides = array<i32>} : memref<8x2x16xf32, #tpu.memory_space<vmem>>, vector<1x2x16xf32>,
    %494 = arith.truncf %489 : vector<2x32xf32> to vector<2x32xbf16>
    %c0_181 = arith.constant 0 : index
    %c0_182 = arith.constant 0 : index
    %495 = vector.load %arg10[%c0_181, %c0_182] : memref<32x128xbf16, #tpu.memory_space<vmem>>, vector<32x128xbf16>
    %cst_183 = arith.constant dense<0.000000e+00> : vector<2x128xf32>
    %496 = tpu.matmul %494, %495, %cst_183 {dimension_numbers = #tpu.dot_dimension_numbers<[1], [0], [0], [1], [0, 0, 1, 1], [], []>} : vector<2x32xbf16>, vector<32x128xbf16>, vector<2x128xf32> -> vector<2x128xf32>
    %c0_184 = arith.constant 0 : index
    %c0_185 = arith.constant 0 : index
    %497 = vector.load %arg4[%c0_184, %c0_185] : memref<32x32xbf16, #tpu.memory_space<vmem>>, vector<32x32xbf16>
    %cst_186 = arith.constant dense<0.000000e+00> : vector<2x32xf32>
    %498 = tpu.matmul %494, %497, %cst_186 {dimension_numbers = #tpu.dot_dimension_numbers<[1], [0], [0], [1], [0, 0, 1, 1], [], []>} : vector<2x32xbf16>, vector<32x32xbf16>, vector<2x32xf32> -> vector<2x32xf32>
    %c0_187 = arith.constant 0 : index
    %c0_188 = arith.constant 0 : index
    %499 = vector.load %arg5[%c0_187, %c0_188] : memref<1x32xf32, #tpu.memory_space<vmem>>, vector<1x32xf32>
    %500 = vector.broadcast %499 : vector<1x32xf32> to vector<2x32xf32>
    %501 = arith.addf %498, %500 : vector<2x32xf32>
    %502 = vector.shape_cast %501 : vector<2x32xf32> to vector<2x1x32xf32>
    %503 = vector.broadcast %502 : vector<2x1x32xf32> to vector<2x16x32xf32>
    %504 = arith.addf %22, %503 : vector<2x16x32xf32>
    %505 = math.tanh %504 : vector<2x16x32xf32>
    %506 = vector.broadcast %24 : vector<1x1x32xf32> to vector<2x16x32xf32>
    %507 = arith.mulf %505, %506 : vector<2x16x32xf32>
    %cst_189 = arith.constant dense<0.000000e+00> : vector<2x16xf32>
    %508 = vector.multi_reduction <add>, %507, %cst_189 [2] : vector<2x16x32xf32> to vector<2x16xf32>
    %509 = vector.broadcast %25 : vector<1x1xf32> to vector<2x16xf32>
    %510 = arith.addf %508, %509 : vector<2x16xf32>
    %cst_190 = arith.constant dense<0xFF800000> : vector<2xf32>
    %511 = vector.multi_reduction <maximumf>, %510, %cst_190 [1] : vector<2x16xf32> to vector<2xf32>
    %512 = vector.shape_cast %511 : vector<2xf32> to vector<2x1xf32>
    %513 = vector.broadcast %512 : vector<2x1xf32> to vector<2x16xf32>
    %514 = arith.subf %510, %513 : vector<2x16xf32>
    %515 = math.exp %514 : vector<2x16xf32>
    %cst_191 = arith.constant dense<0.000000e+00> : vector<2xf32>
    %516 = vector.multi_reduction <add>, %515, %cst_191 [1] : vector<2x16xf32> to vector<2xf32>
    %517 = vector.shape_cast %516 : vector<2xf32> to vector<2x1xf32>
    %518 = tpu.reciprocal %517 {approx = true} : vector<2x1xf32> -> vector<2x1xf32>
    %519 = vector.broadcast %518 : vector<2x1xf32> to vector<2x16xf32>
    %520 = arith.mulf %515, %519 : vector<2x16xf32>
    %521 = vector.shape_cast %520 : vector<2x16xf32> to vector<2x16x1xf32>
    %522 = vector.broadcast %521 : vector<2x16x1xf32> to vector<2x16x32xf32>
    %523 = arith.mulf %522, %1 : vector<2x16x32xf32>
    %cst_192 = arith.constant dense<0.000000e+00> : vector<2x32xf32>
    %524 = vector.multi_reduction <add>, %523, %cst_192 [1] : vector<2x16x32xf32> to vector<2x32xf32>
    %525 = arith.truncf %524 : vector<2x32xf32> to vector<2x32xbf16>
    %c0_193 = arith.constant 0 : index
    %c0_194 = arith.constant 0 : index
    %526 = vector.load %arg9[%c0_193, %c0_194] : memref<32x128xbf16, #tpu.memory_space<vmem>>, vector<32x128xbf16>
    %cst_195 = arith.constant dense<0.000000e+00> : vector<2x128xf32>
    %527 = tpu.matmul %525, %526, %cst_195 {dimension_numbers = #tpu.dot_dimension_numbers<[1], [0], [0], [1], [0, 0, 1, 1], [], []>} : vector<2x32xbf16>, vector<32x128xbf16>, vector<2x128xf32> -> vector<2x128xf32>
    %528 = vector.extract_strided_slice %31 {offsets = [14, 0], sizes = [2, 128], strides = [1, 1]} : vector<16x128xf32> to vector<2x128xf32>
    %529 = arith.addf %528, %496 : vector<2x128xf32>
    %530 = arith.addf %529, %527 : vector<2x128xf32>
    %531 = vector.extract_strided_slice %530 {offsets = [0, 0], sizes = [2, 32], strides = [1, 1]} : vector<2x128xf32> to vector<2x32xf32>
    %532 = arith.negf %531 : vector<2x32xf32>
    %533 = math.exp %532 : vector<2x32xf32>
    %cst_196 = arith.constant 1.000000e+00 : f32
    %534 = vector.broadcast %cst_196 : f32 to vector<2x32xf32>
    %535 = arith.addf %534, %533 : vector<2x32xf32>
    %536 = arith.divf %534, %535 : vector<2x32xf32>
    %537 = vector.extract_strided_slice %530 {offsets = [0, 32], sizes = [2, 32], strides = [1, 1]} : vector<2x128xf32> to vector<2x32xf32>
    %538 = arith.negf %537 : vector<2x32xf32>
    %539 = math.exp %538 : vector<2x32xf32>
    %cst_197 = arith.constant 1.000000e+00 : f32
    %540 = vector.broadcast %cst_197 : f32 to vector<2x32xf32>
    %541 = arith.addf %540, %539 : vector<2x32xf32>
    %542 = arith.divf %540, %541 : vector<2x32xf32>
    %543 = vector.extract_strided_slice %530 {offsets = [0, 64], sizes = [2, 32], strides = [1, 1]} : vector<2x128xf32> to vector<2x32xf32>
    %544 = math.tanh %543 : vector<2x32xf32>
    %545 = vector.extract_strided_slice %530 {offsets = [0, 96], sizes = [2, 32], strides = [1, 1]} : vector<2x128xf32> to vector<2x32xf32>
    %546 = arith.negf %545 : vector<2x32xf32>
    %547 = math.exp %546 : vector<2x32xf32>
    %cst_198 = arith.constant 1.000000e+00 : f32
    %548 = vector.broadcast %cst_198 : f32 to vector<2x32xf32>
    %549 = arith.addf %548, %547 : vector<2x32xf32>
    %550 = arith.divf %548, %549 : vector<2x32xf32>
    %551 = arith.mulf %542, %487 : vector<2x32xf32>
    %552 = arith.mulf %536, %544 : vector<2x32xf32>
    %553 = arith.addf %551, %552 : vector<2x32xf32>
    %554 = math.tanh %553 : vector<2x32xf32>
    %555 = arith.mulf %550, %554 : vector<2x32xf32>
    %c14 = arith.constant 14 : index
    %c0_199 = arith.constant 0 : index
    %556 = vector.load %arg20[%c14, %c0_199] : memref<16x32xf32, #tpu.memory_space<vmem>>, vector<2x32xf32>
    tpu.vector_store %arg20[%c14, %c0_199], %555 {strides = array<i32>} : memref<16x32xf32, #tpu.memory_space<vmem>>, vector<2x32xf32>,
    %c7 = arith.constant 7 : index
    %c0_200 = arith.constant 0 : index
    %c0_201 = arith.constant 0 : index
    %557 = vector.load %arg19[%c7, %c0_200, %c0_201] : memref<8x2x16xf32, #tpu.memory_space<vmem>>, vector<1x2x16xf32>
    %558 = vector.shape_cast %557 : vector<1x2x16xf32> to vector<2x16xf32>
    %559 = vector.shape_cast %520 : vector<2x16xf32> to vector<1x2x16xf32>
    tpu.vector_store %arg19[%c7, %c0_200, %c0_201], %559 {strides = array<i32>} : memref<8x2x16xf32, #tpu.memory_space<vmem>>, vector<1x2x16xf32>,
    %c0_202 = arith.constant 0 : index
    %c0_203 = arith.constant 0 : index
    %560 = vector.load %arg20[%c0_202, %c0_203] : memref<16x32xf32, #tpu.memory_space<vmem>>, vector<16x32xf32>
    %561 = arith.truncf %560 : vector<16x32xf32> to vector<16x32xbf16>
    %c0_204 = arith.constant 0 : index
    %c0_205 = arith.constant 0 : index
    %562 = vector.load %arg12[%c0_204, %c0_205] : memref<32x128xbf16, #tpu.memory_space<vmem>>, vector<32x128xbf16>
    %cst_206 = arith.constant dense<0.000000e+00> : vector<16x128xf32>
    %563 = tpu.matmul %561, %562, %cst_206 {dimension_numbers = #tpu.dot_dimension_numbers<[1], [0], [0], [1], [0, 0, 1, 1], [], []>} : vector<16x32xbf16>, vector<32x128xbf16>, vector<16x128xf32> -> vector<16x128xf32>
    %c0_207 = arith.constant 0 : index
    %c0_208 = arith.constant 0 : index
    %564 = vector.load %arg13[%c0_207, %c0_208] : memref<1x128xf32, #tpu.memory_space<vmem>>, vector<1x128xf32>
    %565 = vector.broadcast %564 : vector<1x128xf32> to vector<16x128xf32>
    %566 = arith.addf %563, %565 : vector<16x128xf32>
    %c0_209 = arith.constant 0 : index
    %c0_210 = arith.constant 0 : index
    %567 = vector.load %arg18[%c0_209, %c0_210] : memref<16x128xf32, #tpu.memory_space<vmem>>, vector<16x128xf32>
    tpu.vector_store %arg18[%c0_209, %c0_210], %566 {strides = array<i32>} : memref<16x128xf32, #tpu.memory_space<vmem>>, vector<16x128xf32>,
    return
  }
}

</mosaic_0001>

<llo_original>
// kernel: tpu_custom_call.1
$region0: #{tpu_custom_call.1}
  #allocation0 [shape = 'u32[]', space=smem, size = 0x4, offset = 0x4, fixed_abs, tag = 'smem constant byte address 0x4 - core index']
  #allocation1 [shape = 'u32[144,128]{1,0:T(1,128)}', space=vmem, size = 0x12000, scoped, tag = 'internal scratch']
  #allocation2 [shape = 'f32[16,32]{1,0:T(8,128)}', space=vmem, size = 0x2000, scoped, tag = 'scratch operand']
  #allocation3 [shape = 'f32[1,1]{1,0:T(1,128)S(1)}', space=vmem, size = 0x200, scoped, tag = 'scoped memory for tpu_custom_call.1']
  %s0 = inlined_call_operand.hbm [shape: bf16[2,16,32], index: 0, kind: input, shape index: {}]
  %s1 = inlined_call_operand.hbm [shape: bf16[16,32], index: 1, kind: input, shape index: {}]
  %s2 = inlined_call_operand.hbm [shape: bf16[32,32], index: 2, kind: input, shape index: {}]
  %s3 = inlined_call_operand.hbm [shape: f32[1,32], index: 3, kind: input, shape index: {}]
  %s4 = inlined_call_operand.hbm [shape: bf16[32,32], index: 4, kind: input, shape index: {}]
  %s5 = inlined_call_operand.hbm [shape: f32[1,32], index: 5, kind: input, shape index: {}]
  %s6 = inlined_call_operand.hbm [shape: f32[1,32], index: 6, kind: input, shape index: {}]
  %s7 = inlined_call_operand.<no memory space> [shape: f32[1,1], index: 7, kind: input, shape index: {}]
  %s8 = inlined_call_operand.hbm [shape: bf16[32,128], index: 8, kind: input, shape index: {}]
  %s9 = inlined_call_operand.hbm [shape: bf16[32,128], index: 9, kind: input, shape index: {}]
  %s10 = inlined_call_operand.hbm [shape: bf16[32,128], index: 10, kind: input, shape index: {}]
  %s11 = inlined_call_operand.hbm [shape: f32[1,128], index: 11, kind: input, shape index: {}]
  %s12 = inlined_call_operand.hbm [shape: bf16[32,128], index: 12, kind: input, shape index: {}]
  %s13 = inlined_call_operand.hbm [shape: f32[1,128], index: 13, kind: input, shape index: {}]
  %s14 = inlined_call_operand.hbm [shape: bf16[32,32], index: 14, kind: input, shape index: {}]
  %s15 = inlined_call_operand.hbm [shape: f32[1,32], index: 15, kind: input, shape index: {}]
  %s16 = inlined_call_operand.hbm [shape: bf16[32,32], index: 16, kind: input, shape index: {}]
  %s17 = inlined_call_operand.hbm [shape: f32[1,32], index: 17, kind: input, shape index: {}]
  %s18 = inlined_call_operand.hbm [shape: f32[16,128], index: 18, kind: output, shape index: {0}]
  %s19 = inlined_call_operand.hbm [shape: f32[8,2,16], index: 19, kind: output, shape index: {1}]
  %20 = xla_tuple %s18, %s19
  %s21 = sld [smem:[#allocation0]]
  $region158: #{tpu_custom_call.1} parent=0
    _
  %s23 = ssub.s32 1, %s21
  %s24 = scalar_select 0, %s23, %s21
  %v25 = vstv %s7
  %26 = vst [vmem:[#allocation3] sm:$0x1] %v25
  $region1: #{tpu_custom_call.1} parent=0
    #allocation4 [shape = 'u8[8192]{0}', space=vmem, size = 0x2000, scoped, tag = 'input window, operand 0, single buffered']
    #allocation5 [shape = 's32[1]{0}', space=sflag, size = 0x4, scoped, tag = 'scoped memory for tpu_custom_call.1']
    #allocation6 [shape = 's32[1]{0}', space=sflag, size = 0x4, scoped, tag = 'scoped memory for tpu_custom_call.1']
    #allocation7 [shape = 'u8[4096]{0}', space=vmem, size = 0x1000, scoped, tag = 'input window, operand 1, single buffered']
    #allocation8 [shape = 's32[1]{0}', space=sflag, size = 0x4, scoped, tag = 'scoped memory for tpu_custom_call.1']
    #allocation9 [shape = 'u8[8192]{0}', space=vmem, size = 0x2000, scoped, tag = 'input window, operand 2, single buffered']
    #allocation10 [shape = 'u8[512]{0}', space=vmem, size = 0x400, scoped, tag = 'input window, operand 3, single buffered']
    #allocation11 [shape = 's32[1]{0}', space=sflag, size = 0x4, scoped, tag = 'scoped memory for tpu_custom_call.1']
    #allocation12 [shape = 'u8[8192]{0}', space=vmem, size = 0x2000, scoped, tag = 'input window, operand 4, single buffered']
    #allocation13 [shape = 'u8[512]{0}', space=vmem, size = 0x400, scoped, tag = 'input window, operand 5, single buffered']
    #allocation14 [shape = 's32[1]{0}', space=sflag, size = 0x4, scoped, tag = 'scoped memory for tpu_custom_call.1']
    #allocation15 [shape = 'u8[512]{0}', space=vmem, size = 0x400, scoped, tag = 'input window, operand 6, single buffered']
    #allocation16 [shape = 'u8[8192]{0}', space=vmem, size = 0x2000, scoped, tag = 'input window, operand 8, single buffered']
    #allocation17 [shape = 's32[1]{0}', space=sflag, size = 0x4, scoped, tag = 'scoped memory for tpu_custom_call.1']
    #allocation18 [shape = 'u8[8192]{0}', space=vmem, size = 0x2000, scoped, tag = 'input window, operand 9, single buffered']
    #allocation19 [shape = 'u8[8192]{0}', space=vmem, size = 0x2000, scoped, tag = 'input window, operand 10, single buffered']
    #allocation20 [shape = 's32[1]{0}', space=sflag, size = 0x4, scoped, tag = 'scoped memory for tpu_custom_call.1']
    #allocation21 [shape = 'u8[512]{0}', space=vmem, size = 0x400, scoped, tag = 'input window, operand 11, single buffered']
    #allocation22 [shape = 'u8[8192]{0}', space=vmem, size = 0x2000, scoped, tag = 'input window, operand 12, single buffered']
    #allocation23 [shape = 's32[1]{0}', space=sflag, size = 0x4, scoped, tag = 'scoped memory for tpu_custom_call.1']
    #allocation24 [shape = 'u8[512]{0}', space=vmem, size = 0x400, scoped, tag = 'input window, operand 13, single buffered']
    #allocation25 [shape = 'u8[8192]{0}', space=vmem, size = 0x2000, scoped, tag = 'input window, operand 14, single buffered']
    #allocation26 [shape = 's32[1]{0}', space=sflag, size = 0x4, scoped, tag = 'scoped memory for tpu_custom_call.1']
    #allocation27 [shape = 'u8[512]{0}', space=vmem, size = 0x400, scoped, tag = 'input window, operand 15, single buffered']
    #allocation28 [shape = 'u8[8192]{0}', space=vmem, size = 0x2000, scoped, tag = 'input window, operand 16, single buffered']
    #allocation29 [shape = 's32[1]{0}', space=sflag, size = 0x4, scoped, tag = 'scoped memory for tpu_custom_call.1']
    #allocation30 [shape = 'u8[512]{0}', space=vmem, size = 0x400, scoped, tag = 'input window, operand 17, single buffered']
    #allocation31 [shape = 'u8[8192]{0}', space=vmem, size = 0x2000, scoped, tag = 'output window, operand 0, single buffered']
    #allocation32 [shape = 'u8[8192]{0}', space=vmem, size = 0x2000, scoped, tag = 'output window, operand 1, single buffered']
    #allocation33 [shape = 's32[1]{0}', space=sflag, size = 0x4, scoped, tag = 'scoped memory for tpu_custom_call.1']
    %27 = vsyncpa [#allocation5], 0
    %28 = vsyncpa [#allocation8], 0
    %29 = vsyncpa [#allocation11], 0
    %30 = vsyncpa [#allocation14], 0
    %31 = vsyncpa [#allocation17], 0
    %32 = vsyncpa [#allocation20], 0
    %33 = vsyncpa [#allocation23], 0
    %34 = vsyncpa [#allocation26], 0
    %35 = vsyncpa [#allocation29], 0
    %36 = vsyncpa [#allocation6], 0
    %37 = vsyncpa [#allocation33], 0
    // Predicated region
    $region2: #{tpu_custom_call.1} parent=1 // pred_check
      _
    $region3: #{tpu_custom_call.1} parent=1 // pred_check_branch
      %39 = sbr.rel (0) target = $region5
    $region4: #{tpu_custom_call.1} parent=1 // pred_region
      %s41 = ssub.s32 256, 256
      %42 = vsyncadd [#allocation5], %s41
      %s43 = sshll.u32 [#allocation4], 4
      %s44 = int_to_ptr.vmem [resolvable:$true] %s43
      %49 = dma.hbm_to_vmem [thread:$0]  %s0, 256, %s44, [#allocation5], 64, 64, 4
    $region5: #{tpu_custom_call.1} parent=1 // pred_fallthru
      _
    // Predicated region
    $region6: #{tpu_custom_call.1} parent=1 // pred_check
      _
    $region7: #{tpu_custom_call.1} parent=1 // pred_check_branch
      %51 = sbr.rel (0) target = $region9
    $region8: #{tpu_custom_call.1} parent=1 // pred_region
      %s53 = ssub.s32 128, 128
      %54 = vsyncadd [#allocation8], %s53
      %s55 = sshll.u32 [#allocation7], 4
      %s56 = int_to_ptr.vmem [resolvable:$true] %s55
      %61 = dma.hbm_to_vmem [thread:$0]  %s1, 128, %s56, [#allocation8], 64, 64, 4
    $region9: #{tpu_custom_call.1} parent=1 // pred_fallthru
      _
    // Predicated region
    $region10: #{tpu_custom_call.1} parent=1 // pred_check
      _
    $region11: #{tpu_custom_call.1} parent=1 // pred_check_branch
      %63 = sbr.rel (0) target = $region13
    $region12: #{tpu_custom_call.1} parent=1 // pred_region
      %s65 = ssub.s32 256, 256
      %66 = vsyncadd [#allocation8], %s65
      %s67 = sshll.u32 [#allocation9], 4
      %s68 = int_to_ptr.vmem [resolvable:$true] %s67
      %73 = dma.hbm_to_vmem [thread:$0]  %s2, 256, %s68, [#allocation8], 64, 64, 4
    $region13: #{tpu_custom_call.1} parent=1 // pred_fallthru
      _
    // Predicated region
    $region14: #{tpu_custom_call.1} parent=1 // pred_check
      _
    $region15: #{tpu_custom_call.1} parent=1 // pred_check_branch
      %75 = sbr.rel (0) target = $region17
    $region16: #{tpu_custom_call.1} parent=1 // pred_region
      %s77 = ssub.s32 16, 16
      %78 = vsyncadd [#allocation11], %s77
      %s80 = sshll.u32 [#allocation10], 4
      %s81 = int_to_ptr.vmem [resolvable:$true] %s80
      %83 = dma.hbm_to_vmem [thread:$0]  %s3, 16, %s81, [#allocation11]
    $region17: #{tpu_custom_call.1} parent=1 // pred_fallthru
      _
    // Predicated region
    $region18: #{tpu_custom_call.1} parent=1 // pred_check
      _
    $region19: #{tpu_custom_call.1} parent=1 // pred_check_branch
      %85 = sbr.rel (0) target = $region21
    $region20: #{tpu_custom_call.1} parent=1 // pred_region
      %s87 = ssub.s32 256, 256
      %88 = vsyncadd [#allocation11], %s87
      %s89 = sshll.u32 [#allocation12], 4
      %s90 = int_to_ptr.vmem [resolvable:$true] %s89
      %95 = dma.hbm_to_vmem [thread:$0]  %s4, 256, %s90, [#allocation11], 64, 64, 4
    $region21: #{tpu_custom_call.1} parent=1 // pred_fallthru
      _
    // Predicated region
    $region22: #{tpu_custom_call.1} parent=1 // pred_check
      _
    $region23: #{tpu_custom_call.1} parent=1 // pred_check_branch
      %97 = sbr.rel (0) target = $region25
    $region24: #{tpu_custom_call.1} parent=1 // pred_region
      %s99 = ssub.s32 16, 16
      %100 = vsyncadd [#allocation14], %s99
      %s102 = sshll.u32 [#allocation13], 4
      %s103 = int_to_ptr.vmem [resolvable:$true] %s102
      %105 = dma.hbm_to_vmem [thread:$0]  %s5, 16, %s103, [#allocation14]
    $region25: #{tpu_custom_call.1} parent=1 // pred_fallthru
      _
    // Predicated region
    $region26: #{tpu_custom_call.1} parent=1 // pred_check
      _
    $region27: #{tpu_custom_call.1} parent=1 // pred_check_branch
      %107 = sbr.rel (0) target = $region29
    $region28: #{tpu_custom_call.1} parent=1 // pred_region
      %s109 = ssub.s32 16, 16
      %110 = vsyncadd [#allocation14], %s109
      %s112 = sshll.u32 [#allocation15], 4
      %s113 = int_to_ptr.vmem [resolvable:$true] %s112
      %115 = dma.hbm_to_vmem [thread:$0]  %s6, 16, %s113, [#allocation14]
    $region29: #{tpu_custom_call.1} parent=1 // pred_fallthru
      _
    // Predicated region
    $region30: #{tpu_custom_call.1} parent=1 // pred_check
      _
    $region31: #{tpu_custom_call.1} parent=1 // pred_check_branch
      %117 = sbr.rel (0) target = $region33
    $region32: #{tpu_custom_call.1} parent=1 // pred_region
      _
    $region33: #{tpu_custom_call.1} parent=1 // pred_fallthru
      _
    // Predicated region
    $region34: #{tpu_custom_call.1} parent=1 // pred_check
      _
    $region35: #{tpu_custom_call.1} parent=1 // pred_check_branch
      %119 = sbr.rel (0) target = $region37
    $region36: #{tpu_custom_call.1} parent=1 // pred_region
      %s121 = ssub.s32 256, 256
      %122 = vsyncadd [#allocation17], %s121
      %s123 = sshll.u32 [#allocation16], 4
      %s124 = int_to_ptr.vmem [resolvable:$true] %s123
      %129 = dma.hbm_to_vmem [thread:$0]  %s8, 256, %s124, [#allocation17], 64, 64, 4
    $region37: #{tpu_custom_call.1} parent=1 // pred_fallthru
      _
    // Predicated region
    $region38: #{tpu_custom_call.1} parent=1 // pred_check
      _
    $region39: #{tpu_custom_call.1} parent=1 // pred_check_branch
      %131 = sbr.rel (0) target = $region41
    $region40: #{tpu_custom_call.1} parent=1 // pred_region
      %s133 = ssub.s32 256, 256
      %134 = vsyncadd [#allocation17], %s133
      %s135 = sshll.u32 [#allocation18], 4
      %s136 = int_to_ptr.vmem [resolvable:$true] %s135
      %141 = dma.hbm_to_vmem [thread:$0]  %s9, 256, %s136, [#allocation17], 64, 64, 4
    $region41: #{tpu_custom_call.1} parent=1 // pred_fallthru
      _
    // Predicated region
    $region42: #{tpu_custom_call.1} parent=1 // pred_check
      _
    $region43: #{tpu_custom_call.1} parent=1 // pred_check_branch
      %143 = sbr.rel (0) target = $region45
    $region44: #{tpu_custom_call.1} parent=1 // pred_region
      %s145 = ssub.s32 256, 256
      %146 = vsyncadd [#allocation20], %s145
      %s147 = sshll.u32 [#allocation19], 4
      %s148 = int_to_ptr.vmem [resolvable:$true] %s147
      %153 = dma.hbm_to_vmem [thread:$0]  %s10, 256, %s148, [#allocation20], 64, 64, 4
    $region45: #{tpu_custom_call.1} parent=1 // pred_fallthru
      _
    // Predicated region
    $region46: #{tpu_custom_call.1} parent=1 // pred_check
      _
    $region47: #{tpu_custom_call.1} parent=1 // pred_check_branch
      %155 = sbr.rel (0) target = $region49
    $region48: #{tpu_custom_call.1} parent=1 // pred_region
      %s157 = ssub.s32 16, 16
      %158 = vsyncadd [#allocation20], %s157
      %s160 = sshll.u32 [#allocation21], 4
      %s161 = int_to_ptr.vmem [resolvable:$true] %s160
      %163 = dma.hbm_to_vmem [thread:$0]  %s11, 16, %s161, [#allocation20]
    $region49: #{tpu_custom_call.1} parent=1 // pred_fallthru
      _
    // Predicated region
    $region50: #{tpu_custom_call.1} parent=1 // pred_check
      _
    $region51: #{tpu_custom_call.1} parent=1 // pred_check_branch
      %165 = sbr.rel (0) target = $region53
    $region52: #{tpu_custom_call.1} parent=1 // pred_region
      %s167 = ssub.s32 256, 256
      %168 = vsyncadd [#allocation23], %s167
      %s169 = sshll.u32 [#allocation22], 4
      %s170 = int_to_ptr.vmem [resolvable:$true] %s169
      %175 = dma.hbm_to_vmem [thread:$0]  %s12, 256, %s170, [#allocation23], 64, 64, 4
    $region53: #{tpu_custom_call.1} parent=1 // pred_fallthru
      _
    // Predicated region
    $region54: #{tpu_custom_call.1} parent=1 // pred_check
      _
    $region55: #{tpu_custom_call.1} parent=1 // pred_check_branch
      %177 = sbr.rel (0) target = $region57
    $region56: #{tpu_custom_call.1} parent=1 // pred_region
      %s179 = ssub.s32 16, 16
      %180 = vsyncadd [#allocation23], %s179
      %s182 = sshll.u32 [#allocation24], 4
      %s183 = int_to_ptr.vmem [resolvable:$true] %s182
      %185 = dma.hbm_to_vmem [thread:$0]  %s13, 16, %s183, [#allocation23]
    $region57: #{tpu_custom_call.1} parent=1 // pred_fallthru
      _
    // Predicated region
    $region58: #{tpu_custom_call.1} parent=1 // pred_check
      _
    $region59: #{tpu_custom_call.1} parent=1 // pred_check_branch
      %187 = sbr.rel (0) target = $region61
    $region60: #{tpu_custom_call.1} parent=1 // pred_region
      %s189 = ssub.s32 256, 256
      %190 = vsyncadd [#allocation26], %s189
      %s191 = sshll.u32 [#allocation25], 4
      %s192 = int_to_ptr.vmem [resolvable:$true] %s191
      %197 = dma.hbm_to_vmem [thread:$0]  %s14, 256, %s192, [#allocation26], 64, 64, 4
    $region61: #{tpu_custom_call.1} parent=1 // pred_fallthru
      _
    // Predicated region
    $region62: #{tpu_custom_call.1} parent=1 // pred_check
      _
    $region63: #{tpu_custom_call.1} parent=1 // pred_check_branch
      %199 = sbr.rel (0) target = $region65
    $region64: #{tpu_custom_call.1} parent=1 // pred_region
      %s201 = ssub.s32 16, 16
      %202 = vsyncadd [#allocation26], %s201
      %s204 = sshll.u32 [#allocation27], 4
      %s205 = int_to_ptr.vmem [resolvable:$true] %s204
      %207 = dma.hbm_to_vmem [thread:$0]  %s15, 16, %s205, [#allocation26]
    $region65: #{tpu_custom_call.1} parent=1 // pred_fallthru
      _
    // Predicated region
    $region66: #{tpu_custom_call.1} parent=1 // pred_check
      _
    $region67: #{tpu_custom_call.1} parent=1 // pred_check_branch
      %209 = sbr.rel (0) target = $region69
    $region68: #{tpu_custom_call.1} parent=1 // pred_region
      %s211 = ssub.s32 256, 256
      %212 = vsyncadd [#allocation29], %s211
      %s213 = sshll.u32 [#allocation28], 4
      %s214 = int_to_ptr.vmem [resolvable:$true] %s213
      %219 = dma.hbm_to_vmem [thread:$0]  %s16, 256, %s214, [#allocation29], 64, 64, 4
    $region69: #{tpu_custom_call.1} parent=1 // pred_fallthru
      _
    // Predicated region
    $region70: #{tpu_custom_call.1} parent=1 // pred_check
      _
    $region71: #{tpu_custom_call.1} parent=1 // pred_check_branch
      %221 = sbr.rel (0) target = $region73
    $region72: #{tpu_custom_call.1} parent=1 // pred_region
      %s223 = ssub.s32 16, 16
      %224 = vsyncadd [#allocation29], %s223
      %s226 = sshll.u32 [#allocation30], 4
      %s227 = int_to_ptr.vmem [resolvable:$true] %s226
      %229 = dma.hbm_to_vmem [thread:$0]  %s17, 16, %s227, [#allocation29]
    $region73: #{tpu_custom_call.1} parent=1 // pred_fallthru
      _
    // Predicated region
    $region74: #{tpu_custom_call.1} parent=1 // pred_check
      _
    $region75: #{tpu_custom_call.1} parent=1 // pred_check_branch
      %231 = sbr.rel (0) target = $region77
    $region76: #{tpu_custom_call.1} parent=1 // pred_region
      %232 = dma.done [#allocation5], 256
    $region77: #{tpu_custom_call.1} parent=1 // pred_fallthru
      _
    // Predicated region
    $region78: #{tpu_custom_call.1} parent=1 // pred_check
      _
    $region79: #{tpu_custom_call.1} parent=1 // pred_check_branch
      %234 = sbr.rel (0) target = $region81
    $region80: #{tpu_custom_call.1} parent=1 // pred_region
      %235 = dma.done [#allocation8], 128
    $region81: #{tpu_custom_call.1} parent=1 // pred_fallthru
      _
    // Predicated region
    $region82: #{tpu_custom_call.1} parent=1 // pred_check
      _
    $region83: #{tpu_custom_call.1} parent=1 // pred_check_branch
      %237 = sbr.rel (0) target = $region85
    $region84: #{tpu_custom_call.1} parent=1 // pred_region
      %238 = dma.done [#allocation8], 256
    $region85: #{tpu_custom_call.1} parent=1 // pred_fallthru
      _
    // Predicated region
    $region86: #{tpu_custom_call.1} parent=1 // pred_check
      _
    $region87: #{tpu_custom_call.1} parent=1 // pred_check_branch
      %240 = sbr.rel (0) target = $region89
    $region88: #{tpu_custom_call.1} parent=1 // pred_region
      %241 = dma.done [#allocation11], 16
    $region89: #{tpu_custom_call.1} parent=1 // pred_fallthru
      _
    // Predicated region
    $region90: #{tpu_custom_call.1} parent=1 // pred_check
      _
    $region91: #{tpu_custom_call.1} parent=1 // pred_check_branch
      %243 = sbr.rel (0) target = $region93
    $region92: #{tpu_custom_call.1} parent=1 // pred_region
      %244 = dma.done [#allocation11], 256
    $region93: #{tpu_custom_call.1} parent=1 // pred_fallthru
      _
    // Predicated region
    $region94: #{tpu_custom_call.1} parent=1 // pred_check
      _
    $region95: #{tpu_custom_call.1} parent=1 // pred_check_branch
      %246 = sbr.rel (0) target = $region97
    $region96: #{tpu_custom_call.1} parent=1 // pred_region
      %247 = dma.done [#allocation14], 16
    $region97: #{tpu_custom_call.1} parent=1 // pred_fallthru
      _
    // Predicated region
    $region98: #{tpu_custom_call.1} parent=1 // pred_check
      _
    $region99: #{tpu_custom_call.1} parent=1 // pred_check_branch
      %249 = sbr.rel (0) target = $region101
    $region100: #{tpu_custom_call.1} parent=1 // pred_region
      %250 = dma.done [#allocation14], 16
    $region101: #{tpu_custom_call.1} parent=1 // pred_fallthru
      _
    // Predicated region
    $region102: #{tpu_custom_call.1} parent=1 // pred_check
      _
    $region103: #{tpu_custom_call.1} parent=1 // pred_check_branch
      %252 = sbr.rel (0) target = $region105
    $region104: #{tpu_custom_call.1} parent=1 // pred_region
      %253 = dma.done [#allocation17], 256
    $region105: #{tpu_custom_call.1} parent=1 // pred_fallthru
      _
    // Predicated region
    $region106: #{tpu_custom_call.1} parent=1 // pred_check
      _
    $region107: #{tpu_custom_call.1} parent=1 // pred_check_branch
      %255 = sbr.rel (0) target = $region109
    $region108: #{tpu_custom_call.1} parent=1 // pred_region
      %256 = dma.done [#allocation17], 256
    $region109: #{tpu_custom_call.1} parent=1 // pred_fallthru
      _
    // Predicated region
    $region110: #{tpu_custom_call.1} parent=1 // pred_check
      _
    $region111: #{tpu_custom_call.1} parent=1 // pred_check_branch
      %258 = sbr.rel (0) target = $region113
    $region112: #{tpu_custom_call.1} parent=1 // pred_region
      %259 = dma.done [#allocation20], 256
    $region113: #{tpu_custom_call.1} parent=1 // pred_fallthru
      _
    // Predicated region
    $region114: #{tpu_custom_call.1} parent=1 // pred_check
      _
    $region115: #{tpu_custom_call.1} parent=1 // pred_check_branch
      %261 = sbr.rel (0) target = $region117
    $region116: #{tpu_custom_call.1} parent=1 // pred_region
      %262 = dma.done [#allocation20], 16
    $region117: #{tpu_custom_call.1} parent=1 // pred_fallthru
      _
    // Predicated region
    $region118: #{tpu_custom_call.1} parent=1 // pred_check
      _
    $region119: #{tpu_custom_call.1} parent=1 // pred_check_branch
      %264 = sbr.rel (0) target = $region121
    $region120: #{tpu_custom_call.1} parent=1 // pred_region
      %265 = dma.done [#allocation23], 256
    $region121: #{tpu_custom_call.1} parent=1 // pred_fallthru
      _
    // Predicated region
    $region122: #{tpu_custom_call.1} parent=1 // pred_check
      _
    $region123: #{tpu_custom_call.1} parent=1 // pred_check_branch
      %267 = sbr.rel (0) target = $region125
    $region124: #{tpu_custom_call.1} parent=1 // pred_region
      %268 = dma.done [#allocation23], 16
    $region125: #{tpu_custom_call.1} parent=1 // pred_fallthru
      _
    // Predicated region
    $region126: #{tpu_custom_call.1} parent=1 // pred_check
      _
    $region127: #{tpu_custom_call.1} parent=1 // pred_check_branch
      %270 = sbr.rel (0) target = $region129
    $region128: #{tpu_custom_call.1} parent=1 // pred_region
      %271 = dma.done [#allocation26], 256
    $region129: #{tpu_custom_call.1} parent=1 // pred_fallthru
      _
    // Predicated region
    $region130: #{tpu_custom_call.1} parent=1 // pred_check
      _
    $region131: #{tpu_custom_call.1} parent=1 // pred_check_branch
      %273 = sbr.rel (0) target = $region133
    $region132: #{tpu_custom_call.1} parent=1 // pred_region
      %274 = dma.done [#allocation26], 16
    $region133: #{tpu_custom_call.1} parent=1 // pred_fallthru
      _
    // Predicated region
    $region134: #{tpu_custom_call.1} parent=1 // pred_check
      _
    $region135: #{tpu_custom_call.1} parent=1 // pred_check_branch
      %276 = sbr.rel (0) target = $region137
    $region136: #{tpu_custom_call.1} parent=1 // pred_region
      %277 = dma.done [#allocation29], 256
    $region137: #{tpu_custom_call.1} parent=1 // pred_fallthru
      _
    // Predicated region
    $region138: #{tpu_custom_call.1} parent=1 // pred_check
      _
    $region139: #{tpu_custom_call.1} parent=1 // pred_check_branch
      %279 = sbr.rel (0) target = $region141
    $region140: #{tpu_custom_call.1} parent=1 // pred_region
      %280 = dma.done [#allocation29], 16
    $region141: #{tpu_custom_call.1} parent=1 // pred_fallthru
      _
    %v282 = vld [vmem:[#allocation4] sm:$0xf]
    %v283 = vld [vmem:[#allocation4 + $0x4] sm:$0xf]
    %v284 = vld [vmem:[#allocation4 + $0x8] sm:$0xf]
    %v285 = vld [vmem:[#allocation4 + $0xc] sm:$0xf]
    %v286 = vunpack.c.l.bf16 %v282
    %v287 = vunpack.c.l.bf16 %v283
    %v288 = vunpack.c.l.bf16 %v284
    %v289 = vunpack.c.l.bf16 %v285
    %vm290 = vcmask 261120
    %v291 = vsel %vm290, %v286, 0.0
    %v292 = vsel %vm290, %v287, 0.0
    %v293 = vadd.f32 %v291, %v292
    %v294 = vrot.slane %v293, 4
    %v295 = vadd.f32 %v293, %v294
    %v296 = vrot.slane %v295, 2
    %v297 = vadd.f32 %v295, %v296
    %v298 = vrot.slane %v297, 1
    %v299 = vadd.f32 %v297, %v298
    %v300 = vsel %vm290, %v288, 0.0
    %v301 = vsel %vm290, %v289, 0.0
    %v302 = vadd.f32 %v300, %v301
    %v303 = vrot.slane %v302, 4
    %v304 = vadd.f32 %v302, %v303
    %v305 = vrot.slane %v304, 2
    %v306 = vadd.f32 %v304, %v305
    %v307 = vrot.slane %v306, 1
    %v308 = vadd.f32 %v306, %v307
    %v309 = vrcp.pop 16.0
    %v310 = vmul.f32 %v299, %v309
    %v311 = vmul.f32 %v308, %v309
    %v312 = vpack.c.bf16 %v310, %v310
    %v313 = vpack.c.bf16 %v311, %v311
    %v314 = vld [vmem:[#allocation25] sm:$0xf]
    %v315 = vld [vmem:[#allocation25 + $0x4] sm:$0xf]
    %v316 = vld [vmem:[#allocation25 + $0x8] sm:$0xf]
    %v317 = vld [vmem:[#allocation25 + $0xc] sm:$0xf]
    %v318 = vld [vmem:[#allocation27] sm:$0x1]
    %v320 = vlaneseq
    %v321 = vshrl.u32 %v320, 7
    %v322 = vsub.s32 0, %v321
    %v323 = vrot.slane %v318, %v322
    %v327 = vunpack.c.l.b16 %v312
    %v328 = vunpack.c.l.b16 %v313
    %vm329 = vcmask 1041409
    %v330 = vsel %vm329, %v328, %v327
    %v331 = vpack.c.b16 %v330, %v330
    %v336 = vunpack.c.l.b16 %v314
    %v337 = vunpack.c.l.b16 %v315
    %v338 = vunpack.c.l.b16 %v316
    %v339 = vunpack.c.l.b16 %v317
    %v340 = vpack.c.b16 %v337, %v336
    %v341 = vpack.c.b16 %v339, %v338
    %v345 = vsel %vm290, %v331, 0
    %347 = vmatprep.subr.bf16.mxu0 0
    %348 = vmatpush1.bf16.msra.mxu0 %v340
    %349 = vmatprep.subr.bf16.mxu0 0
    %350 = vmatpush1.bf16.msra.mxu0 %v341
    %351 = vmatprep.subr.bf16.mxu0 0
    %352 = vmatpush1.bf16.msra.mxu0 0
    %353 = vmatprep.subr.bf16.mxu0 0
    %354 = vmatpush1.bf16.msra.mxu0 0
    %355 = vmatprep.subr.bf16.mxu0 0
    %356 = vmatpush1.bf16.msra.mxu0 0
    %357 = vmatprep.subr.bf16.mxu0 0
    %358 = vmatpush1.bf16.msra.mxu0 0
    %359 = vmatprep.subr.bf16.mxu0 0
    %360 = vmatpush1.bf16.msra.mxu0 0
    %361 = vmatprep.subr.bf16.mxu0 0
    %362 = vmatpush1.bf16.msra.mxu0 0
    %363 = vmatprep.subr.bf16.mxu0 0
    %364 = vmatpush1.bf16.msra.mxu0 0
    %365 = vmatprep.subr.bf16.mxu0 0
    %366 = vmatpush1.bf16.msra.mxu0 0
    %367 = vmatprep.subr.bf16.mxu0 0
    %368 = vmatpush1.bf16.msra.mxu0 0
    %369 = vmatprep.subr.bf16.mxu0 0
    %370 = vmatpush1.bf16.msra.mxu0 0
    %371 = vmatprep.subr.bf16.mxu0 0
    %372 = vmatpush1.bf16.msra.mxu0 0
    %373 = vmatprep.subr.bf16.mxu0 0
    %374 = vmatpush1.bf16.msra.mxu0 0
    %375 = vmatprep.subr.bf16.mxu0 0
    %376 = vmatpush1.bf16.msra.mxu0 0
    %377 = vmatprep.subr.bf16.mxu0 0
    %378 = vmatpush1.bf16.msra.mxu0 0
    %379 = vmatprep.mubr.bf16.mxu0 0
    %380 = vmatmul.mubr.bf16.gmra.mrb[0].mxu0 %v345
    %v381 = vpop.f32.mrb[0].mxu0
    %v382 = vadd.f32 %v323, %v381
    %v383 = vpop.f32.mrb[0].mxu0
    %v384 = vpop.f32.mrb[0].mxu0
    %v385 = vpop.f32.mrb[0].mxu0
    %386 = vdwg.mxu0
    %v387 = vld [vmem:[#allocation28] sm:$0xf]
    %v388 = vld [vmem:[#allocation28 + $0x4] sm:$0xf]
    %v389 = vld [vmem:[#allocation28 + $0x8] sm:$0xf]
    %v390 = vld [vmem:[#allocation28 + $0xc] sm:$0xf]
    %v391 = vld [vmem:[#allocation30] sm:$0x1]
    %v393 = vlaneseq
    %v394 = vshrl.u32 %v393, 7
    %v395 = vsub.s32 0, %v394
    %v396 = vrot.slane %v391, %v395
    %v402 = vunpack.c.l.b16 %v387
    %v403 = vunpack.c.l.b16 %v388
    %v404 = vunpack.c.l.b16 %v389
    %v405 = vunpack.c.l.b16 %v390
    %v406 = vpack.c.b16 %v403, %v402
    %v407 = vpack.c.b16 %v405, %v404
    %410 = vmatprep.subr.bf16.mxu0 0
    %411 = vmatpush1.bf16.msra.mxu0 %v406
    %412 = vmatprep.subr.bf16.mxu0 0
    %413 = vmatpush1.bf16.msra.mxu0 %v407
    %414 = vmatprep.subr.bf16.mxu0 0
    %415 = vmatpush1.bf16.msra.mxu0 0
    %416 = vmatprep.subr.bf16.mxu0 0
    %417 = vmatpush1.bf16.msra.mxu0 0
    %418 = vmatprep.subr.bf16.mxu0 0
    %419 = vmatpush1.bf16.msra.mxu0 0
    %420 = vmatprep.subr.bf16.mxu0 0
    %421 = vmatpush1.bf16.msra.mxu0 0
    %422 = vmatprep.subr.bf16.mxu0 0
    %423 = vmatpush1.bf16.msra.mxu0 0
    %424 = vmatprep.subr.bf16.mxu0 0
    %425 = vmatpush1.bf16.msra.mxu0 0
    %426 = vmatprep.subr.bf16.mxu0 0
    %427 = vmatpush1.bf16.msra.mxu0 0
    %428 = vmatprep.subr.bf16.mxu0 0
    %429 = vmatpush1.bf16.msra.mxu0 0
    %430 = vmatprep.subr.bf16.mxu0 0
    %431 = vmatpush1.bf16.msra.mxu0 0
    %432 = vmatprep.subr.bf16.mxu0 0
    %433 = vmatpush1.bf16.msra.mxu0 0
    %434 = vmatprep.subr.bf16.mxu0 0
    %435 = vmatpush1.bf16.msra.mxu0 0
    %436 = vmatprep.subr.bf16.mxu0 0
    %437 = vmatpush1.bf16.msra.mxu0 0
    %438 = vmatprep.subr.bf16.mxu0 0
    %439 = vmatpush1.bf16.msra.mxu0 0
    %440 = vmatprep.subr.bf16.mxu0 0
    %441 = vmatpush1.bf16.msra.mxu0 0
    %442 = vmatprep.mubr.bf16.mxu0 0
    %443 = vmatmul.mubr.bf16.gmra.mrb[0].mxu0 %v345
    %v444 = vpop.f32.mrb[0].mxu0
    %v445 = vadd.f32 %v396, %v444
    %v446 = vpop.f32.mrb[0].mxu0
    %v447 = vpop.f32.mrb[0].mxu0
    %v448 = vpop.f32.mrb[0].mxu0
    %449 = vdwg.mxu0
    %v450 = vld [vmem:[#allocation9] sm:$0xf]
    %v451 = vld [vmem:[#allocation9 + $0x4] sm:$0xf]
    %v452 = vld [vmem:[#allocation9 + $0x8] sm:$0xf]
    %v453 = vld [vmem:[#allocation9 + $0xc] sm:$0xf]
    %v454 = vld [vmem:[#allocation10] sm:$0x1]
    %v456 = vlaneseq
    %v457 = vshrl.u32 %v456, 7
    %v458 = vsub.s32 0, %v457
    %v459 = vrot.slane %v454, %v458
    %v465 = vunpack.c.l.b16 %v282
    %v466 = vunpack.c.l.b16 %v283
    %v467 = vunpack.c.l.b16 %v284
    %v468 = vunpack.c.l.b16 %v285
    %v469 = vpack.c.b16 %v466, %v465
    %v470 = vpack.c.b16 %v468, %v467
    %v475 = vunpack.c.l.b16 %v450
    %v476 = vunpack.c.l.b16 %v451
    %v477 = vunpack.c.l.b16 %v452
    %v478 = vunpack.c.l.b16 %v453
    %v479 = vpack.c.b16 %v476, %v475
    %v480 = vpack.c.b16 %v478, %v477
    %v484 = vsel %vm290, %v469, 0
    %v487 = vsel %vm290, %v470, 0
    %489 = vmatprep.subr.bf16.mxu0 0
    %490 = vmatpush1.bf16.msra.mxu0 %v479
    %491 = vmatprep.subr.bf16.mxu0 0
    %492 = vmatpush1.bf16.msra.mxu0 %v480
    %493 = vmatprep.subr.bf16.mxu0 0
    %494 = vmatpush1.bf16.msra.mxu0 0
    %495 = vmatprep.subr.bf16.mxu0 0
    %496 = vmatpush1.bf16.msra.mxu0 0
    %497 = vmatprep.subr.bf16.mxu0 0
    %498 = vmatpush1.bf16.msra.mxu0 0
    %499 = vmatprep.subr.bf16.mxu0 0
    %500 = vmatpush1.bf16.msra.mxu0 0
    %501 = vmatprep.subr.bf16.mxu0 0
    %502 = vmatpush1.bf16.msra.mxu0 0
    %503 = vmatprep.subr.bf16.mxu0 0
    %504 = vmatpush1.bf16.msra.mxu0 0
    %505 = vmatprep.subr.bf16.mxu0 0
    %506 = vmatpush1.bf16.msra.mxu0 0
    %507 = vmatprep.subr.bf16.mxu0 0
    %508 = vmatpush1.bf16.msra.mxu0 0
    %509 = vmatprep.subr.bf16.mxu0 0
    %510 = vmatpush1.bf16.msra.mxu0 0
    %511 = vmatprep.subr.bf16.mxu0 0
    %512 = vmatpush1.bf16.msra.mxu0 0
    %513 = vmatprep.subr.bf16.mxu0 0
    %514 = vmatpush1.bf16.msra.mxu0 0
    %515 = vmatprep.subr.bf16.mxu0 0
    %516 = vmatpush1.bf16.msra.mxu0 0
    %517 = vmatprep.subr.bf16.mxu0 0
    %518 = vmatpush1.bf16.msra.mxu0 0
    %519 = vmatprep.subr.bf16.mxu0 0
    %520 = vmatpush1.bf16.msra.mxu0 0
    %521 = vmatprep.mubr.bf16.mxu0 0
    %522 = vmatmul.mubr.bf16.gmra.mrb[0].mxu0 %v484
    %v523 = vpop.f32.mrb[0].mxu0
    %v524 = vadd.f32 %v459, %v523
    %v525 = vpop.f32.mrb[0].mxu0
    %v526 = vpop.f32.mrb[0].mxu0
    %v527 = vadd.f32 %v459, %v526
    %v528 = vpop.f32.mrb[0].mxu0
    %529 = vmatprep.mubr.bf16.mxu0 0
    %530 = vmatmul.mubr.bf16.gmra.mrb[0].mxu0 %v487
    %v531 = vpop.f32.mrb[0].mxu0
    %v532 = vadd.f32 %v459, %v531
    %v533 = vpop.f32.mrb[0].mxu0
    %v534 = vpop.f32.mrb[0].mxu0
    %v535 = vadd.f32 %v459, %v534
    %v536 = vpop.f32.mrb[0].mxu0
    %537 = vdwg.mxu0
    %v538 = vld [vmem:[#allocation15] sm:$0x1]
    %v539 = vld [vmem:[#allocation3] sm:$0x1]
    %v540 = vld [vmem:[#allocation7] sm:$0xf]
    %v541 = vld [vmem:[#allocation7 + $0x4] sm:$0xf]
    %v542 = vld [vmem:[#allocation16] sm:$0xf]
    %v543 = vld [vmem:[#allocation16 + $0x4] sm:$0xf]
    %v544 = vld [vmem:[#allocation16 + $0x8] sm:$0xf]
    %v545 = vld [vmem:[#allocation16 + $0xc] sm:$0xf]
    %v546 = vld [vmem:[#allocation21] sm:$0x1]
    %v548 = vlaneseq
    %v549 = vshrl.u32 %v548, 7
    %v550 = vsub.s32 0, %v549
    %v551 = vrot.slane %v546, %v550
    %v555 = vunpack.c.l.b16 %v540
    %v556 = vunpack.c.l.b16 %v541
    %v557 = vpack.c.b16 %v556, %v555
    %v562 = vunpack.c.l.b16 %v542
    %v563 = vunpack.c.l.b16 %v543
    %v564 = vunpack.c.l.b16 %v544
    %v565 = vunpack.c.l.b16 %v545
    %v566 = vpack.c.b16 %v563, %v562
    %v567 = vpack.c.b16 %v565, %v564
    %v571 = vsel %vm290, %v557, 0
    %573 = vmatprep.subr.bf16.mxu0 0
    %574 = vmatpush1.bf16.msra.mxu0 %v566
    %575 = vmatprep.subr.bf16.mxu0 0
    %576 = vmatpush1.bf16.msra.mxu0 %v567
    %577 = vmatprep.subr.bf16.mxu0 0
    %578 = vmatpush1.bf16.msra.mxu0 0
    %579 = vmatprep.subr.bf16.mxu0 0
    %580 = vmatpush1.bf16.msra.mxu0 0
    %581 = vmatprep.subr.bf16.mxu0 0
    %582 = vmatpush1.bf16.msra.mxu0 0
    %583 = vmatprep.subr.bf16.mxu0 0
    %584 = vmatpush1.bf16.msra.mxu0 0
    %585 = vmatprep.subr.bf16.mxu0 0
    %586 = vmatpush1.bf16.msra.mxu0 0
    %587 = vmatprep.subr.bf16.mxu0 0
    %588 = vmatpush1.bf16.msra.mxu0 0
    %589 = vmatprep.subr.bf16.mxu0 0
    %590 = vmatpush1.bf16.msra.mxu0 0
    %591 = vmatprep.subr.bf16.mxu0 0
    %592 = vmatpush1.bf16.msra.mxu0 0
    %593 = vmatprep.subr.bf16.mxu0 0
    %594 = vmatpush1.bf16.msra.mxu0 0
    %595 = vmatprep.subr.bf16.mxu0 0
    %596 = vmatpush1.bf16.msra.mxu0 0
    %597 = vmatprep.subr.bf16.mxu0 0
    %598 = vmatpush1.bf16.msra.mxu0 0
    %599 = vmatprep.subr.bf16.mxu0 0
    %600 = vmatpush1.bf16.msra.mxu0 0
    %601 = vmatprep.subr.bf16.mxu0 0
    %602 = vmatpush1.bf16.msra.mxu0 0
    %603 = vmatprep.subr.bf16.mxu0 0
    %604 = vmatpush1.bf16.msra.mxu0 0
    %605 = vmatprep.mubr.bf16.mxu0 0
    %606 = vmatmul.mubr.bf16.gmra.mrb[0].mxu0 %v571
    %v607 = vpop.f32.mrb[0].mxu0
    %v608 = vadd.f32 %v551, %v607
    %v609 = vpop.f32.mrb[0].mxu0
    %v610 = vpop.f32.mrb[0].mxu0
    %v611 = vadd.f32 %v551, %v610
    %v612 = vpop.f32.mrb[0].mxu0
    %613 = vdwg.mxu0
    %v614 = vpack.c.bf16 %v382, %v382
    %v615 = vld [vmem:[#allocation19] sm:$0xf]
    %v616 = vld [vmem:[#allocation19 + $0x4] sm:$0xf]
    %v617 = vld [vmem:[#allocation19 + $0x8] sm:$0xf]
    %v618 = vld [vmem:[#allocation19 + $0xc] sm:$0xf]
    %v623 = vunpack.c.l.b16 %v615
    %v624 = vunpack.c.l.b16 %v616
    %v625 = vunpack.c.l.b16 %v617
    %v626 = vunpack.c.l.b16 %v618
    %v627 = vpack.c.b16 %v624, %v623
    %v628 = vpack.c.b16 %v626, %v625
    %v632 = vsel %vm290, %v614, 0
    %634 = vmatprep.subr.bf16.mxu0 0
    %635 = vmatpush1.bf16.msra.mxu0 %v627
    %636 = vmatprep.subr.bf16.mxu0 0
    %637 = vmatpush1.bf16.msra.mxu0 %v628
    %638 = vmatprep.subr.bf16.mxu0 0
    %639 = vmatpush1.bf16.msra.mxu0 0
    %640 = vmatprep.subr.bf16.mxu0 0
    %641 = vmatpush1.bf16.msra.mxu0 0
    %642 = vmatprep.subr.bf16.mxu0 0
    %643 = vmatpush1.bf16.msra.mxu0 0
    %644 = vmatprep.subr.bf16.mxu0 0
    %645 = vmatpush1.bf16.msra.mxu0 0
    %646 = vmatprep.subr.bf16.mxu0 0
    %647 = vmatpush1.bf16.msra.mxu0 0
    %648 = vmatprep.subr.bf16.mxu0 0
    %649 = vmatpush1.bf16.msra.mxu0 0
    %650 = vmatprep.subr.bf16.mxu0 0
    %651 = vmatpush1.bf16.msra.mxu0 0
    %652 = vmatprep.subr.bf16.mxu0 0
    %653 = vmatpush1.bf16.msra.mxu0 0
    %654 = vmatprep.subr.bf16.mxu0 0
    %655 = vmatpush1.bf16.msra.mxu0 0
    %656 = vmatprep.subr.bf16.mxu0 0
    %657 = vmatpush1.bf16.msra.mxu0 0
    %658 = vmatprep.subr.bf16.mxu0 0
    %659 = vmatpush1.bf16.msra.mxu0 0
    %660 = vmatprep.subr.bf16.mxu0 0
    %661 = vmatpush1.bf16.msra.mxu0 0
    %662 = vmatprep.subr.bf16.mxu0 0
    %663 = vmatpush1.bf16.msra.mxu0 0
    %664 = vmatprep.subr.bf16.mxu0 0
    %665 = vmatpush1.bf16.msra.mxu0 0
    %666 = vmatprep.mubr.bf16.mxu0 0
    %667 = vmatmul.mubr.bf16.gmra.mrb[0].mxu0 %v632
    %v668 = vpop.f32.mrb[0].mxu0
    %v669 = vadd.f32 0.0, %v668
    %v670 = vpop.f32.mrb[0].mxu0
    %v671 = vpop.f32.mrb[0].mxu0
    %v672 = vpop.f32.mrb[0].mxu0
    %673 = vdwg.mxu0
    %v674 = vld [vmem:[#allocation12] sm:$0xf]
    %v675 = vld [vmem:[#allocation12 + $0x4] sm:$0xf]
    %v676 = vld [vmem:[#allocation12 + $0x8] sm:$0xf]
    %v677 = vld [vmem:[#allocation12 + $0xc] sm:$0xf]
    %v678 = vld [vmem:[#allocation13] sm:$0x1]
    %v680 = vlaneseq
    %v681 = vshrl.u32 %v680, 7
    %v682 = vsub.s32 0, %v681
    %v683 = vrot.slane %v678, %v682
    %v689 = vunpack.c.l.b16 %v674
    %v690 = vunpack.c.l.b16 %v675
    %v691 = vunpack.c.l.b16 %v676
    %v692 = vunpack.c.l.b16 %v677
    %v693 = vpack.c.b16 %v690, %v689
    %v694 = vpack.c.b16 %v692, %v691
    %697 = vmatprep.subr.bf16.mxu0 0
    %698 = vmatpush1.bf16.msra.mxu0 %v693
    %699 = vmatprep.subr.bf16.mxu0 0
    %700 = vmatpush1.bf16.msra.mxu0 %v694
    %701 = vmatprep.subr.bf16.mxu0 0
    %702 = vmatpush1.bf16.msra.mxu0 0
    %703 = vmatprep.subr.bf16.mxu0 0
    %704 = vmatpush1.bf16.msra.mxu0 0
    %705 = vmatprep.subr.bf16.mxu0 0
    %706 = vmatpush1.bf16.msra.mxu0 0
    %707 = vmatprep.subr.bf16.mxu0 0
    %708 = vmatpush1.bf16.msra.mxu0 0
    %709 = vmatprep.subr.bf16.mxu0 0
    %710 = vmatpush1.bf16.msra.mxu0 0
    %711 = vmatprep.subr.bf16.mxu0 0
    %712 = vmatpush1.bf16.msra.mxu0 0
    %713 = vmatprep.subr.bf16.mxu0 0
    %714 = vmatpush1.bf16.msra.mxu0 0
    %715 = vmatprep.subr.bf16.mxu0 0
    %716 = vmatpush1.bf16.msra.mxu0 0
    %717 = vmatprep.subr.bf16.mxu0 0
    %718 = vmatpush1.bf16.msra.mxu0 0
    %719 = vmatprep.subr.bf16.mxu0 0
    %720 = vmatpush1.bf16.msra.mxu0 0
    %721 = vmatprep.subr.bf16.mxu0 0
    %722 = vmatpush1.bf16.msra.mxu0 0
    %723 = vmatprep.subr.bf16.mxu0 0
    %724 = vmatpush1.bf16.msra.mxu0 0
    %725 = vmatprep.subr.bf16.mxu0 0
    %726 = vmatpush1.bf16.msra.mxu0 0
    %727 = vmatprep.subr.bf16.mxu0 0
    %728 = vmatpush1.bf16.msra.mxu0 0
    %729 = vmatprep.mubr.bf16.mxu0 0
    %730 = vmatmul.mubr.bf16.gmra.mrb[0].mxu0 %v632
    %v731 = vpop.f32.mrb[0].mxu0
    %v732 = vadd.f32 %v683, %v731
    %v733 = vpop.f32.mrb[0].mxu0
    %v734 = vpop.f32.mrb[0].mxu0
    %v735 = vpop.f32.mrb[0].mxu0
    %736 = vdwg.mxu0
    %v739 = vunpack.c.l.s4 1966171168
    %v740 = vunpack.c.0.s8 %v739
    %v741 = vlaneseq
    %v742 = vshrl.u32 %v741, 7
    %v743 = vsub.s32 %v740, %v742
    %v744 = vrot.slane %v732, %v743
    %v745 = vcombine.high %v744, %v744
    %v747 = vunpack.c.l.s4 1966171168
    %v748 = vunpack.c.0.s8 %v747
    %v749 = vlaneseq
    %v750 = vshrl.u32 %v749, 7
    %v751 = vsub.s32 %v748, %v750
    %v752 = vrot.slane %v744, %v751
    %v754 = vunpack.c.l.s4 1966171168
    %v755 = vunpack.c.0.s8 %v754
    %v756 = vlaneseq
    %v757 = vshrl.u32 %v756, 7
    %v758 = vsub.s32 %v755, %v757
    %v759 = vrot.slane %v745, %v758
    %v760 = vlaneseq
    %v761 = vshrl.u32 %v760, 7
    %v762 = vsub.s32 0, %v761
    %v763 = vrot.slane %v752, %v762
    %v764 = vlaneseq
    %v765 = vshrl.u32 %v764, 7
    %v766 = vsub.s32 0, %v765
    %v767 = vrot.slane %v759, %v766
    %v770 = vadd.f32 %v524, %v763
    %v771 = vadd.f32 %v527, %v763
    %v772 = vadd.f32 %v532, %v767
    %v773 = vadd.f32 %v535, %v767
    %v774 = vtanh.pop %v770
    %v775 = vtanh.pop %v771
    %v776 = vtanh.pop %v772
    %v777 = vtanh.pop %v773
    %v779 = vlaneseq
    %v780 = vshrl.u32 %v779, 7
    %v781 = vsub.s32 0, %v780
    %v782 = vrot.slane %v538, %v781
    %v784 = vmul.f32 %v774, %v782
    %v785 = vmul.f32 %v775, %v782
    %v786 = vmul.f32 %v776, %v782
    %v787 = vmul.f32 %v777, %v782
    %v788 = vsel %vm290, %v784, 0.0
    %789 = vadd.xlane.f32.xlu0 %v788
    %v790 = vpop.xlane.xlu0 %789
    %v791 = vsel %vm290, %v785, 0.0
    %792 = vadd.xlane.f32.xlu0 %v791
    %v793 = vpop.xlane.xlu0 %792
    %v794 = vsel %vm290, %v786, 0.0
    %795 = vadd.xlane.f32.xlu0 %v794
    %v796 = vpop.xlane.xlu0 %795
    %v797 = vsel %vm290, %v787, 0.0
    %798 = vadd.xlane.f32.xlu0 %v797
    %v799 = vpop.xlane.xlu0 %798
    %v801 = vlaneseq
    %v802 = vshrl.u32 %v801, 7
    %v803 = vsub.s32 0, %v802
    %v804 = vrot.slane %v539, %v803
    %805 = vset.pattern.permute.xlu0 0
    %806 = vperm.xlu0 %805, %v804
    %v807 = vpop.permute.xlu0 %806
    %v809 = vadd.f32 %v790, %v807
    %v810 = vadd.f32 %v793, %v807
    %v811 = vadd.f32 %v796, %v807
    %v812 = vadd.f32 %v799, %v807
    %v817 = vlaneseq
    %v818 = vand.u32 %v817, 127
    %v819 = vlaneseq
    %v820 = vshrl.u32 %v819, 7
    %v821 = vsub.s32 %v818, %v820
    %v822 = vrot.slane %v809, %v821
    %v823 = vadd.s32 %v818, 4294967288
    %v824 = vlaneseq
    %v825 = vshrl.u32 %v824, 7
    %v826 = vsub.s32 %v823, %v825
    %v827 = vrot.slane %v810, %v826
    %vm828 = vcmask 130112
    %v829 = vsel %vm828, %v827, %v822
    %v830 = vlaneseq
    %v831 = vshrl.u32 %v830, 7
    %v832 = vsub.s32 %v818, %v831
    %v833 = vrot.slane %v811, %v832
    %v834 = vlaneseq
    %v835 = vshrl.u32 %v834, 7
    %v836 = vsub.s32 %v823, %v835
    %v837 = vrot.slane %v812, %v836
    %v838 = vsel %vm828, %v837, %v833
    %v839 = vsel %vm329, %v838, %v829
    %vm841 = vcmask 123904
    %v842 = vsel %vm841, %v839, -inf
    %843 = vmax.xlane.f32.xlu0 %v842
    %v844 = vpop.xlane.xlu0 %843
    %v846 = vlaneseq
    %v847 = vshrl.u32 %v846, 7
    %v848 = vsub.s32 0, %v847
    %v849 = vrot.slane %v844, %v848
    %v850 = vlaneseq
    %v851 = vshrl.u32 %v850, 7
    %v852 = vsub.s32 1, %v851
    %v853 = vrot.slane %v844, %v852
    %v856 = vsub.f32 %v809, %v849
    %v857 = vsub.f32 %v810, %v849
    %v858 = vsub.f32 %v811, %v853
    %v859 = vsub.f32 %v812, %v853
    %v860 = vmul.f32 %v856, 1.442695
    %v861 = vpow.pop %v860
    %v862 = vmul.f32 %v857, 1.442695
    %v863 = vpow.pop %v862
    %v864 = vmul.f32 %v858, 1.442695
    %v865 = vpow.pop %v864
    %v866 = vmul.f32 %v859, 1.442695
    %v867 = vpow.pop %v866
    %872 = vset.pattern.permute.xlu0 0
    %873 = vperm.xlu0 %872, %v861
    %v874 = vpop.permute.xlu0 %873
    %875 = vset.pattern.permute.xlu0 0
    %876 = vperm.xlu0 %875, %v863
    %v877 = vpop.permute.xlu0 %876
    %878 = vset.pattern.permute.xlu0 0
    %879 = vperm.xlu0 %878, %v865
    %v880 = vpop.permute.xlu0 %879
    %881 = vset.pattern.permute.xlu0 0
    %882 = vperm.xlu0 %881, %v867
    %v883 = vpop.permute.xlu0 %882
    %v884 = vlaneseq
    %v885 = vshrl.u32 %v884, 7
    %v886 = vsub.s32 %v818, %v885
    %v887 = vrot.slane %v874, %v886
    %v888 = vlaneseq
    %v889 = vshrl.u32 %v888, 7
    %v890 = vsub.s32 %v823, %v889
    %v891 = vrot.slane %v877, %v890
    %v892 = vsel %vm828, %v891, %v887
    %v893 = vlaneseq
    %v894 = vshrl.u32 %v893, 7
    %v895 = vsub.s32 %v818, %v894
    %v896 = vrot.slane %v880, %v895
    %v897 = vlaneseq
    %v898 = vshrl.u32 %v897, 7
    %v899 = vsub.s32 %v823, %v898
    %v900 = vrot.slane %v883, %v899
    %v901 = vsel %vm828, %v900, %v896
    %v902 = vsel %vm329, %v901, %v892
    %v904 = vsel %vm841, %v902, 0.0
    %905 = vadd.xlane.f32.xlu0 %v904
    %v906 = vpop.xlane.xlu0 %905
    %v907 = vrcp.pop %v906
    %v909 = vlaneseq
    %v910 = vshrl.u32 %v909, 7
    %v911 = vsub.s32 0, %v910
    %v912 = vrot.slane %v907, %v911
    %v913 = vlaneseq
    %v914 = vshrl.u32 %v913, 7
    %v915 = vsub.s32 1, %v914
    %v916 = vrot.slane %v907, %v915
    %v919 = vmul.f32 %v861, %v912
    %v920 = vmul.f32 %v863, %v912
    %v921 = vmul.f32 %v865, %v916
    %v922 = vmul.f32 %v867, %v916
    %924 = vset.pattern.permute.xlu0 0
    %925 = vperm.xlu0 %924, %v919
    %v926 = vpop.permute.xlu0 %925
    %929 = vset.pattern.permute.xlu0 0
    %930 = vperm.xlu0 %929, %v920
    %v931 = vpop.permute.xlu0 %930
    %934 = vset.pattern.permute.xlu0 0
    %935 = vperm.xlu0 %934, %v921
    %v936 = vpop.permute.xlu0 %935
    %939 = vset.pattern.permute.xlu0 0
    %940 = vperm.xlu0 %939, %v922
    %v941 = vpop.permute.xlu0 %940
    %v943 = vmul.f32 %v926, %v286
    %v944 = vmul.f32 %v931, %v287
    %v945 = vmul.f32 %v936, %v288
    %v946 = vmul.f32 %v941, %v289
    %v947 = vsel %vm290, %v943, 0.0
    %v948 = vsel %vm290, %v944, 0.0
    %v949 = vadd.f32 %v947, %v948
    %v950 = vrot.slane %v949, 4
    %v951 = vadd.f32 %v949, %v950
    %v952 = vrot.slane %v951, 2
    %v953 = vadd.f32 %v951, %v952
    %v954 = vrot.slane %v953, 1
    %v955 = vadd.f32 %v953, %v954
    %v956 = vsel %vm290, %v945, 0.0
    %v957 = vsel %vm290, %v946, 0.0
    %v958 = vadd.f32 %v956, %v957
    %v959 = vrot.slane %v958, 4
    %v960 = vadd.f32 %v958, %v959
    %v961 = vrot.slane %v960, 2
    %v962 = vadd.f32 %v960, %v961
    %v963 = vrot.slane %v962, 1
    %v964 = vadd.f32 %v962, %v963
    %v965 = vpack.c.bf16 %v955, %v955
    %v966 = vpack.c.bf16 %v964, %v964
    %v967 = vld [vmem:[#allocation18] sm:$0xf]
    %v968 = vld [vmem:[#allocation18 + $0x4] sm:$0xf]
    %v969 = vld [vmem:[#allocation18 + $0x8] sm:$0xf]
    %v970 = vld [vmem:[#allocation18 + $0xc] sm:$0xf]
    %v973 = vunpack.c.l.b16 %v965
    %v974 = vunpack.c.l.b16 %v966
    %v975 = vsel %vm329, %v974, %v973
    %v976 = vpack.c.b16 %v975, %v975
    %v981 = vunpack.c.l.b16 %v967
    %v982 = vunpack.c.l.b16 %v968
    %v983 = vunpack.c.l.b16 %v969
    %v984 = vunpack.c.l.b16 %v970
    %v985 = vpack.c.b16 %v982, %v981
    %v986 = vpack.c.b16 %v984, %v983
    %v990 = vsel %vm290, %v976, 0
    %992 = vmatprep.subr.bf16.mxu0 0
    %993 = vmatpush1.bf16.msra.mxu0 %v985
    %994 = vmatprep.subr.bf16.mxu0 0
    %995 = vmatpush1.bf16.msra.mxu0 %v986
    %996 = vmatprep.subr.bf16.mxu0 0
    %997 = vmatpush1.bf16.msra.mxu0 0
    %998 = vmatprep.subr.bf16.mxu0 0
    %999 = vmatpush1.bf16.msra.mxu0 0
    %1000 = vmatprep.subr.bf16.mxu0 0
    %1001 = vmatpush1.bf16.msra.mxu0 0
    %1002 = vmatprep.subr.bf16.mxu0 0
    %1003 = vmatpush1.bf16.msra.mxu0 0
    %1004 = vmatprep.subr.bf16.mxu0 0
    %1005 = vmatpush1.bf16.msra.mxu0 0
    %1006 = vmatprep.subr.bf16.mxu0 0
    %1007 = vmatpush1.bf16.msra.mxu0 0
    %1008 = vmatprep.subr.bf16.mxu0 0
    %1009 = vmatpush1.bf16.msra.mxu0 0
    %1010 = vmatprep.subr.bf16.mxu0 0
    %1011 = vmatpush1.bf16.msra.mxu0 0
    %1012 = vmatprep.subr.bf16.mxu0 0
    %1013 = vmatpush1.bf16.msra.mxu0 0
    %1014 = vmatprep.subr.bf16.mxu0 0
    %1015 = vmatpush1.bf16.msra.mxu0 0
    %1016 = vmatprep.subr.bf16.mxu0 0
    %1017 = vmatpush1.bf16.msra.mxu0 0
    %1018 = vmatprep.subr.bf16.mxu0 0
    %1019 = vmatpush1.bf16.msra.mxu0 0
    %1020 = vmatprep.subr.bf16.mxu0 0
    %1021 = vmatpush1.bf16.msra.mxu0 0
    %1022 = vmatprep.subr.bf16.mxu0 0
    %1023 = vmatpush1.bf16.msra.mxu0 0
    %1024 = vmatprep.mubr.bf16.mxu0 0
    %1025 = vmatmul.mubr.bf16.gmra.mrb[0].mxu0 %v990
    %v1026 = vpop.f32.mrb[0].mxu0
    %v1027 = vadd.f32 0.0, %v1026
    %v1028 = vpop.f32.mrb[0].mxu0
    %v1029 = vpop.f32.mrb[0].mxu0
    %v1030 = vpop.f32.mrb[0].mxu0
    %1031 = vdwg.mxu0
    %v1032 = vadd.f32 %v608, %v669
    %v1033 = vadd.f32 %v1032, %v1027
    %v1034 = vxor.u32 %v1033, 2147483648
    %v1035 = vmul.f32 %v1034, 1.442695
    %v1036 = vpow.pop %v1035
    %v1037 = vadd.f32 %v1036, 1.0
    %v1038 = vrcp.pop %v1037
    %v1039 = vmul.f32 1.0, %v1038
    %v1040 = vtanh.pop %v1033
    %1042 = vrot.lane.b32.xlu0 %v445, 32
    %v1043 = vpop.permute.xlu0 %1042
    %v1045 = vmul.f32 %v1039, %v1043
    %1047 = vrot.lane.b32.xlu0 %v1040, 64
    %v1048 = vpop.permute.xlu0 %1047
    %v1050 = vmul.f32 %v1039, %v1048
    %1052 = vrot.lane.b32.xlu0 %v1050, 32
    %v1053 = vpop.permute.xlu0 %1052
    %v1055 = vadd.f32 %v1045, %v1053
    %v1056 = vtanh.pop %v1055
    %1058 = vrot.lane.b32.xlu0 %v1056, 64
    %v1059 = vpop.permute.xlu0 %1058
    %v1061 = vmul.f32 %v1039, %v1059
    %1063 = vrot.lane.b32.xlu0 %v1061, 32
    %v1064 = vpop.permute.xlu0 %1063
    %vm1066 = vcmask 254976
    %1067 = vst.msk [vmem:[#allocation2] sm:$0x3] %vm1066, %v1064
    %v1068 = vlaneseq
    %v1069 = vshrl.u32 %v1068, 7
    %v1070 = vsub.s32 %v818, %v1069
    %v1071 = vrot.slane %v926, %v1070
    %v1072 = vlaneseq
    %v1073 = vshrl.u32 %v1072, 7
    %v1074 = vsub.s32 %v823, %v1073
    %v1075 = vrot.slane %v931, %v1074
    %v1076 = vsel %vm828, %v1075, %v1071
    %v1077 = vlaneseq
    %v1078 = vshrl.u32 %v1077, 7
    %v1079 = vsub.s32 %v818, %v1078
    %v1080 = vrot.slane %v936, %v1079
    %v1081 = vlaneseq
    %v1082 = vshrl.u32 %v1081, 7
    %v1083 = vsub.s32 %v823, %v1082
    %v1084 = vrot.slane %v941, %v1083
    %v1085 = vsel %vm828, %v1084, %v1080
    %v1086 = vsel %vm329, %v1085, %v1076
    %1088 = vst.msk [vmem:[#allocation32] sm:$0x3] %vm841, %v1086
    %v1089 = vpack.c.bf16 %v1061, %v1061
    %v1090 = vld [vmem:[#allocation19] sm:$0xf]
    %v1091 = vld [vmem:[#allocation19 + $0x4] sm:$0xf]
    %v1092 = vld [vmem:[#allocation19 + $0x8] sm:$0xf]
    %v1093 = vld [vmem:[#allocation19 + $0xc] sm:$0xf]
    %1095 = vrot.lane.b32.xlu0 %v1089, 32
    %v1096 = vpop.permute.xlu0 %1095
    %v1101 = vunpack.c.l.b16 %v1090
    %v1102 = vunpack.c.l.b16 %v1091
    %v1103 = vunpack.c.l.b16 %v1092
    %v1104 = vunpack.c.l.b16 %v1093
    %v1105 = vpack.c.b16 %v1102, %v1101
    %v1106 = vpack.c.b16 %v1104, %v1103
    %v1110 = vsel %vm290, %v1096, 0
    %1112 = vmatprep.subr.bf16.mxu0 0
    %1113 = vmatpush1.bf16.msra.mxu0 %v1105
    %1114 = vmatprep.subr.bf16.mxu0 0
    %1115 = vmatpush1.bf16.msra.mxu0 %v1106
    %1116 = vmatprep.subr.bf16.mxu0 0
    %1117 = vmatpush1.bf16.msra.mxu0 0
    %1118 = vmatprep.subr.bf16.mxu0 0
    %1119 = vmatpush1.bf16.msra.mxu0 0
    %1120 = vmatprep.subr.bf16.mxu0 0
    %1121 = vmatpush1.bf16.msra.mxu0 0
    %1122 = vmatprep.subr.bf16.mxu0 0
    %1123 = vmatpush1.bf16.msra.mxu0 0
    %1124 = vmatprep.subr.bf16.mxu0 0
    %1125 = vmatpush1.bf16.msra.mxu0 0
    %1126 = vmatprep.subr.bf16.mxu0 0
    %1127 = vmatpush1.bf16.msra.mxu0 0
    %1128 = vmatprep.subr.bf16.mxu0 0
    %1129 = vmatpush1.bf16.msra.mxu0 0
    %1130 = vmatprep.subr.bf16.mxu0 0
    %1131 = vmatpush1.bf16.msra.mxu0 0
    %1132 = vmatprep.subr.bf16.mxu0 0
    %1133 = vmatpush1.bf16.msra.mxu0 0
    %1134 = vmatprep.subr.bf16.mxu0 0
    %1135 = vmatpush1.bf16.msra.mxu0 0
    %1136 = vmatprep.subr.bf16.mxu0 0
    %1137 = vmatpush1.bf16.msra.mxu0 0
    %1138 = vmatprep.subr.bf16.mxu0 0
    %1139 = vmatpush1.bf16.msra.mxu0 0
    %1140 = vmatprep.subr.bf16.mxu0 0
    %1141 = vmatpush1.bf16.msra.mxu0 0
    %1142 = vmatprep.subr.bf16.mxu0 0
    %1143 = vmatpush1.bf16.msra.mxu0 0
    %1144 = vmatprep.mubr.bf16.mxu0 0
    %1145 = vmatmul.mubr.bf16.gmra.mrb[0].mxu0 %v1110
    %v1146 = vpop.f32.mrb[0].mxu0
    %v1147 = vadd.f32 0.0, %v1146
    %v1148 = vpop.f32.mrb[0].mxu0
    %v1149 = vpop.f32.mrb[0].mxu0
    %v1150 = vpop.f32.mrb[0].mxu0
    %1151 = vdwg.mxu0
    %v1152 = vld [vmem:[#allocation12] sm:$0xf]
    %v1153 = vld [vmem:[#allocation12 + $0x4] sm:$0xf]
    %v1154 = vld [vmem:[#allocation12 + $0x8] sm:$0xf]
    %v1155 = vld [vmem:[#allocation12 + $0xc] sm:$0xf]
    %v1156 = vld [vmem:[#allocation13] sm:$0x1]
    %v1158 = vlaneseq
    %v1159 = vshrl.u32 %v1158, 7
    %v1160 = vsub.s32 0, %v1159
    %v1161 = vrot.slane %v1156, %v1160
    %v1167 = vunpack.c.l.b16 %v1152
    %v1168 = vunpack.c.l.b16 %v1153
    %v1169 = vunpack.c.l.b16 %v1154
    %v1170 = vunpack.c.l.b16 %v1155
    %v1171 = vpack.c.b16 %v1168, %v1167
    %v1172 = vpack.c.b16 %v1170, %v1169
    %1175 = vmatprep.subr.bf16.mxu0 0
    %1176 = vmatpush1.bf16.msra.mxu0 %v1171
    %1177 = vmatprep.subr.bf16.mxu0 0
    %1178 = vmatpush1.bf16.msra.mxu0 %v1172
    %1179 = vmatprep.subr.bf16.mxu0 0
    %1180 = vmatpush1.bf16.msra.mxu0 0
    %1181 = vmatprep.subr.bf16.mxu0 0
    %1182 = vmatpush1.bf16.msra.mxu0 0
    %1183 = vmatprep.subr.bf16.mxu0 0
    %1184 = vmatpush1.bf16.msra.mxu0 0
    %1185 = vmatprep.subr.bf16.mxu0 0
    %1186 = vmatpush1.bf16.msra.mxu0 0
    %1187 = vmatprep.subr.bf16.mxu0 0
    %1188 = vmatpush1.bf16.msra.mxu0 0
    %1189 = vmatprep.subr.bf16.mxu0 0
    %1190 = vmatpush1.bf16.msra.mxu0 0
    %1191 = vmatprep.subr.bf16.mxu0 0
    %1192 = vmatpush1.bf16.msra.mxu0 0
    %1193 = vmatprep.subr.bf16.mxu0 0
    %1194 = vmatpush1.bf16.msra.mxu0 0
    %1195 = vmatprep.subr.bf16.mxu0 0
    %1196 = vmatpush1.bf16.msra.mxu0 0
    %1197 = vmatprep.subr.bf16.mxu0 0
    %1198 = vmatpush1.bf16.msra.mxu0 0
    %1199 = vmatprep.subr.bf16.mxu0 0
    %1200 = vmatpush1.bf16.msra.mxu0 0
    %1201 = vmatprep.subr.bf16.mxu0 0
    %1202 = vmatpush1.bf16.msra.mxu0 0
    %1203 = vmatprep.subr.bf16.mxu0 0
    %1204 = vmatpush1.bf16.msra.mxu0 0
    %1205 = vmatprep.subr.bf16.mxu0 0
    %1206 = vmatpush1.bf16.msra.mxu0 0
    %1207 = vmatprep.mubr.bf16.mxu0 0
    %1208 = vmatmul.mubr.bf16.gmra.mrb[0].mxu0 %v1110
    %v1209 = vpop.f32.mrb[0].mxu0
    %v1210 = vadd.f32 %v1161, %v1209
    %v1211 = vpop.f32.mrb[0].mxu0
    %v1212 = vpop.f32.mrb[0].mxu0
    %v1213 = vpop.f32.mrb[0].mxu0
    %1214 = vdwg.mxu0
    %v1217 = vunpack.c.l.s4 1966171168
    %v1218 = vunpack.c.0.s8 %v1217
    %v1219 = vlaneseq
    %v1220 = vshrl.u32 %v1219, 7
    %v1221 = vsub.s32 %v1218, %v1220
    %v1222 = vrot.slane %v1210, %v1221
    %v1223 = vcombine.high %v1222, %v1222
    %v1225 = vunpack.c.l.s4 1966171168
    %v1226 = vunpack.c.0.s8 %v1225
    %v1227 = vlaneseq
    %v1228 = vshrl.u32 %v1227, 7
    %v1229 = vsub.s32 %v1226, %v1228
    %v1230 = vrot.slane %v1222, %v1229
    %v1232 = vunpack.c.l.s4 1966171168
    %v1233 = vunpack.c.0.s8 %v1232
    %v1234 = vlaneseq
    %v1235 = vshrl.u32 %v1234, 7
    %v1236 = vsub.s32 %v1233, %v1235
    %v1237 = vrot.slane %v1223, %v1236
    %v1238 = vlaneseq
    %v1239 = vshrl.u32 %v1238, 7
    %v1240 = vsub.s32 0, %v1239
    %v1241 = vrot.slane %v1230, %v1240
    %v1242 = vlaneseq
    %v1243 = vshrl.u32 %v1242, 7
    %v1244 = vsub.s32 0, %v1243
    %v1245 = vrot.slane %v1237, %v1244
    %v1248 = vadd.f32 %v524, %v1241
    %v1249 = vadd.f32 %v527, %v1241
    %v1250 = vadd.f32 %v532, %v1245
    %v1251 = vadd.f32 %v535, %v1245
    %v1252 = vtanh.pop %v1248
    %v1253 = vtanh.pop %v1249
    %v1254 = vtanh.pop %v1250
    %v1255 = vtanh.pop %v1251
    %v1256 = vmul.f32 %v1252, %v782
    %v1257 = vmul.f32 %v1253, %v782
    %v1258 = vmul.f32 %v1254, %v782
    %v1259 = vmul.f32 %v1255, %v782
    %v1260 = vsel %vm290, %v1256, 0.0
    %1261 = vadd.xlane.f32.xlu0 %v1260
    %v1262 = vpop.xlane.xlu0 %1261
    %v1263 = vsel %vm290, %v1257, 0.0
    %1264 = vadd.xlane.f32.xlu0 %v1263
    %v1265 = vpop.xlane.xlu0 %1264
    %v1266 = vsel %vm290, %v1258, 0.0
    %1267 = vadd.xlane.f32.xlu0 %v1266
    %v1268 = vpop.xlane.xlu0 %1267
    %v1269 = vsel %vm290, %v1259, 0.0
    %1270 = vadd.xlane.f32.xlu0 %v1269
    %v1271 = vpop.xlane.xlu0 %1270
    %v1272 = vadd.f32 %v1262, %v807
    %v1273 = vadd.f32 %v1265, %v807
    %v1274 = vadd.f32 %v1268, %v807
    %v1275 = vadd.f32 %v1271, %v807
    %v1280 = vlaneseq
    %v1281 = vshrl.u32 %v1280, 7
    %v1282 = vsub.s32 %v818, %v1281
    %v1283 = vrot.slane %v1272, %v1282
    %v1284 = vlaneseq
    %v1285 = vshrl.u32 %v1284, 7
    %v1286 = vsub.s32 %v823, %v1285
    %v1287 = vrot.slane %v1273, %v1286
    %v1288 = vsel %vm828, %v1287, %v1283
    %v1289 = vlaneseq
    %v1290 = vshrl.u32 %v1289, 7
    %v1291 = vsub.s32 %v818, %v1290
    %v1292 = vrot.slane %v1274, %v1291
    %v1293 = vlaneseq
    %v1294 = vshrl.u32 %v1293, 7
    %v1295 = vsub.s32 %v823, %v1294
    %v1296 = vrot.slane %v1275, %v1295
    %v1297 = vsel %vm828, %v1296, %v1292
    %v1298 = vsel %vm329, %v1297, %v1288
    %v1300 = vsel %vm841, %v1298, -inf
    %1301 = vmax.xlane.f32.xlu0 %v1300
    %v1302 = vpop.xlane.xlu0 %1301
    %v1304 = vlaneseq
    %v1305 = vshrl.u32 %v1304, 7
    %v1306 = vsub.s32 0, %v1305
    %v1307 = vrot.slane %v1302, %v1306
    %v1308 = vlaneseq
    %v1309 = vshrl.u32 %v1308, 7
    %v1310 = vsub.s32 1, %v1309
    %v1311 = vrot.slane %v1302, %v1310
    %v1314 = vsub.f32 %v1272, %v1307
    %v1315 = vsub.f32 %v1273, %v1307
    %v1316 = vsub.f32 %v1274, %v1311
    %v1317 = vsub.f32 %v1275, %v1311
    %v1318 = vmul.f32 %v1314, 1.442695
    %v1319 = vpow.pop %v1318
    %v1320 = vmul.f32 %v1315, 1.442695
    %v1321 = vpow.pop %v1320
    %v1322 = vmul.f32 %v1316, 1.442695
    %v1323 = vpow.pop %v1322
    %v1324 = vmul.f32 %v1317, 1.442695
    %v1325 = vpow.pop %v1324
    %1330 = vset.pattern.permute.xlu0 0
    %1331 = vperm.xlu0 %1330, %v1319
    %v1332 = vpop.permute.xlu0 %1331
    %1333 = vset.pattern.permute.xlu0 0
    %1334 = vperm.xlu0 %1333, %v1321
    %v1335 = vpop.permute.xlu0 %1334
    %1336 = vset.pattern.permute.xlu0 0
    %1337 = vperm.xlu0 %1336, %v1323
    %v1338 = vpop.permute.xlu0 %1337
    %1339 = vset.pattern.permute.xlu0 0
    %1340 = vperm.xlu0 %1339, %v1325
    %v1341 = vpop.permute.xlu0 %1340
    %v1342 = vlaneseq
    %v1343 = vshrl.u32 %v1342, 7
    %v1344 = vsub.s32 %v818, %v1343
    %v1345 = vrot.slane %v1332, %v1344
    %v1346 = vlaneseq
    %v1347 = vshrl.u32 %v1346, 7
    %v1348 = vsub.s32 %v823, %v1347
    %v1349 = vrot.slane %v1335, %v1348
    %v1350 = vsel %vm828, %v1349, %v1345
    %v1351 = vlaneseq
    %v1352 = vshrl.u32 %v1351, 7
    %v1353 = vsub.s32 %v818, %v1352
    %v1354 = vrot.slane %v1338, %v1353
    %v1355 = vlaneseq
    %v1356 = vshrl.u32 %v1355, 7
    %v1357 = vsub.s32 %v823, %v1356
    %v1358 = vrot.slane %v1341, %v1357
    %v1359 = vsel %vm828, %v1358, %v1354
    %v1360 = vsel %vm329, %v1359, %v1350
    %v1362 = vsel %vm841, %v1360, 0.0
    %1363 = vadd.xlane.f32.xlu0 %v1362
    %v1364 = vpop.xlane.xlu0 %1363
    %v1365 = vrcp.pop %v1364
    %v1367 = vlaneseq
    %v1368 = vshrl.u32 %v1367, 7
    %v1369 = vsub.s32 0, %v1368
    %v1370 = vrot.slane %v1365, %v1369
    %v1371 = vlaneseq
    %v1372 = vshrl.u32 %v1371, 7
    %v1373 = vsub.s32 1, %v1372
    %v1374 = vrot.slane %v1365, %v1373
    %v1377 = vmul.f32 %v1319, %v1370
    %v1378 = vmul.f32 %v1321, %v1370
    %v1379 = vmul.f32 %v1323, %v1374
    %v1380 = vmul.f32 %v1325, %v1374
    %1382 = vset.pattern.permute.xlu0 0
    %1383 = vperm.xlu0 %1382, %v1377
    %v1384 = vpop.permute.xlu0 %1383
    %1387 = vset.pattern.permute.xlu0 0
    %1388 = vperm.xlu0 %1387, %v1378
    %v1389 = vpop.permute.xlu0 %1388
    %1392 = vset.pattern.permute.xlu0 0
    %1393 = vperm.xlu0 %1392, %v1379
    %v1394 = vpop.permute.xlu0 %1393
    %1397 = vset.pattern.permute.xlu0 0
    %1398 = vperm.xlu0 %1397, %v1380
    %v1399 = vpop.permute.xlu0 %1398
    %v1401 = vmul.f32 %v1384, %v286
    %v1402 = vmul.f32 %v1389, %v287
    %v1403 = vmul.f32 %v1394, %v288
    %v1404 = vmul.f32 %v1399, %v289
    %v1405 = vsel %vm290, %v1401, 0.0
    %v1406 = vsel %vm290, %v1402, 0.0
    %v1407 = vadd.f32 %v1405, %v1406
    %v1408 = vrot.slane %v1407, 4
    %v1409 = vadd.f32 %v1407, %v1408
    %v1410 = vrot.slane %v1409, 2
    %v1411 = vadd.f32 %v1409, %v1410
    %v1412 = vrot.slane %v1411, 1
    %v1413 = vadd.f32 %v1411, %v1412
    %v1414 = vsel %vm290, %v1403, 0.0
    %v1415 = vsel %vm290, %v1404, 0.0
    %v1416 = vadd.f32 %v1414, %v1415
    %v1417 = vrot.slane %v1416, 4
    %v1418 = vadd.f32 %v1416, %v1417
    %v1419 = vrot.slane %v1418, 2
    %v1420 = vadd.f32 %v1418, %v1419
    %v1421 = vrot.slane %v1420, 1
    %v1422 = vadd.f32 %v1420, %v1421
    %v1423 = vpack.c.bf16 %v1413, %v1413
    %v1424 = vpack.c.bf16 %v1422, %v1422
    %v1425 = vld [vmem:[#allocation18] sm:$0xf]
    %v1426 = vld [vmem:[#allocation18 + $0x4] sm:$0xf]
    %v1427 = vld [vmem:[#allocation18 + $0x8] sm:$0xf]
    %v1428 = vld [vmem:[#allocation18 + $0xc] sm:$0xf]
    %v1431 = vunpack.c.l.b16 %v1423
    %v1432 = vunpack.c.l.b16 %v1424
    %v1433 = vsel %vm329, %v1432, %v1431
    %v1434 = vpack.c.b16 %v1433, %v1433
    %v1439 = vunpack.c.l.b16 %v1425
    %v1440 = vunpack.c.l.b16 %v1426
    %v1441 = vunpack.c.l.b16 %v1427
    %v1442 = vunpack.c.l.b16 %v1428
    %v1443 = vpack.c.b16 %v1440, %v1439
    %v1444 = vpack.c.b16 %v1442, %v1441
    %v1448 = vsel %vm290, %v1434, 0
    %1450 = vmatprep.subr.bf16.mxu0 0
    %1451 = vmatpush1.bf16.msra.mxu0 %v1443
    %1452 = vmatprep.subr.bf16.mxu0 0
    %1453 = vmatpush1.bf16.msra.mxu0 %v1444
    %1454 = vmatprep.subr.bf16.mxu0 0
    %1455 = vmatpush1.bf16.msra.mxu0 0
    %1456 = vmatprep.subr.bf16.mxu0 0
    %1457 = vmatpush1.bf16.msra.mxu0 0
    %1458 = vmatprep.subr.bf16.mxu0 0
    %1459 = vmatpush1.bf16.msra.mxu0 0
    %1460 = vmatprep.subr.bf16.mxu0 0
    %1461 = vmatpush1.bf16.msra.mxu0 0
    %1462 = vmatprep.subr.bf16.mxu0 0
    %1463 = vmatpush1.bf16.msra.mxu0 0
    %1464 = vmatprep.subr.bf16.mxu0 0
    %1465 = vmatpush1.bf16.msra.mxu0 0
    %1466 = vmatprep.subr.bf16.mxu0 0
    %1467 = vmatpush1.bf16.msra.mxu0 0
    %1468 = vmatprep.subr.bf16.mxu0 0
    %1469 = vmatpush1.bf16.msra.mxu0 0
    %1470 = vmatprep.subr.bf16.mxu0 0
    %1471 = vmatpush1.bf16.msra.mxu0 0
    %1472 = vmatprep.subr.bf16.mxu0 0
    %1473 = vmatpush1.bf16.msra.mxu0 0
    %1474 = vmatprep.subr.bf16.mxu0 0
    %1475 = vmatpush1.bf16.msra.mxu0 0
    %1476 = vmatprep.subr.bf16.mxu0 0
    %1477 = vmatpush1.bf16.msra.mxu0 0
    %1478 = vmatprep.subr.bf16.mxu0 0
    %1479 = vmatpush1.bf16.msra.mxu0 0
    %1480 = vmatprep.subr.bf16.mxu0 0
    %1481 = vmatpush1.bf16.msra.mxu0 0
    %1482 = vmatprep.mubr.bf16.mxu0 0
    %1483 = vmatmul.mubr.bf16.gmra.mrb[0].mxu0 %v1448
    %v1484 = vpop.f32.mrb[0].mxu0
    %v1485 = vadd.f32 0.0, %v1484
    %v1486 = vpop.f32.mrb[0].mxu0
    %v1487 = vpop.f32.mrb[0].mxu0
    %v1488 = vpop.f32.mrb[0].mxu0
    %1489 = vdwg.mxu0
    %v1491 = vrot.slane %v1147, 6
    %v1493 = vadd.f32 %v608, %v1491
    %v1495 = vrot.slane %v1485, 6
    %v1497 = vadd.f32 %v1493, %v1495
    %v1498 = vxor.u32 %v1497, 2147483648
    %v1499 = vmul.f32 %v1498, 1.442695
    %v1500 = vpow.pop %v1499
    %v1501 = vadd.f32 %v1500, 1.0
    %v1502 = vrcp.pop %v1501
    %v1503 = vmul.f32 1.0, %v1502
    %v1504 = vtanh.pop %v1497
    %v1506 = vrot.slane %v1055, 6
    %v1508 = vmul.f32 %v1503, %v1506
    %1510 = vrot.lane.b32.xlu0 %v1504, 64
    %v1511 = vpop.permute.xlu0 %1510
    %v1513 = vmul.f32 %v1503, %v1511
    %1515 = vrot.lane.b32.xlu0 %v1513, 32
    %v1516 = vpop.permute.xlu0 %1515
    %v1518 = vadd.f32 %v1508, %v1516
    %v1519 = vtanh.pop %v1518
    %1521 = vrot.lane.b32.xlu0 %v1519, 64
    %v1522 = vpop.permute.xlu0 %1521
    %v1524 = vmul.f32 %v1503, %v1522
    %1526 = vrot.lane.b32.xlu0 %v1524, 32
    %v1527 = vpop.permute.xlu0 %1526
    %vm1529 = vcmask 257026
    %1530 = vst.msk [vmem:[#allocation2] sm:$0xc] %vm1529, %v1527
    %v1531 = vlaneseq
    %v1532 = vshrl.u32 %v1531, 7
    %v1533 = vsub.s32 %v818, %v1532
    %v1534 = vrot.slane %v1384, %v1533
    %v1535 = vlaneseq
    %v1536 = vshrl.u32 %v1535, 7
    %v1537 = vsub.s32 %v823, %v1536
    %v1538 = vrot.slane %v1389, %v1537
    %v1539 = vsel %vm828, %v1538, %v1534
    %v1540 = vlaneseq
    %v1541 = vshrl.u32 %v1540, 7
    %v1542 = vsub.s32 %v818, %v1541
    %v1543 = vrot.slane %v1394, %v1542
    %v1544 = vlaneseq
    %v1545 = vshrl.u32 %v1544, 7
    %v1546 = vsub.s32 %v823, %v1545
    %v1547 = vrot.slane %v1399, %v1546
    %v1548 = vsel %vm828, %v1547, %v1543
    %v1549 = vsel %vm329, %v1548, %v1539
    %s1551 = scalar_lea.vmem [#allocation32], 2
    %1552 = vst.msk [vmem:[%s1551] sm:$0x3] %vm841, %v1549
    %v1553 = vpack.c.bf16 %v1524, %v1524
    %v1554 = vld [vmem:[#allocation19] sm:$0xf]
    %v1555 = vld [vmem:[#allocation19 + $0x4] sm:$0xf]
    %v1556 = vld [vmem:[#allocation19 + $0x8] sm:$0xf]
    %v1557 = vld [vmem:[#allocation19 + $0xc] sm:$0xf]
    %v1559 = vrot.slane %v1553, 1
    %1560 = vrot.lane.b32.xlu0 %v1559, 32
    %v1561 = vpop.permute.xlu0 %1560
    %v1566 = vunpack.c.l.b16 %v1554
    %v1567 = vunpack.c.l.b16 %v1555
    %v1568 = vunpack.c.l.b16 %v1556
    %v1569 = vunpack.c.l.b16 %v1557
    %v1570 = vpack.c.b16 %v1567, %v1566
    %v1571 = vpack.c.b16 %v1569, %v1568
    %v1575 = vsel %vm290, %v1561, 0
    %1577 = vmatprep.subr.bf16.mxu0 0
    %1578 = vmatpush1.bf16.msra.mxu0 %v1570
    %1579 = vmatprep.subr.bf16.mxu0 0
    %1580 = vmatpush1.bf16.msra.mxu0 %v1571
    %1581 = vmatprep.subr.bf16.mxu0 0
    %1582 = vmatpush1.bf16.msra.mxu0 0
    %1583 = vmatprep.subr.bf16.mxu0 0
    %1584 = vmatpush1.bf16.msra.mxu0 0
    %1585 = vmatprep.subr.bf16.mxu0 0
    %1586 = vmatpush1.bf16.msra.mxu0 0
    %1587 = vmatprep.subr.bf16.mxu0 0
    %1588 = vmatpush1.bf16.msra.mxu0 0
    %1589 = vmatprep.subr.bf16.mxu0 0
    %1590 = vmatpush1.bf16.msra.mxu0 0
    %1591 = vmatprep.subr.bf16.mxu0 0
    %1592 = vmatpush1.bf16.msra.mxu0 0
    %1593 = vmatprep.subr.bf16.mxu0 0
    %1594 = vmatpush1.bf16.msra.mxu0 0
    %1595 = vmatprep.subr.bf16.mxu0 0
    %1596 = vmatpush1.bf16.msra.mxu0 0
    %1597 = vmatprep.subr.bf16.mxu0 0
    %1598 = vmatpush1.bf16.msra.mxu0 0
    %1599 = vmatprep.subr.bf16.mxu0 0
    %1600 = vmatpush1.bf16.msra.mxu0 0
    %1601 = vmatprep.subr.bf16.mxu0 0
    %1602 = vmatpush1.bf16.msra.mxu0 0
    %1603 = vmatprep.subr.bf16.mxu0 0
    %1604 = vmatpush1.bf16.msra.mxu0 0
    %1605 = vmatprep.subr.bf16.mxu0 0
    %1606 = vmatpush1.bf16.msra.mxu0 0
    %1607 = vmatprep.subr.bf16.mxu0 0
    %1608 = vmatpush1.bf16.msra.mxu0 0
    %1609 = vmatprep.mubr.bf16.mxu0 0
    %1610 = vmatmul.mubr.bf16.gmra.mrb[0].mxu0 %v1575
    %v1611 = vpop.f32.mrb[0].mxu0
    %v1612 = vadd.f32 0.0, %v1611
    %v1613 = vpop.f32.mrb[0].mxu0
    %v1614 = vpop.f32.mrb[0].mxu0
    %v1615 = vpop.f32.mrb[0].mxu0
    %1616 = vdwg.mxu0
    %v1617 = vld [vmem:[#allocation12] sm:$0xf]
    %v1618 = vld [vmem:[#allocation12 + $0x4] sm:$0xf]
    %v1619 = vld [vmem:[#allocation12 + $0x8] sm:$0xf]
    %v1620 = vld [vmem:[#allocation12 + $0xc] sm:$0xf]
    %v1621 = vld [vmem:[#allocation13] sm:$0x1]
    %v1623 = vlaneseq
    %v1624 = vshrl.u32 %v1623, 7
    %v1625 = vsub.s32 0, %v1624
    %v1626 = vrot.slane %v1621, %v1625
    %v1632 = vunpack.c.l.b16 %v1617
    %v1633 = vunpack.c.l.b16 %v1618
    %v1634 = vunpack.c.l.b16 %v1619
    %v1635 = vunpack.c.l.b16 %v1620
    %v1636 = vpack.c.b16 %v1633, %v1632
    %v1637 = vpack.c.b16 %v1635, %v1634
    %1640 = vmatprep.subr.bf16.mxu0 0
    %1641 = vmatpush1.bf16.msra.mxu0 %v1636
    %1642 = vmatprep.subr.bf16.mxu0 0
    %1643 = vmatpush1.bf16.msra.mxu0 %v1637
    %1644 = vmatprep.subr.bf16.mxu0 0
    %1645 = vmatpush1.bf16.msra.mxu0 0
    %1646 = vmatprep.subr.bf16.mxu0 0
    %1647 = vmatpush1.bf16.msra.mxu0 0
    %1648 = vmatprep.subr.bf16.mxu0 0
    %1649 = vmatpush1.bf16.msra.mxu0 0
    %1650 = vmatprep.subr.bf16.mxu0 0
    %1651 = vmatpush1.bf16.msra.mxu0 0
    %1652 = vmatprep.subr.bf16.mxu0 0
    %1653 = vmatpush1.bf16.msra.mxu0 0
    %1654 = vmatprep.subr.bf16.mxu0 0
    %1655 = vmatpush1.bf16.msra.mxu0 0
    %1656 = vmatprep.subr.bf16.mxu0 0
    %1657 = vmatpush1.bf16.msra.mxu0 0
    %1658 = vmatprep.subr.bf16.mxu0 0
    %1659 = vmatpush1.bf16.msra.mxu0 0
    %1660 = vmatprep.subr.bf16.mxu0 0
    %1661 = vmatpush1.bf16.msra.mxu0 0
    %1662 = vmatprep.subr.bf16.mxu0 0
    %1663 = vmatpush1.bf16.msra.mxu0 0
    %1664 = vmatprep.subr.bf16.mxu0 0
    %1665 = vmatpush1.bf16.msra.mxu0 0
    %1666 = vmatprep.subr.bf16.mxu0 0
    %1667 = vmatpush1.bf16.msra.mxu0 0
    %1668 = vmatprep.subr.bf16.mxu0 0
    %1669 = vmatpush1.bf16.msra.mxu0 0
    %1670 = vmatprep.subr.bf16.mxu0 0
    %1671 = vmatpush1.bf16.msra.mxu0 0
    %1672 = vmatprep.mubr.bf16.mxu0 0
    %1673 = vmatmul.mubr.bf16.gmra.mrb[0].mxu0 %v1575
    %v1674 = vpop.f32.mrb[0].mxu0
    %v1675 = vadd.f32 %v1626, %v1674
    %v1676 = vpop.f32.mrb[0].mxu0
    %v1677 = vpop.f32.mrb[0].mxu0
    %v1678 = vpop.f32.mrb[0].mxu0
    %1679 = vdwg.mxu0
    %v1682 = vunpack.c.l.s4 1966171168
    %v1683 = vunpack.c.0.s8 %v1682
    %v1684 = vlaneseq
    %v1685 = vshrl.u32 %v1684, 7
    %v1686 = vsub.s32 %v1683, %v1685
    %v1687 = vrot.slane %v1675, %v1686
    %v1688 = vcombine.high %v1687, %v1687
    %v1690 = vunpack.c.l.s4 1966171168
    %v1691 = vunpack.c.0.s8 %v1690
    %v1692 = vlaneseq
    %v1693 = vshrl.u32 %v1692, 7
    %v1694 = vsub.s32 %v1691, %v1693
    %v1695 = vrot.slane %v1687, %v1694
    %v1697 = vunpack.c.l.s4 1966171168
    %v1698 = vunpack.c.0.s8 %v1697
    %v1699 = vlaneseq
    %v1700 = vshrl.u32 %v1699, 7
    %v1701 = vsub.s32 %v1698, %v1700
    %v1702 = vrot.slane %v1688, %v1701
    %v1703 = vlaneseq
    %v1704 = vshrl.u32 %v1703, 7
    %v1705 = vsub.s32 0, %v1704
    %v1706 = vrot.slane %v1695, %v1705
    %v1707 = vlaneseq
    %v1708 = vshrl.u32 %v1707, 7
    %v1709 = vsub.s32 0, %v1708
    %v1710 = vrot.slane %v1702, %v1709
    %v1713 = vadd.f32 %v524, %v1706
    %v1714 = vadd.f32 %v527, %v1706
    %v1715 = vadd.f32 %v532, %v1710
    %v1716 = vadd.f32 %v535, %v1710
    %v1717 = vtanh.pop %v1713
    %v1718 = vtanh.pop %v1714
    %v1719 = vtanh.pop %v1715
    %v1720 = vtanh.pop %v1716
    %v1721 = vmul.f32 %v1717, %v782
    %v1722 = vmul.f32 %v1718, %v782
    %v1723 = vmul.f32 %v1719, %v782
    %v1724 = vmul.f32 %v1720, %v782
    %v1725 = vsel %vm290, %v1721, 0.0
    %1726 = vadd.xlane.f32.xlu0 %v1725
    %v1727 = vpop.xlane.xlu0 %1726
    %v1728 = vsel %vm290, %v1722, 0.0
    %1729 = vadd.xlane.f32.xlu0 %v1728
    %v1730 = vpop.xlane.xlu0 %1729
    %v1731 = vsel %vm290, %v1723, 0.0
    %1732 = vadd.xlane.f32.xlu0 %v1731
    %v1733 = vpop.xlane.xlu0 %1732
    %v1734 = vsel %vm290, %v1724, 0.0
    %1735 = vadd.xlane.f32.xlu0 %v1734
    %v1736 = vpop.xlane.xlu0 %1735
    %v1737 = vadd.f32 %v1727, %v807
    %v1738 = vadd.f32 %v1730, %v807
    %v1739 = vadd.f32 %v1733, %v807
    %v1740 = vadd.f32 %v1736, %v807
    %v1745 = vlaneseq
    %v1746 = vshrl.u32 %v1745, 7
    %v1747 = vsub.s32 %v818, %v1746
    %v1748 = vrot.slane %v1737, %v1747
    %v1749 = vlaneseq
    %v1750 = vshrl.u32 %v1749, 7
    %v1751 = vsub.s32 %v823, %v1750
    %v1752 = vrot.slane %v1738, %v1751
    %v1753 = vsel %vm828, %v1752, %v1748
    %v1754 = vlaneseq
    %v1755 = vshrl.u32 %v1754, 7
    %v1756 = vsub.s32 %v818, %v1755
    %v1757 = vrot.slane %v1739, %v1756
    %v1758 = vlaneseq
    %v1759 = vshrl.u32 %v1758, 7
    %v1760 = vsub.s32 %v823, %v1759
    %v1761 = vrot.slane %v1740, %v1760
    %v1762 = vsel %vm828, %v1761, %v1757
    %v1763 = vsel %vm329, %v1762, %v1753
    %v1765 = vsel %vm841, %v1763, -inf
    %1766 = vmax.xlane.f32.xlu0 %v1765
    %v1767 = vpop.xlane.xlu0 %1766
    %v1769 = vlaneseq
    %v1770 = vshrl.u32 %v1769, 7
    %v1771 = vsub.s32 0, %v1770
    %v1772 = vrot.slane %v1767, %v1771
    %v1773 = vlaneseq
    %v1774 = vshrl.u32 %v1773, 7
    %v1775 = vsub.s32 1, %v1774
    %v1776 = vrot.slane %v1767, %v1775
    %v1779 = vsub.f32 %v1737, %v1772
    %v1780 = vsub.f32 %v1738, %v1772
    %v1781 = vsub.f32 %v1739, %v1776
    %v1782 = vsub.f32 %v1740, %v1776
    %v1783 = vmul.f32 %v1779, 1.442695
    %v1784 = vpow.pop %v1783
    %v1785 = vmul.f32 %v1780, 1.442695
    %v1786 = vpow.pop %v1785
    %v1787 = vmul.f32 %v1781, 1.442695
    %v1788 = vpow.pop %v1787
    %v1789 = vmul.f32 %v1782, 1.442695
    %v1790 = vpow.pop %v1789
    %1795 = vset.pattern.permute.xlu0 0
    %1796 = vperm.xlu0 %1795, %v1784
    %v1797 = vpop.permute.xlu0 %1796
    %1798 = vset.pattern.permute.xlu0 0
    %1799 = vperm.xlu0 %1798, %v1786
    %v1800 = vpop.permute.xlu0 %1799
    %1801 = vset.pattern.permute.xlu0 0
    %1802 = vperm.xlu0 %1801, %v1788
    %v1803 = vpop.permute.xlu0 %1802
    %1804 = vset.pattern.permute.xlu0 0
    %1805 = vperm.xlu0 %1804, %v1790
    %v1806 = vpop.permute.xlu0 %1805
    %v1807 = vlaneseq
    %v1808 = vshrl.u32 %v1807, 7
    %v1809 = vsub.s32 %v818, %v1808
    %v1810 = vrot.slane %v1797, %v1809
    %v1811 = vlaneseq
    %v1812 = vshrl.u32 %v1811, 7
    %v1813 = vsub.s32 %v823, %v1812
    %v1814 = vrot.slane %v1800, %v1813
    %v1815 = vsel %vm828, %v1814, %v1810
    %v1816 = vlaneseq
    %v1817 = vshrl.u32 %v1816, 7
    %v1818 = vsub.s32 %v818, %v1817
    %v1819 = vrot.slane %v1803, %v1818
    %v1820 = vlaneseq
    %v1821 = vshrl.u32 %v1820, 7
    %v1822 = vsub.s32 %v823, %v1821
    %v1823 = vrot.slane %v1806, %v1822
    %v1824 = vsel %vm828, %v1823, %v1819
    %v1825 = vsel %vm329, %v1824, %v1815
    %v1827 = vsel %vm841, %v1825, 0.0
    %1828 = vadd.xlane.f32.xlu0 %v1827
    %v1829 = vpop.xlane.xlu0 %1828
    %v1830 = vrcp.pop %v1829
    %v1832 = vlaneseq
    %v1833 = vshrl.u32 %v1832, 7
    %v1834 = vsub.s32 0, %v1833
    %v1835 = vrot.slane %v1830, %v1834
    %v1836 = vlaneseq
    %v1837 = vshrl.u32 %v1836, 7
    %v1838 = vsub.s32 1, %v1837
    %v1839 = vrot.slane %v1830, %v1838
    %v1842 = vmul.f32 %v1784, %v1835
    %v1843 = vmul.f32 %v1786, %v1835
    %v1844 = vmul.f32 %v1788, %v1839
    %v1845 = vmul.f32 %v1790, %v1839
    %1847 = vset.pattern.permute.xlu0 0
    %1848 = vperm.xlu0 %1847, %v1842
    %v1849 = vpop.permute.xlu0 %1848
    %1852 = vset.pattern.permute.xlu0 0
    %1853 = vperm.xlu0 %1852, %v1843
    %v1854 = vpop.permute.xlu0 %1853
    %1857 = vset.pattern.permute.xlu0 0
    %1858 = vperm.xlu0 %1857, %v1844
    %v1859 = vpop.permute.xlu0 %1858
    %1862 = vset.pattern.permute.xlu0 0
    %1863 = vperm.xlu0 %1862, %v1845
    %v1864 = vpop.permute.xlu0 %1863
    %v1866 = vmul.f32 %v1849, %v286
    %v1867 = vmul.f32 %v1854, %v287
    %v1868 = vmul.f32 %v1859, %v288
    %v1869 = vmul.f32 %v1864, %v289
    %v1870 = vsel %vm290, %v1866, 0.0
    %v1871 = vsel %vm290, %v1867, 0.0
    %v1872 = vadd.f32 %v1870, %v1871
    %v1873 = vrot.slane %v1872, 4
    %v1874 = vadd.f32 %v1872, %v1873
    %v1875 = vrot.slane %v1874, 2
    %v1876 = vadd.f32 %v1874, %v1875
    %v1877 = vrot.slane %v1876, 1
    %v1878 = vadd.f32 %v1876, %v1877
    %v1879 = vsel %vm290, %v1868, 0.0
    %v1880 = vsel %vm290, %v1869, 0.0
    %v1881 = vadd.f32 %v1879, %v1880
    %v1882 = vrot.slane %v1881, 4
    %v1883 = vadd.f32 %v1881, %v1882
    %v1884 = vrot.slane %v1883, 2
    %v1885 = vadd.f32 %v1883, %v1884
    %v1886 = vrot.slane %v1885, 1
    %v1887 = vadd.f32 %v1885, %v1886
    %v1888 = vpack.c.bf16 %v1878, %v1878
    %v1889 = vpack.c.bf16 %v1887, %v1887
    %v1890 = vld [vmem:[#allocation18] sm:$0xf]
    %v1891 = vld [vmem:[#allocation18 + $0x4] sm:$0xf]
    %v1892 = vld [vmem:[#allocation18 + $0x8] sm:$0xf]
    %v1893 = vld [vmem:[#allocation18 + $0xc] sm:$0xf]
    %v1896 = vunpack.c.l.b16 %v1888
    %v1897 = vunpack.c.l.b16 %v1889
    %v1898 = vsel %vm329, %v1897, %v1896
    %v1899 = vpack.c.b16 %v1898, %v1898
    %v1904 = vunpack.c.l.b16 %v1890
    %v1905 = vunpack.c.l.b16 %v1891
    %v1906 = vunpack.c.l.b16 %v1892
    %v1907 = vunpack.c.l.b16 %v1893
    %v1908 = vpack.c.b16 %v1905, %v1904
    %v1909 = vpack.c.b16 %v1907, %v1906
    %v1913 = vsel %vm290, %v1899, 0
    %1915 = vmatprep.subr.bf16.mxu0 0
    %1916 = vmatpush1.bf16.msra.mxu0 %v1908
    %1917 = vmatprep.subr.bf16.mxu0 0
    %1918 = vmatpush1.bf16.msra.mxu0 %v1909
    %1919 = vmatprep.subr.bf16.mxu0 0
    %1920 = vmatpush1.bf16.msra.mxu0 0
    %1921 = vmatprep.subr.bf16.mxu0 0
    %1922 = vmatpush1.bf16.msra.mxu0 0
    %1923 = vmatprep.subr.bf16.mxu0 0
    %1924 = vmatpush1.bf16.msra.mxu0 0
    %1925 = vmatprep.subr.bf16.mxu0 0
    %1926 = vmatpush1.bf16.msra.mxu0 0
    %1927 = vmatprep.subr.bf16.mxu0 0
    %1928 = vmatpush1.bf16.msra.mxu0 0
    %1929 = vmatprep.subr.bf16.mxu0 0
    %1930 = vmatpush1.bf16.msra.mxu0 0
    %1931 = vmatprep.subr.bf16.mxu0 0
    %1932 = vmatpush1.bf16.msra.mxu0 0
    %1933 = vmatprep.subr.bf16.mxu0 0
    %1934 = vmatpush1.bf16.msra.mxu0 0
    %1935 = vmatprep.subr.bf16.mxu0 0
    %1936 = vmatpush1.bf16.msra.mxu0 0
    %1937 = vmatprep.subr.bf16.mxu0 0
    %1938 = vmatpush1.bf16.msra.mxu0 0
    %1939 = vmatprep.subr.bf16.mxu0 0
    %1940 = vmatpush1.bf16.msra.mxu0 0
    %1941 = vmatprep.subr.bf16.mxu0 0
    %1942 = vmatpush1.bf16.msra.mxu0 0
    %1943 = vmatprep.subr.bf16.mxu0 0
    %1944 = vmatpush1.bf16.msra.mxu0 0
    %1945 = vmatprep.subr.bf16.mxu0 0
    %1946 = vmatpush1.bf16.msra.mxu0 0
    %1947 = vmatprep.mubr.bf16.mxu0 0
    %1948 = vmatmul.mubr.bf16.gmra.mrb[0].mxu0 %v1913
    %v1949 = vpop.f32.mrb[0].mxu0
    %v1950 = vadd.f32 0.0, %v1949
    %v1951 = vpop.f32.mrb[0].mxu0
    %v1952 = vpop.f32.mrb[0].mxu0
    %v1953 = vpop.f32.mrb[0].mxu0
    %1954 = vdwg.mxu0
    %v1956 = vrot.slane %v1612, 4
    %v1958 = vadd.f32 %v608, %v1956
    %v1960 = vrot.slane %v1950, 4
    %v1962 = vadd.f32 %v1958, %v1960
    %v1963 = vxor.u32 %v1962, 2147483648
    %v1964 = vmul.f32 %v1963, 1.442695
    %v1965 = vpow.pop %v1964
    %v1966 = vadd.f32 %v1965, 1.0
    %v1967 = vrcp.pop %v1966
    %v1968 = vmul.f32 1.0, %v1967
    %v1969 = vtanh.pop %v1962
    %v1971 = vrot.slane %v1518, 6
    %v1973 = vmul.f32 %v1968, %v1971
    %1975 = vrot.lane.b32.xlu0 %v1969, 64
    %v1976 = vpop.permute.xlu0 %1975
    %v1978 = vmul.f32 %v1968, %v1976
    %1980 = vrot.lane.b32.xlu0 %v1978, 32
    %v1981 = vpop.permute.xlu0 %1980
    %v1983 = vadd.f32 %v1973, %v1981
    %v1984 = vtanh.pop %v1983
    %1986 = vrot.lane.b32.xlu0 %v1984, 64
    %v1987 = vpop.permute.xlu0 %1986
    %v1989 = vmul.f32 %v1968, %v1987
    %1991 = vrot.lane.b32.xlu0 %v1989, 32
    %v1992 = vpop.permute.xlu0 %1991
    %vm1994 = vcmask 259076
    %1995 = vst.msk [vmem:[#allocation2] sm:$0x30] %vm1994, %v1992
    %v1996 = vlaneseq
    %v1997 = vshrl.u32 %v1996, 7
    %v1998 = vsub.s32 %v818, %v1997
    %v1999 = vrot.slane %v1849, %v1998
    %v2000 = vlaneseq
    %v2001 = vshrl.u32 %v2000, 7
    %v2002 = vsub.s32 %v823, %v2001
    %v2003 = vrot.slane %v1854, %v2002
    %v2004 = vsel %vm828, %v2003, %v1999
    %v2005 = vlaneseq
    %v2006 = vshrl.u32 %v2005, 7
    %v2007 = vsub.s32 %v818, %v2006
    %v2008 = vrot.slane %v1859, %v2007
    %v2009 = vlaneseq
    %v2010 = vshrl.u32 %v2009, 7
    %v2011 = vsub.s32 %v823, %v2010
    %v2012 = vrot.slane %v1864, %v2011
    %v2013 = vsel %vm828, %v2012, %v2008
    %v2014 = vsel %vm329, %v2013, %v2004
    %s2016 = scalar_lea.vmem [#allocation32], 4
    %2017 = vst.msk [vmem:[%s2016] sm:$0x3] %vm841, %v2014
    %v2018 = vpack.c.bf16 %v1989, %v1989
    %v2019 = vld [vmem:[#allocation19] sm:$0xf]
    %v2020 = vld [vmem:[#allocation19 + $0x4] sm:$0xf]
    %v2021 = vld [vmem:[#allocation19 + $0x8] sm:$0xf]
    %v2022 = vld [vmem:[#allocation19 + $0xc] sm:$0xf]
    %v2024 = vrot.slane %v2018, 2
    %2025 = vrot.lane.b32.xlu0 %v2024, 32
    %v2026 = vpop.permute.xlu0 %2025
    %v2031 = vunpack.c.l.b16 %v2019
    %v2032 = vunpack.c.l.b16 %v2020
    %v2033 = vunpack.c.l.b16 %v2021
    %v2034 = vunpack.c.l.b16 %v2022
    %v2035 = vpack.c.b16 %v2032, %v2031
    %v2036 = vpack.c.b16 %v2034, %v2033
    %v2040 = vsel %vm290, %v2026, 0
    %2042 = vmatprep.subr.bf16.mxu0 0
    %2043 = vmatpush1.bf16.msra.mxu0 %v2035
    %2044 = vmatprep.subr.bf16.mxu0 0
    %2045 = vmatpush1.bf16.msra.mxu0 %v2036
    %2046 = vmatprep.subr.bf16.mxu0 0
    %2047 = vmatpush1.bf16.msra.mxu0 0
    %2048 = vmatprep.subr.bf16.mxu0 0
    %2049 = vmatpush1.bf16.msra.mxu0 0
    %2050 = vmatprep.subr.bf16.mxu0 0
    %2051 = vmatpush1.bf16.msra.mxu0 0
    %2052 = vmatprep.subr.bf16.mxu0 0
    %2053 = vmatpush1.bf16.msra.mxu0 0
    %2054 = vmatprep.subr.bf16.mxu0 0
    %2055 = vmatpush1.bf16.msra.mxu0 0
    %2056 = vmatprep.subr.bf16.mxu0 0
    %2057 = vmatpush1.bf16.msra.mxu0 0
    %2058 = vmatprep.subr.bf16.mxu0 0
    %2059 = vmatpush1.bf16.msra.mxu0 0
    %2060 = vmatprep.subr.bf16.mxu0 0
    %2061 = vmatpush1.bf16.msra.mxu0 0
    %2062 = vmatprep.subr.bf16.mxu0 0
    %2063 = vmatpush1.bf16.msra.mxu0 0
    %2064 = vmatprep.subr.bf16.mxu0 0
    %2065 = vmatpush1.bf16.msra.mxu0 0
    %2066 = vmatprep.subr.bf16.mxu0 0
    %2067 = vmatpush1.bf16.msra.mxu0 0
    %2068 = vmatprep.subr.bf16.mxu0 0
    %2069 = vmatpush1.bf16.msra.mxu0 0
    %2070 = vmatprep.subr.bf16.mxu0 0
    %2071 = vmatpush1.bf16.msra.mxu0 0
    %2072 = vmatprep.subr.bf16.mxu0 0
    %2073 = vmatpush1.bf16.msra.mxu0 0
    %2074 = vmatprep.mubr.bf16.mxu0 0
    %2075 = vmatmul.mubr.bf16.gmra.mrb[0].mxu0 %v2040
    %v2076 = vpop.f32.mrb[0].mxu0
    %v2077 = vadd.f32 0.0, %v2076
    %v2078 = vpop.f32.mrb[0].mxu0
    %v2079 = vpop.f32.mrb[0].mxu0
    %v2080 = vpop.f32.mrb[0].mxu0
    %2081 = vdwg.mxu0
    %v2082 = vld [vmem:[#allocation12] sm:$0xf]
    %v2083 = vld [vmem:[#allocation12 + $0x4] sm:$0xf]
    %v2084 = vld [vmem:[#allocation12 + $0x8] sm:$0xf]
    %v2085 = vld [vmem:[#allocation12 + $0xc] sm:$0xf]
    %v2086 = vld [vmem:[#allocation13] sm:$0x1]
    %v2088 = vlaneseq
    %v2089 = vshrl.u32 %v2088, 7
    %v2090 = vsub.s32 0, %v2089
    %v2091 = vrot.slane %v2086, %v2090
    %v2097 = vunpack.c.l.b16 %v2082
    %v2098 = vunpack.c.l.b16 %v2083
    %v2099 = vunpack.c.l.b16 %v2084
    %v2100 = vunpack.c.l.b16 %v2085
    %v2101 = vpack.c.b16 %v2098, %v2097
    %v2102 = vpack.c.b16 %v2100, %v2099
    %2105 = vmatprep.subr.bf16.mxu0 0
    %2106 = vmatpush1.bf16.msra.mxu0 %v2101
    %2107 = vmatprep.subr.bf16.mxu0 0
    %2108 = vmatpush1.bf16.msra.mxu0 %v2102
    %2109 = vmatprep.subr.bf16.mxu0 0
    %2110 = vmatpush1.bf16.msra.mxu0 0
    %2111 = vmatprep.subr.bf16.mxu0 0
    %2112 = vmatpush1.bf16.msra.mxu0 0
    %2113 = vmatprep.subr.bf16.mxu0 0
    %2114 = vmatpush1.bf16.msra.mxu0 0
    %2115 = vmatprep.subr.bf16.mxu0 0
    %2116 = vmatpush1.bf16.msra.mxu0 0
    %2117 = vmatprep.subr.bf16.mxu0 0
    %2118 = vmatpush1.bf16.msra.mxu0 0
    %2119 = vmatprep.subr.bf16.mxu0 0
    %2120 = vmatpush1.bf16.msra.mxu0 0
    %2121 = vmatprep.subr.bf16.mxu0 0
    %2122 = vmatpush1.bf16.msra.mxu0 0
    %2123 = vmatprep.subr.bf16.mxu0 0
    %2124 = vmatpush1.bf16.msra.mxu0 0
    %2125 = vmatprep.subr.bf16.mxu0 0
    %2126 = vmatpush1.bf16.msra.mxu0 0
    %2127 = vmatprep.subr.bf16.mxu0 0
    %2128 = vmatpush1.bf16.msra.mxu0 0
    %2129 = vmatprep.subr.bf16.mxu0 0
    %2130 = vmatpush1.bf16.msra.mxu0 0
    %2131 = vmatprep.subr.bf16.mxu0 0
    %2132 = vmatpush1.bf16.msra.mxu0 0
    %2133 = vmatprep.subr.bf16.mxu0 0
    %2134 = vmatpush1.bf16.msra.mxu0 0
    %2135 = vmatprep.subr.bf16.mxu0 0
    %2136 = vmatpush1.bf16.msra.mxu0 0
    %2137 = vmatprep.mubr.bf16.mxu0 0
    %2138 = vmatmul.mubr.bf16.gmra.mrb[0].mxu0 %v2040
    %v2139 = vpop.f32.mrb[0].mxu0
    %v2140 = vadd.f32 %v2091, %v2139
    %v2141 = vpop.f32.mrb[0].mxu0
    %v2142 = vpop.f32.mrb[0].mxu0
    %v2143 = vpop.f32.mrb[0].mxu0
    %2144 = vdwg.mxu0
    %v2147 = vunpack.c.l.s4 1966171168
    %v2148 = vunpack.c.0.s8 %v2147
    %v2149 = vlaneseq
    %v2150 = vshrl.u32 %v2149, 7
    %v2151 = vsub.s32 %v2148, %v2150
    %v2152 = vrot.slane %v2140, %v2151
    %v2153 = vcombine.high %v2152, %v2152
    %v2155 = vunpack.c.l.s4 1966171168
    %v2156 = vunpack.c.0.s8 %v2155
    %v2157 = vlaneseq
    %v2158 = vshrl.u32 %v2157, 7
    %v2159 = vsub.s32 %v2156, %v2158
    %v2160 = vrot.slane %v2152, %v2159
    %v2162 = vunpack.c.l.s4 1966171168
    %v2163 = vunpack.c.0.s8 %v2162
    %v2164 = vlaneseq
    %v2165 = vshrl.u32 %v2164, 7
    %v2166 = vsub.s32 %v2163, %v2165
    %v2167 = vrot.slane %v2153, %v2166
    %v2168 = vlaneseq
    %v2169 = vshrl.u32 %v2168, 7
    %v2170 = vsub.s32 0, %v2169
    %v2171 = vrot.slane %v2160, %v2170
    %v2172 = vlaneseq
    %v2173 = vshrl.u32 %v2172, 7
    %v2174 = vsub.s32 0, %v2173
    %v2175 = vrot.slane %v2167, %v2174
    %v2178 = vadd.f32 %v524, %v2171
    %v2179 = vadd.f32 %v527, %v2171
    %v2180 = vadd.f32 %v532, %v2175
    %v2181 = vadd.f32 %v535, %v2175
    %v2182 = vtanh.pop %v2178
    %v2183 = vtanh.pop %v2179
    %v2184 = vtanh.pop %v2180
    %v2185 = vtanh.pop %v2181
    %v2186 = vmul.f32 %v2182, %v782
    %v2187 = vmul.f32 %v2183, %v782
    %v2188 = vmul.f32 %v2184, %v782
    %v2189 = vmul.f32 %v2185, %v782
    %v2190 = vsel %vm290, %v2186, 0.0
    %2191 = vadd.xlane.f32.xlu0 %v2190
    %v2192 = vpop.xlane.xlu0 %2191
    %v2193 = vsel %vm290, %v2187, 0.0
    %2194 = vadd.xlane.f32.xlu0 %v2193
    %v2195 = vpop.xlane.xlu0 %2194
    %v2196 = vsel %vm290, %v2188, 0.0
    %2197 = vadd.xlane.f32.xlu0 %v2196
    %v2198 = vpop.xlane.xlu0 %2197
    %v2199 = vsel %vm290, %v2189, 0.0
    %2200 = vadd.xlane.f32.xlu0 %v2199
    %v2201 = vpop.xlane.xlu0 %2200
    %v2202 = vadd.f32 %v2192, %v807
    %v2203 = vadd.f32 %v2195, %v807
    %v2204 = vadd.f32 %v2198, %v807
    %v2205 = vadd.f32 %v2201, %v807
    %v2210 = vlaneseq
    %v2211 = vshrl.u32 %v2210, 7
    %v2212 = vsub.s32 %v818, %v2211
    %v2213 = vrot.slane %v2202, %v2212
    %v2214 = vlaneseq
    %v2215 = vshrl.u32 %v2214, 7
    %v2216 = vsub.s32 %v823, %v2215
    %v2217 = vrot.slane %v2203, %v2216
    %v2218 = vsel %vm828, %v2217, %v2213
    %v2219 = vlaneseq
    %v2220 = vshrl.u32 %v2219, 7
    %v2221 = vsub.s32 %v818, %v2220
    %v2222 = vrot.slane %v2204, %v2221
    %v2223 = vlaneseq
    %v2224 = vshrl.u32 %v2223, 7
    %v2225 = vsub.s32 %v823, %v2224
    %v2226 = vrot.slane %v2205, %v2225
    %v2227 = vsel %vm828, %v2226, %v2222
    %v2228 = vsel %vm329, %v2227, %v2218
    %v2230 = vsel %vm841, %v2228, -inf
    %2231 = vmax.xlane.f32.xlu0 %v2230
    %v2232 = vpop.xlane.xlu0 %2231
    %v2234 = vlaneseq
    %v2235 = vshrl.u32 %v2234, 7
    %v2236 = vsub.s32 0, %v2235
    %v2237 = vrot.slane %v2232, %v2236
    %v2238 = vlaneseq
    %v2239 = vshrl.u32 %v2238, 7
    %v2240 = vsub.s32 1, %v2239
    %v2241 = vrot.slane %v2232, %v2240
    %v2244 = vsub.f32 %v2202, %v2237
    %v2245 = vsub.f32 %v2203, %v2237
    %v2246 = vsub.f32 %v2204, %v2241
    %v2247 = vsub.f32 %v2205, %v2241
    %v2248 = vmul.f32 %v2244, 1.442695
    %v2249 = vpow.pop %v2248
    %v2250 = vmul.f32 %v2245, 1.442695
    %v2251 = vpow.pop %v2250
    %v2252 = vmul.f32 %v2246, 1.442695
    %v2253 = vpow.pop %v2252
    %v2254 = vmul.f32 %v2247, 1.442695
    %v2255 = vpow.pop %v2254
    %2260 = vset.pattern.permute.xlu0 0
    %2261 = vperm.xlu0 %2260, %v2249
    %v2262 = vpop.permute.xlu0 %2261
    %2263 = vset.pattern.permute.xlu0 0
    %2264 = vperm.xlu0 %2263, %v2251
    %v2265 = vpop.permute.xlu0 %2264
    %2266 = vset.pattern.permute.xlu0 0
    %2267 = vperm.xlu0 %2266, %v2253
    %v2268 = vpop.permute.xlu0 %2267
    %2269 = vset.pattern.permute.xlu0 0
    %2270 = vperm.xlu0 %2269, %v2255
    %v2271 = vpop.permute.xlu0 %2270
    %v2272 = vlaneseq
    %v2273 = vshrl.u32 %v2272, 7
    %v2274 = vsub.s32 %v818, %v2273
    %v2275 = vrot.slane %v2262, %v2274
    %v2276 = vlaneseq
    %v2277 = vshrl.u32 %v2276, 7
    %v2278 = vsub.s32 %v823, %v2277
    %v2279 = vrot.slane %v2265, %v2278
    %v2280 = vsel %vm828, %v2279, %v2275
    %v2281 = vlaneseq
    %v2282 = vshrl.u32 %v2281, 7
    %v2283 = vsub.s32 %v818, %v2282
    %v2284 = vrot.slane %v2268, %v2283
    %v2285 = vlaneseq
    %v2286 = vshrl.u32 %v2285, 7
    %v2287 = vsub.s32 %v823, %v2286
    %v2288 = vrot.slane %v2271, %v2287
    %v2289 = vsel %vm828, %v2288, %v2284
    %v2290 = vsel %vm329, %v2289, %v2280
    %v2292 = vsel %vm841, %v2290, 0.0
    %2293 = vadd.xlane.f32.xlu0 %v2292
    %v2294 = vpop.xlane.xlu0 %2293
    %v2295 = vrcp.pop %v2294
    %v2297 = vlaneseq
    %v2298 = vshrl.u32 %v2297, 7
    %v2299 = vsub.s32 0, %v2298
    %v2300 = vrot.slane %v2295, %v2299
    %v2301 = vlaneseq
    %v2302 = vshrl.u32 %v2301, 7
    %v2303 = vsub.s32 1, %v2302
    %v2304 = vrot.slane %v2295, %v2303
    %v2307 = vmul.f32 %v2249, %v2300
    %v2308 = vmul.f32 %v2251, %v2300
    %v2309 = vmul.f32 %v2253, %v2304
    %v2310 = vmul.f32 %v2255, %v2304
    %2312 = vset.pattern.permute.xlu0 0
    %2313 = vperm.xlu0 %2312, %v2307
    %v2314 = vpop.permute.xlu0 %2313
    %2317 = vset.pattern.permute.xlu0 0
    %2318 = vperm.xlu0 %2317, %v2308
    %v2319 = vpop.permute.xlu0 %2318
    %2322 = vset.pattern.permute.xlu0 0
    %2323 = vperm.xlu0 %2322, %v2309
    %v2324 = vpop.permute.xlu0 %2323
    %2327 = vset.pattern.permute.xlu0 0
    %2328 = vperm.xlu0 %2327, %v2310
    %v2329 = vpop.permute.xlu0 %2328
    %v2331 = vmul.f32 %v2314, %v286
    %v2332 = vmul.f32 %v2319, %v287
    %v2333 = vmul.f32 %v2324, %v288
    %v2334 = vmul.f32 %v2329, %v289
    %v2335 = vsel %vm290, %v2331, 0.0
    %v2336 = vsel %vm290, %v2332, 0.0
    %v2337 = vadd.f32 %v2335, %v2336
    %v2338 = vrot.slane %v2337, 4
    %v2339 = vadd.f32 %v2337, %v2338
    %v2340 = vrot.slane %v2339, 2
    %v2341 = vadd.f32 %v2339, %v2340
    %v2342 = vrot.slane %v2341, 1
    %v2343 = vadd.f32 %v2341, %v2342
    %v2344 = vsel %vm290, %v2333, 0.0
    %v2345 = vsel %vm290, %v2334, 0.0
    %v2346 = vadd.f32 %v2344, %v2345
    %v2347 = vrot.slane %v2346, 4
    %v2348 = vadd.f32 %v2346, %v2347
    %v2349 = vrot.slane %v2348, 2
    %v2350 = vadd.f32 %v2348, %v2349
    %v2351 = vrot.slane %v2350, 1
    %v2352 = vadd.f32 %v2350, %v2351
    %v2353 = vpack.c.bf16 %v2343, %v2343
    %v2354 = vpack.c.bf16 %v2352, %v2352
    %v2355 = vld [vmem:[#allocation18] sm:$0xf]
    %v2356 = vld [vmem:[#allocation18 + $0x4] sm:$0xf]
    %v2357 = vld [vmem:[#allocation18 + $0x8] sm:$0xf]
    %v2358 = vld [vmem:[#allocation18 + $0xc] sm:$0xf]
    %v2361 = vunpack.c.l.b16 %v2353
    %v2362 = vunpack.c.l.b16 %v2354
    %v2363 = vsel %vm329, %v2362, %v2361
    %v2364 = vpack.c.b16 %v2363, %v2363
    %v2369 = vunpack.c.l.b16 %v2355
    %v2370 = vunpack.c.l.b16 %v2356
    %v2371 = vunpack.c.l.b16 %v2357
    %v2372 = vunpack.c.l.b16 %v2358
    %v2373 = vpack.c.b16 %v2370, %v2369
    %v2374 = vpack.c.b16 %v2372, %v2371
    %v2378 = vsel %vm290, %v2364, 0
    %2380 = vmatprep.subr.bf16.mxu0 0
    %2381 = vmatpush1.bf16.msra.mxu0 %v2373
    %2382 = vmatprep.subr.bf16.mxu0 0
    %2383 = vmatpush1.bf16.msra.mxu0 %v2374
    %2384 = vmatprep.subr.bf16.mxu0 0
    %2385 = vmatpush1.bf16.msra.mxu0 0
    %2386 = vmatprep.subr.bf16.mxu0 0
    %2387 = vmatpush1.bf16.msra.mxu0 0
    %2388 = vmatprep.subr.bf16.mxu0 0
    %2389 = vmatpush1.bf16.msra.mxu0 0
    %2390 = vmatprep.subr.bf16.mxu0 0
    %2391 = vmatpush1.bf16.msra.mxu0 0
    %2392 = vmatprep.subr.bf16.mxu0 0
    %2393 = vmatpush1.bf16.msra.mxu0 0
    %2394 = vmatprep.subr.bf16.mxu0 0
    %2395 = vmatpush1.bf16.msra.mxu0 0
    %2396 = vmatprep.subr.bf16.mxu0 0
    %2397 = vmatpush1.bf16.msra.mxu0 0
    %2398 = vmatprep.subr.bf16.mxu0 0
    %2399 = vmatpush1.bf16.msra.mxu0 0
    %2400 = vmatprep.subr.bf16.mxu0 0
    %2401 = vmatpush1.bf16.msra.mxu0 0
    %2402 = vmatprep.subr.bf16.mxu0 0
    %2403 = vmatpush1.bf16.msra.mxu0 0
    %2404 = vmatprep.subr.bf16.mxu0 0
    %2405 = vmatpush1.bf16.msra.mxu0 0
    %2406 = vmatprep.subr.bf16.mxu0 0
    %2407 = vmatpush1.bf16.msra.mxu0 0
    %2408 = vmatprep.subr.bf16.mxu0 0
    %2409 = vmatpush1.bf16.msra.mxu0 0
    %2410 = vmatprep.subr.bf16.mxu0 0
    %2411 = vmatpush1.bf16.msra.mxu0 0
    %2412 = vmatprep.mubr.bf16.mxu0 0
    %2413 = vmatmul.mubr.bf16.gmra.mrb[0].mxu0 %v2378
    %v2414 = vpop.f32.mrb[0].mxu0
    %v2415 = vadd.f32 0.0, %v2414
    %v2416 = vpop.f32.mrb[0].mxu0
    %v2417 = vpop.f32.mrb[0].mxu0
    %v2418 = vpop.f32.mrb[0].mxu0
    %2419 = vdwg.mxu0
    %v2421 = vrot.slane %v2077, 2
    %v2423 = vadd.f32 %v608, %v2421
    %v2425 = vrot.slane %v2415, 2
    %v2427 = vadd.f32 %v2423, %v2425
    %v2428 = vxor.u32 %v2427, 2147483648
    %v2429 = vmul.f32 %v2428, 1.442695
    %v2430 = vpow.pop %v2429
    %v2431 = vadd.f32 %v2430, 1.0
    %v2432 = vrcp.pop %v2431
    %v2433 = vmul.f32 1.0, %v2432
    %v2434 = vtanh.pop %v2427
    %v2436 = vrot.slane %v1983, 6
    %v2438 = vmul.f32 %v2433, %v2436
    %2440 = vrot.lane.b32.xlu0 %v2434, 64
    %v2441 = vpop.permute.xlu0 %2440
    %v2443 = vmul.f32 %v2433, %v2441
    %2445 = vrot.lane.b32.xlu0 %v2443, 32
    %v2446 = vpop.permute.xlu0 %2445
    %v2448 = vadd.f32 %v2438, %v2446
    %v2449 = vtanh.pop %v2448
    %2451 = vrot.lane.b32.xlu0 %v2449, 64
    %v2452 = vpop.permute.xlu0 %2451
    %v2454 = vmul.f32 %v2433, %v2452
    %2456 = vrot.lane.b32.xlu0 %v2454, 32
    %v2457 = vpop.permute.xlu0 %2456
    %vm2459 = vcmask 261126
    %2460 = vst.msk [vmem:[#allocation2] sm:$0xc0] %vm2459, %v2457
    %v2461 = vlaneseq
    %v2462 = vshrl.u32 %v2461, 7
    %v2463 = vsub.s32 %v818, %v2462
    %v2464 = vrot.slane %v2314, %v2463
    %v2465 = vlaneseq
    %v2466 = vshrl.u32 %v2465, 7
    %v2467 = vsub.s32 %v823, %v2466
    %v2468 = vrot.slane %v2319, %v2467
    %v2469 = vsel %vm828, %v2468, %v2464
    %v2470 = vlaneseq
    %v2471 = vshrl.u32 %v2470, 7
    %v2472 = vsub.s32 %v818, %v2471
    %v2473 = vrot.slane %v2324, %v2472
    %v2474 = vlaneseq
    %v2475 = vshrl.u32 %v2474, 7
    %v2476 = vsub.s32 %v823, %v2475
    %v2477 = vrot.slane %v2329, %v2476
    %v2478 = vsel %vm828, %v2477, %v2473
    %v2479 = vsel %vm329, %v2478, %v2469
    %s2481 = scalar_lea.vmem [#allocation32], 6
    %2482 = vst.msk [vmem:[%s2481] sm:$0x3] %vm841, %v2479
    %v2483 = vpack.c.bf16 %v2454, %v2454
    %v2484 = vld [vmem:[#allocation19] sm:$0xf]
    %v2485 = vld [vmem:[#allocation19 + $0x4] sm:$0xf]
    %v2486 = vld [vmem:[#allocation19 + $0x8] sm:$0xf]
    %v2487 = vld [vmem:[#allocation19 + $0xc] sm:$0xf]
    %v2489 = vrot.slane %v2483, 3
    %2490 = vrot.lane.b32.xlu0 %v2489, 32
    %v2491 = vpop.permute.xlu0 %2490
    %v2496 = vunpack.c.l.b16 %v2484
    %v2497 = vunpack.c.l.b16 %v2485
    %v2498 = vunpack.c.l.b16 %v2486
    %v2499 = vunpack.c.l.b16 %v2487
    %v2500 = vpack.c.b16 %v2497, %v2496
    %v2501 = vpack.c.b16 %v2499, %v2498
    %v2505 = vsel %vm290, %v2491, 0
    %2507 = vmatprep.subr.bf16.mxu0 0
    %2508 = vmatpush1.bf16.msra.mxu0 %v2500
    %2509 = vmatprep.subr.bf16.mxu0 0
    %2510 = vmatpush1.bf16.msra.mxu0 %v2501
    %2511 = vmatprep.subr.bf16.mxu0 0
    %2512 = vmatpush1.bf16.msra.mxu0 0
    %2513 = vmatprep.subr.bf16.mxu0 0
    %2514 = vmatpush1.bf16.msra.mxu0 0
    %2515 = vmatprep.subr.bf16.mxu0 0
    %2516 = vmatpush1.bf16.msra.mxu0 0
    %2517 = vmatprep.subr.bf16.mxu0 0
    %2518 = vmatpush1.bf16.msra.mxu0 0
    %2519 = vmatprep.subr.bf16.mxu0 0
    %2520 = vmatpush1.bf16.msra.mxu0 0
    %2521 = vmatprep.subr.bf16.mxu0 0
    %2522 = vmatpush1.bf16.msra.mxu0 0
    %2523 = vmatprep.subr.bf16.mxu0 0
    %2524 = vmatpush1.bf16.msra.mxu0 0
    %2525 = vmatprep.subr.bf16.mxu0 0
    %2526 = vmatpush1.bf16.msra.mxu0 0
    %2527 = vmatprep.subr.bf16.mxu0 0
    %2528 = vmatpush1.bf16.msra.mxu0 0
    %2529 = vmatprep.subr.bf16.mxu0 0
    %2530 = vmatpush1.bf16.msra.mxu0 0
    %2531 = vmatprep.subr.bf16.mxu0 0
    %2532 = vmatpush1.bf16.msra.mxu0 0
    %2533 = vmatprep.subr.bf16.mxu0 0
    %2534 = vmatpush1.bf16.msra.mxu0 0
    %2535 = vmatprep.subr.bf16.mxu0 0
    %2536 = vmatpush1.bf16.msra.mxu0 0
    %2537 = vmatprep.subr.bf16.mxu0 0
    %2538 = vmatpush1.bf16.msra.mxu0 0
    %2539 = vmatprep.mubr.bf16.mxu0 0
    %2540 = vmatmul.mubr.bf16.gmra.mrb[0].mxu0 %v2505
    %v2541 = vpop.f32.mrb[0].mxu0
    %v2542 = vadd.f32 0.0, %v2541
    %v2543 = vpop.f32.mrb[0].mxu0
    %v2544 = vpop.f32.mrb[0].mxu0
    %v2545 = vpop.f32.mrb[0].mxu0
    %2546 = vdwg.mxu0
    %v2547 = vld [vmem:[#allocation12] sm:$0xf]
    %v2548 = vld [vmem:[#allocation12 + $0x4] sm:$0xf]
    %v2549 = vld [vmem:[#allocation12 + $0x8] sm:$0xf]
    %v2550 = vld [vmem:[#allocation12 + $0xc] sm:$0xf]
    %v2551 = vld [vmem:[#allocation13] sm:$0x1]
    %v2553 = vlaneseq
    %v2554 = vshrl.u32 %v2553, 7
    %v2555 = vsub.s32 0, %v2554
    %v2556 = vrot.slane %v2551, %v2555
    %v2562 = vunpack.c.l.b16 %v2547
    %v2563 = vunpack.c.l.b16 %v2548
    %v2564 = vunpack.c.l.b16 %v2549
    %v2565 = vunpack.c.l.b16 %v2550
    %v2566 = vpack.c.b16 %v2563, %v2562
    %v2567 = vpack.c.b16 %v2565, %v2564
    %2570 = vmatprep.subr.bf16.mxu0 0
    %2571 = vmatpush1.bf16.msra.mxu0 %v2566
    %2572 = vmatprep.subr.bf16.mxu0 0
    %2573 = vmatpush1.bf16.msra.mxu0 %v2567
    %2574 = vmatprep.subr.bf16.mxu0 0
    %2575 = vmatpush1.bf16.msra.mxu0 0
    %2576 = vmatprep.subr.bf16.mxu0 0
    %2577 = vmatpush1.bf16.msra.mxu0 0
    %2578 = vmatprep.subr.bf16.mxu0 0
    %2579 = vmatpush1.bf16.msra.mxu0 0
    %2580 = vmatprep.subr.bf16.mxu0 0
    %2581 = vmatpush1.bf16.msra.mxu0 0
    %2582 = vmatprep.subr.bf16.mxu0 0
    %2583 = vmatpush1.bf16.msra.mxu0 0
    %2584 = vmatprep.subr.bf16.mxu0 0
    %2585 = vmatpush1.bf16.msra.mxu0 0
    %2586 = vmatprep.subr.bf16.mxu0 0
    %2587 = vmatpush1.bf16.msra.mxu0 0
    %2588 = vmatprep.subr.bf16.mxu0 0
    %2589 = vmatpush1.bf16.msra.mxu0 0
    %2590 = vmatprep.subr.bf16.mxu0 0
    %2591 = vmatpush1.bf16.msra.mxu0 0
    %2592 = vmatprep.subr.bf16.mxu0 0
    %2593 = vmatpush1.bf16.msra.mxu0 0
    %2594 = vmatprep.subr.bf16.mxu0 0
    %2595 = vmatpush1.bf16.msra.mxu0 0
    %2596 = vmatprep.subr.bf16.mxu0 0
    %2597 = vmatpush1.bf16.msra.mxu0 0
    %2598 = vmatprep.subr.bf16.mxu0 0
    %2599 = vmatpush1.bf16.msra.mxu0 0
    %2600 = vmatprep.subr.bf16.mxu0 0
    %2601 = vmatpush1.bf16.msra.mxu0 0
    %2602 = vmatprep.mubr.bf16.mxu0 0
    %2603 = vmatmul.mubr.bf16.gmra.mrb[0].mxu0 %v2505
    %v2604 = vpop.f32.mrb[0].mxu0
    %v2605 = vadd.f32 %v2556, %v2604
    %v2606 = vpop.f32.mrb[0].mxu0
    %v2607 = vpop.f32.mrb[0].mxu0
    %v2608 = vpop.f32.mrb[0].mxu0
    %2609 = vdwg.mxu0
    %v2612 = vunpack.c.l.s4 1966171168
    %v2613 = vunpack.c.0.s8 %v2612
    %v2614 = vlaneseq
    %v2615 = vshrl.u32 %v2614, 7
    %v2616 = vsub.s32 %v2613, %v2615
    %v2617 = vrot.slane %v2605, %v2616
    %v2618 = vcombine.high %v2617, %v2617
    %v2620 = vunpack.c.l.s4 1966171168
    %v2621 = vunpack.c.0.s8 %v2620
    %v2622 = vlaneseq
    %v2623 = vshrl.u32 %v2622, 7
    %v2624 = vsub.s32 %v2621, %v2623
    %v2625 = vrot.slane %v2617, %v2624
    %v2627 = vunpack.c.l.s4 1966171168
    %v2628 = vunpack.c.0.s8 %v2627
    %v2629 = vlaneseq
    %v2630 = vshrl.u32 %v2629, 7
    %v2631 = vsub.s32 %v2628, %v2630
    %v2632 = vrot.slane %v2618, %v2631
    %v2633 = vlaneseq
    %v2634 = vshrl.u32 %v2633, 7
    %v2635 = vsub.s32 0, %v2634
    %v2636 = vrot.slane %v2625, %v2635
    %v2637 = vlaneseq
    %v2638 = vshrl.u32 %v2637, 7
    %v2639 = vsub.s32 0, %v2638
    %v2640 = vrot.slane %v2632, %v2639
    %v2643 = vadd.f32 %v524, %v2636
    %v2644 = vadd.f32 %v527, %v2636
    %v2645 = vadd.f32 %v532, %v2640
    %v2646 = vadd.f32 %v535, %v2640
    %v2647 = vtanh.pop %v2643
    %v2648 = vtanh.pop %v2644
    %v2649 = vtanh.pop %v2645
    %v2650 = vtanh.pop %v2646
    %v2651 = vmul.f32 %v2647, %v782
    %v2652 = vmul.f32 %v2648, %v782
    %v2653 = vmul.f32 %v2649, %v782
    %v2654 = vmul.f32 %v2650, %v782
    %v2655 = vsel %vm290, %v2651, 0.0
    %2656 = vadd.xlane.f32.xlu0 %v2655
    %v2657 = vpop.xlane.xlu0 %2656
    %v2658 = vsel %vm290, %v2652, 0.0
    %2659 = vadd.xlane.f32.xlu0 %v2658
    %v2660 = vpop.xlane.xlu0 %2659
    %v2661 = vsel %vm290, %v2653, 0.0
    %2662 = vadd.xlane.f32.xlu0 %v2661
    %v2663 = vpop.xlane.xlu0 %2662
    %v2664 = vsel %vm290, %v2654, 0.0
    %2665 = vadd.xlane.f32.xlu0 %v2664
    %v2666 = vpop.xlane.xlu0 %2665
    %v2667 = vadd.f32 %v2657, %v807
    %v2668 = vadd.f32 %v2660, %v807
    %v2669 = vadd.f32 %v2663, %v807
    %v2670 = vadd.f32 %v2666, %v807
    %v2675 = vlaneseq
    %v2676 = vshrl.u32 %v2675, 7
    %v2677 = vsub.s32 %v818, %v2676
    %v2678 = vrot.slane %v2667, %v2677
    %v2679 = vlaneseq
    %v2680 = vshrl.u32 %v2679, 7
    %v2681 = vsub.s32 %v823, %v2680
    %v2682 = vrot.slane %v2668, %v2681
    %v2683 = vsel %vm828, %v2682, %v2678
    %v2684 = vlaneseq
    %v2685 = vshrl.u32 %v2684, 7
    %v2686 = vsub.s32 %v818, %v2685
    %v2687 = vrot.slane %v2669, %v2686
    %v2688 = vlaneseq
    %v2689 = vshrl.u32 %v2688, 7
    %v2690 = vsub.s32 %v823, %v2689
    %v2691 = vrot.slane %v2670, %v2690
    %v2692 = vsel %vm828, %v2691, %v2687
    %v2693 = vsel %vm329, %v2692, %v2683
    %v2695 = vsel %vm841, %v2693, -inf
    %2696 = vmax.xlane.f32.xlu0 %v2695
    %v2697 = vpop.xlane.xlu0 %2696
    %v2699 = vlaneseq
    %v2700 = vshrl.u32 %v2699, 7
    %v2701 = vsub.s32 0, %v2700
    %v2702 = vrot.slane %v2697, %v2701
    %v2703 = vlaneseq
    %v2704 = vshrl.u32 %v2703, 7
    %v2705 = vsub.s32 1, %v2704
    %v2706 = vrot.slane %v2697, %v2705
    %v2709 = vsub.f32 %v2667, %v2702
    %v2710 = vsub.f32 %v2668, %v2702
    %v2711 = vsub.f32 %v2669, %v2706
    %v2712 = vsub.f32 %v2670, %v2706
    %v2713 = vmul.f32 %v2709, 1.442695
    %v2714 = vpow.pop %v2713
    %v2715 = vmul.f32 %v2710, 1.442695
    %v2716 = vpow.pop %v2715
    %v2717 = vmul.f32 %v2711, 1.442695
    %v2718 = vpow.pop %v2717
    %v2719 = vmul.f32 %v2712, 1.442695
    %v2720 = vpow.pop %v2719
    %2725 = vset.pattern.permute.xlu0 0
    %2726 = vperm.xlu0 %2725, %v2714
    %v2727 = vpop.permute.xlu0 %2726
    %2728 = vset.pattern.permute.xlu0 0
    %2729 = vperm.xlu0 %2728, %v2716
    %v2730 = vpop.permute.xlu0 %2729
    %2731 = vset.pattern.permute.xlu0 0
    %2732 = vperm.xlu0 %2731, %v2718
    %v2733 = vpop.permute.xlu0 %2732
    %2734 = vset.pattern.permute.xlu0 0
    %2735 = vperm.xlu0 %2734, %v2720
    %v2736 = vpop.permute.xlu0 %2735
    %v2737 = vlaneseq
    %v2738 = vshrl.u32 %v2737, 7
    %v2739 = vsub.s32 %v818, %v2738
    %v2740 = vrot.slane %v2727, %v2739
    %v2741 = vlaneseq
    %v2742 = vshrl.u32 %v2741, 7
    %v2743 = vsub.s32 %v823, %v2742
    %v2744 = vrot.slane %v2730, %v2743
    %v2745 = vsel %vm828, %v2744, %v2740
    %v2746 = vlaneseq
    %v2747 = vshrl.u32 %v2746, 7
    %v2748 = vsub.s32 %v818, %v2747
    %v2749 = vrot.slane %v2733, %v2748
    %v2750 = vlaneseq
    %v2751 = vshrl.u32 %v2750, 7
    %v2752 = vsub.s32 %v823, %v2751
    %v2753 = vrot.slane %v2736, %v2752
    %v2754 = vsel %vm828, %v2753, %v2749
    %v2755 = vsel %vm329, %v2754, %v2745
    %v2757 = vsel %vm841, %v2755, 0.0
    %2758 = vadd.xlane.f32.xlu0 %v2757
    %v2759 = vpop.xlane.xlu0 %2758
    %v2760 = vrcp.pop %v2759
    %v2762 = vlaneseq
    %v2763 = vshrl.u32 %v2762, 7
    %v2764 = vsub.s32 0, %v2763
    %v2765 = vrot.slane %v2760, %v2764
    %v2766 = vlaneseq
    %v2767 = vshrl.u32 %v2766, 7
    %v2768 = vsub.s32 1, %v2767
    %v2769 = vrot.slane %v2760, %v2768
    %v2772 = vmul.f32 %v2714, %v2765
    %v2773 = vmul.f32 %v2716, %v2765
    %v2774 = vmul.f32 %v2718, %v2769
    %v2775 = vmul.f32 %v2720, %v2769
    %2777 = vset.pattern.permute.xlu0 0
    %2778 = vperm.xlu0 %2777, %v2772
    %v2779 = vpop.permute.xlu0 %2778
    %2782 = vset.pattern.permute.xlu0 0
    %2783 = vperm.xlu0 %2782, %v2773
    %v2784 = vpop.permute.xlu0 %2783
    %2787 = vset.pattern.permute.xlu0 0
    %2788 = vperm.xlu0 %2787, %v2774
    %v2789 = vpop.permute.xlu0 %2788
    %2792 = vset.pattern.permute.xlu0 0
    %2793 = vperm.xlu0 %2792, %v2775
    %v2794 = vpop.permute.xlu0 %2793
    %v2796 = vmul.f32 %v2779, %v286
    %v2797 = vmul.f32 %v2784, %v287
    %v2798 = vmul.f32 %v2789, %v288
    %v2799 = vmul.f32 %v2794, %v289
    %v2800 = vsel %vm290, %v2796, 0.0
    %v2801 = vsel %vm290, %v2797, 0.0
    %v2802 = vadd.f32 %v2800, %v2801
    %v2803 = vrot.slane %v2802, 4
    %v2804 = vadd.f32 %v2802, %v2803
    %v2805 = vrot.slane %v2804, 2
    %v2806 = vadd.f32 %v2804, %v2805
    %v2807 = vrot.slane %v2806, 1
    %v2808 = vadd.f32 %v2806, %v2807
    %v2809 = vsel %vm290, %v2798, 0.0
    %v2810 = vsel %vm290, %v2799, 0.0
    %v2811 = vadd.f32 %v2809, %v2810
    %v2812 = vrot.slane %v2811, 4
    %v2813 = vadd.f32 %v2811, %v2812
    %v2814 = vrot.slane %v2813, 2
    %v2815 = vadd.f32 %v2813, %v2814
    %v2816 = vrot.slane %v2815, 1
    %v2817 = vadd.f32 %v2815, %v2816
    %v2818 = vpack.c.bf16 %v2808, %v2808
    %v2819 = vpack.c.bf16 %v2817, %v2817
    %v2820 = vld [vmem:[#allocation18] sm:$0xf]
    %v2821 = vld [vmem:[#allocation18 + $0x4] sm:$0xf]
    %v2822 = vld [vmem:[#allocation18 + $0x8] sm:$0xf]
    %v2823 = vld [vmem:[#allocation18 + $0xc] sm:$0xf]
    %v2826 = vunpack.c.l.b16 %v2818
    %v2827 = vunpack.c.l.b16 %v2819
    %v2828 = vsel %vm329, %v2827, %v2826
    %v2829 = vpack.c.b16 %v2828, %v2828
    %v2834 = vunpack.c.l.b16 %v2820
    %v2835 = vunpack.c.l.b16 %v2821
    %v2836 = vunpack.c.l.b16 %v2822
    %v2837 = vunpack.c.l.b16 %v2823
    %v2838 = vpack.c.b16 %v2835, %v2834
    %v2839 = vpack.c.b16 %v2837, %v2836
    %v2843 = vsel %vm290, %v2829, 0
    %2845 = vmatprep.subr.bf16.mxu0 0
    %2846 = vmatpush1.bf16.msra.mxu0 %v2838
    %2847 = vmatprep.subr.bf16.mxu0 0
    %2848 = vmatpush1.bf16.msra.mxu0 %v2839
    %2849 = vmatprep.subr.bf16.mxu0 0
    %2850 = vmatpush1.bf16.msra.mxu0 0
    %2851 = vmatprep.subr.bf16.mxu0 0
    %2852 = vmatpush1.bf16.msra.mxu0 0
    %2853 = vmatprep.subr.bf16.mxu0 0
    %2854 = vmatpush1.bf16.msra.mxu0 0
    %2855 = vmatprep.subr.bf16.mxu0 0
    %2856 = vmatpush1.bf16.msra.mxu0 0
    %2857 = vmatprep.subr.bf16.mxu0 0
    %2858 = vmatpush1.bf16.msra.mxu0 0
    %2859 = vmatprep.subr.bf16.mxu0 0
    %2860 = vmatpush1.bf16.msra.mxu0 0
    %2861 = vmatprep.subr.bf16.mxu0 0
    %2862 = vmatpush1.bf16.msra.mxu0 0
    %2863 = vmatprep.subr.bf16.mxu0 0
    %2864 = vmatpush1.bf16.msra.mxu0 0
    %2865 = vmatprep.subr.bf16.mxu0 0
    %2866 = vmatpush1.bf16.msra.mxu0 0
    %2867 = vmatprep.subr.bf16.mxu0 0
    %2868 = vmatpush1.bf16.msra.mxu0 0
    %2869 = vmatprep.subr.bf16.mxu0 0
    %2870 = vmatpush1.bf16.msra.mxu0 0
    %2871 = vmatprep.subr.bf16.mxu0 0
    %2872 = vmatpush1.bf16.msra.mxu0 0
    %2873 = vmatprep.subr.bf16.mxu0 0
    %2874 = vmatpush1.bf16.msra.mxu0 0
    %2875 = vmatprep.subr.bf16.mxu0 0
    %2876 = vmatpush1.bf16.msra.mxu0 0
    %2877 = vmatprep.mubr.bf16.mxu0 0
    %2878 = vmatmul.mubr.bf16.gmra.mrb[0].mxu0 %v2843
    %v2879 = vpop.f32.mrb[0].mxu0
    %v2880 = vadd.f32 0.0, %v2879
    %v2881 = vpop.f32.mrb[0].mxu0
    %v2882 = vpop.f32.mrb[0].mxu0
    %v2883 = vpop.f32.mrb[0].mxu0
    %2884 = vdwg.mxu0
    %v2885 = vadd.f32 %v611, %v2542
    %v2886 = vadd.f32 %v2885, %v2880
    %v2887 = vxor.u32 %v2886, 2147483648
    %v2888 = vmul.f32 %v2887, 1.442695
    %v2889 = vpow.pop %v2888
    %v2890 = vadd.f32 %v2889, 1.0
    %v2891 = vrcp.pop %v2890
    %v2892 = vmul.f32 1.0, %v2891
    %v2893 = vtanh.pop %v2886
    %v2895 = vrot.slane %v2448, 6
    %v2897 = vmul.f32 %v2892, %v2895
    %2899 = vrot.lane.b32.xlu0 %v2893, 64
    %v2900 = vpop.permute.xlu0 %2899
    %v2902 = vmul.f32 %v2892, %v2900
    %2904 = vrot.lane.b32.xlu0 %v2902, 32
    %v2905 = vpop.permute.xlu0 %2904
    %v2907 = vadd.f32 %v2897, %v2905
    %v2908 = vtanh.pop %v2907
    %2910 = vrot.lane.b32.xlu0 %v2908, 64
    %v2911 = vpop.permute.xlu0 %2910
    %v2913 = vmul.f32 %v2892, %v2911
    %2915 = vrot.lane.b32.xlu0 %v2913, 32
    %v2916 = vpop.permute.xlu0 %2915
    %2918 = vst.msk [vmem:[#allocation2 + $0x8] sm:$0x3] %vm1066, %v2916
    %v2919 = vlaneseq
    %v2920 = vshrl.u32 %v2919, 7
    %v2921 = vsub.s32 %v818, %v2920
    %v2922 = vrot.slane %v2779, %v2921
    %v2923 = vlaneseq
    %v2924 = vshrl.u32 %v2923, 7
    %v2925 = vsub.s32 %v823, %v2924
    %v2926 = vrot.slane %v2784, %v2925
    %v2927 = vsel %vm828, %v2926, %v2922
    %v2928 = vlaneseq
    %v2929 = vshrl.u32 %v2928, 7
    %v2930 = vsub.s32 %v818, %v2929
    %v2931 = vrot.slane %v2789, %v2930
    %v2932 = vlaneseq
    %v2933 = vshrl.u32 %v2932, 7
    %v2934 = vsub.s32 %v823, %v2933
    %v2935 = vrot.slane %v2794, %v2934
    %v2936 = vsel %vm828, %v2935, %v2931
    %v2937 = vsel %vm329, %v2936, %v2927
    %s2939 = scalar_lea.vmem [#allocation32], 8
    %2940 = vst.msk [vmem:[%s2939] sm:$0x3] %vm841, %v2937
    %v2941 = vpack.c.bf16 %v2913, %v2913
    %v2942 = vld [vmem:[#allocation19] sm:$0xf]
    %v2943 = vld [vmem:[#allocation19 + $0x4] sm:$0xf]
    %v2944 = vld [vmem:[#allocation19 + $0x8] sm:$0xf]
    %v2945 = vld [vmem:[#allocation19 + $0xc] sm:$0xf]
    %2947 = vrot.lane.b32.xlu0 %v2941, 32
    %v2948 = vpop.permute.xlu0 %2947
    %v2953 = vunpack.c.l.b16 %v2942
    %v2954 = vunpack.c.l.b16 %v2943
    %v2955 = vunpack.c.l.b16 %v2944
    %v2956 = vunpack.c.l.b16 %v2945
    %v2957 = vpack.c.b16 %v2954, %v2953
    %v2958 = vpack.c.b16 %v2956, %v2955
    %v2962 = vsel %vm290, %v2948, 0
    %2964 = vmatprep.subr.bf16.mxu0 0
    %2965 = vmatpush1.bf16.msra.mxu0 %v2957
    %2966 = vmatprep.subr.bf16.mxu0 0
    %2967 = vmatpush1.bf16.msra.mxu0 %v2958
    %2968 = vmatprep.subr.bf16.mxu0 0
    %2969 = vmatpush1.bf16.msra.mxu0 0
    %2970 = vmatprep.subr.bf16.mxu0 0
    %2971 = vmatpush1.bf16.msra.mxu0 0
    %2972 = vmatprep.subr.bf16.mxu0 0
    %2973 = vmatpush1.bf16.msra.mxu0 0
    %2974 = vmatprep.subr.bf16.mxu0 0
    %2975 = vmatpush1.bf16.msra.mxu0 0
    %2976 = vmatprep.subr.bf16.mxu0 0
    %2977 = vmatpush1.bf16.msra.mxu0 0
    %2978 = vmatprep.subr.bf16.mxu0 0
    %2979 = vmatpush1.bf16.msra.mxu0 0
    %2980 = vmatprep.subr.bf16.mxu0 0
    %2981 = vmatpush1.bf16.msra.mxu0 0
    %2982 = vmatprep.subr.bf16.mxu0 0
    %2983 = vmatpush1.bf16.msra.mxu0 0
    %2984 = vmatprep.subr.bf16.mxu0 0
    %2985 = vmatpush1.bf16.msra.mxu0 0
    %2986 = vmatprep.subr.bf16.mxu0 0
    %2987 = vmatpush1.bf16.msra.mxu0 0
    %2988 = vmatprep.subr.bf16.mxu0 0
    %2989 = vmatpush1.bf16.msra.mxu0 0
    %2990 = vmatprep.subr.bf16.mxu0 0
    %2991 = vmatpush1.bf16.msra.mxu0 0
    %2992 = vmatprep.subr.bf16.mxu0 0
    %2993 = vmatpush1.bf16.msra.mxu0 0
    %2994 = vmatprep.subr.bf16.mxu0 0
    %2995 = vmatpush1.bf16.msra.mxu0 0
    %2996 = vmatprep.mubr.bf16.mxu0 0
    %2997 = vmatmul.mubr.bf16.gmra.mrb[0].mxu0 %v2962
    %v2998 = vpop.f32.mrb[0].mxu0
    %v2999 = vadd.f32 0.0, %v2998
    %v3000 = vpop.f32.mrb[0].mxu0
    %v3001 = vpop.f32.mrb[0].mxu0
    %v3002 = vpop.f32.mrb[0].mxu0
    %3003 = vdwg.mxu0
    %v3004 = vld [vmem:[#allocation12] sm:$0xf]
    %v3005 = vld [vmem:[#allocation12 + $0x4] sm:$0xf]
    %v3006 = vld [vmem:[#allocation12 + $0x8] sm:$0xf]
    %v3007 = vld [vmem:[#allocation12 + $0xc] sm:$0xf]
    %v3008 = vld [vmem:[#allocation13] sm:$0x1]
    %v3010 = vlaneseq
    %v3011 = vshrl.u32 %v3010, 7
    %v3012 = vsub.s32 0, %v3011
    %v3013 = vrot.slane %v3008, %v3012
    %v3019 = vunpack.c.l.b16 %v3004
    %v3020 = vunpack.c.l.b16 %v3005
    %v3021 = vunpack.c.l.b16 %v3006
    %v3022 = vunpack.c.l.b16 %v3007
    %v3023 = vpack.c.b16 %v3020, %v3019
    %v3024 = vpack.c.b16 %v3022, %v3021
    %3027 = vmatprep.subr.bf16.mxu0 0
    %3028 = vmatpush1.bf16.msra.mxu0 %v3023
    %3029 = vmatprep.subr.bf16.mxu0 0
    %3030 = vmatpush1.bf16.msra.mxu0 %v3024
    %3031 = vmatprep.subr.bf16.mxu0 0
    %3032 = vmatpush1.bf16.msra.mxu0 0
    %3033 = vmatprep.subr.bf16.mxu0 0
    %3034 = vmatpush1.bf16.msra.mxu0 0
    %3035 = vmatprep.subr.bf16.mxu0 0
    %3036 = vmatpush1.bf16.msra.mxu0 0
    %3037 = vmatprep.subr.bf16.mxu0 0
    %3038 = vmatpush1.bf16.msra.mxu0 0
    %3039 = vmatprep.subr.bf16.mxu0 0
    %3040 = vmatpush1.bf16.msra.mxu0 0
    %3041 = vmatprep.subr.bf16.mxu0 0
    %3042 = vmatpush1.bf16.msra.mxu0 0
    %3043 = vmatprep.subr.bf16.mxu0 0
    %3044 = vmatpush1.bf16.msra.mxu0 0
    %3045 = vmatprep.subr.bf16.mxu0 0
    %3046 = vmatpush1.bf16.msra.mxu0 0
    %3047 = vmatprep.subr.bf16.mxu0 0
    %3048 = vmatpush1.bf16.msra.mxu0 0
    %3049 = vmatprep.subr.bf16.mxu0 0
    %3050 = vmatpush1.bf16.msra.mxu0 0
    %3051 = vmatprep.subr.bf16.mxu0 0
    %3052 = vmatpush1.bf16.msra.mxu0 0
    %3053 = vmatprep.subr.bf16.mxu0 0
    %3054 = vmatpush1.bf16.msra.mxu0 0
    %3055 = vmatprep.subr.bf16.mxu0 0
    %3056 = vmatpush1.bf16.msra.mxu0 0
    %3057 = vmatprep.subr.bf16.mxu0 0
    %3058 = vmatpush1.bf16.msra.mxu0 0
    %3059 = vmatprep.mubr.bf16.mxu0 0
    %3060 = vmatmul.mubr.bf16.gmra.mrb[0].mxu0 %v2962
    %v3061 = vpop.f32.mrb[0].mxu0
    %v3062 = vadd.f32 %v3013, %v3061
    %v3063 = vpop.f32.mrb[0].mxu0
    %v3064 = vpop.f32.mrb[0].mxu0
    %v3065 = vpop.f32.mrb[0].mxu0
    %3066 = vdwg.mxu0
    %v3069 = vunpack.c.l.s4 1966171168
    %v3070 = vunpack.c.0.s8 %v3069
    %v3071 = vlaneseq
    %v3072 = vshrl.u32 %v3071, 7
    %v3073 = vsub.s32 %v3070, %v3072
    %v3074 = vrot.slane %v3062, %v3073
    %v3075 = vcombine.high %v3074, %v3074
    %v3077 = vunpack.c.l.s4 1966171168
    %v3078 = vunpack.c.0.s8 %v3077
    %v3079 = vlaneseq
    %v3080 = vshrl.u32 %v3079, 7
    %v3081 = vsub.s32 %v3078, %v3080
    %v3082 = vrot.slane %v3074, %v3081
    %v3084 = vunpack.c.l.s4 1966171168
    %v3085 = vunpack.c.0.s8 %v3084
    %v3086 = vlaneseq
    %v3087 = vshrl.u32 %v3086, 7
    %v3088 = vsub.s32 %v3085, %v3087
    %v3089 = vrot.slane %v3075, %v3088
    %v3090 = vlaneseq
    %v3091 = vshrl.u32 %v3090, 7
    %v3092 = vsub.s32 0, %v3091
    %v3093 = vrot.slane %v3082, %v3092
    %v3094 = vlaneseq
    %v3095 = vshrl.u32 %v3094, 7
    %v3096 = vsub.s32 0, %v3095
    %v3097 = vrot.slane %v3089, %v3096
    %v3100 = vadd.f32 %v524, %v3093
    %v3101 = vadd.f32 %v527, %v3093
    %v3102 = vadd.f32 %v532, %v3097
    %v3103 = vadd.f32 %v535, %v3097
    %v3104 = vtanh.pop %v3100
    %v3105 = vtanh.pop %v3101
    %v3106 = vtanh.pop %v3102
    %v3107 = vtanh.pop %v3103
    %v3108 = vmul.f32 %v3104, %v782
    %v3109 = vmul.f32 %v3105, %v782
    %v3110 = vmul.f32 %v3106, %v782
    %v3111 = vmul.f32 %v3107, %v782
    %v3112 = vsel %vm290, %v3108, 0.0
    %3113 = vadd.xlane.f32.xlu0 %v3112
    %v3114 = vpop.xlane.xlu0 %3113
    %v3115 = vsel %vm290, %v3109, 0.0
    %3116 = vadd.xlane.f32.xlu0 %v3115
    %v3117 = vpop.xlane.xlu0 %3116
    %v3118 = vsel %vm290, %v3110, 0.0
    %3119 = vadd.xlane.f32.xlu0 %v3118
    %v3120 = vpop.xlane.xlu0 %3119
    %v3121 = vsel %vm290, %v3111, 0.0
    %3122 = vadd.xlane.f32.xlu0 %v3121
    %v3123 = vpop.xlane.xlu0 %3122
    %v3124 = vadd.f32 %v3114, %v807
    %v3125 = vadd.f32 %v3117, %v807
    %v3126 = vadd.f32 %v3120, %v807
    %v3127 = vadd.f32 %v3123, %v807
    %v3132 = vlaneseq
    %v3133 = vshrl.u32 %v3132, 7
    %v3134 = vsub.s32 %v818, %v3133
    %v3135 = vrot.slane %v3124, %v3134
    %v3136 = vlaneseq
    %v3137 = vshrl.u32 %v3136, 7
    %v3138 = vsub.s32 %v823, %v3137
    %v3139 = vrot.slane %v3125, %v3138
    %v3140 = vsel %vm828, %v3139, %v3135
    %v3141 = vlaneseq
    %v3142 = vshrl.u32 %v3141, 7
    %v3143 = vsub.s32 %v818, %v3142
    %v3144 = vrot.slane %v3126, %v3143
    %v3145 = vlaneseq
    %v3146 = vshrl.u32 %v3145, 7
    %v3147 = vsub.s32 %v823, %v3146
    %v3148 = vrot.slane %v3127, %v3147
    %v3149 = vsel %vm828, %v3148, %v3144
    %v3150 = vsel %vm329, %v3149, %v3140
    %v3152 = vsel %vm841, %v3150, -inf
    %3153 = vmax.xlane.f32.xlu0 %v3152
    %v3154 = vpop.xlane.xlu0 %3153
    %v3156 = vlaneseq
    %v3157 = vshrl.u32 %v3156, 7
    %v3158 = vsub.s32 0, %v3157
    %v3159 = vrot.slane %v3154, %v3158
    %v3160 = vlaneseq
    %v3161 = vshrl.u32 %v3160, 7
    %v3162 = vsub.s32 1, %v3161
    %v3163 = vrot.slane %v3154, %v3162
    %v3166 = vsub.f32 %v3124, %v3159
    %v3167 = vsub.f32 %v3125, %v3159
    %v3168 = vsub.f32 %v3126, %v3163
    %v3169 = vsub.f32 %v3127, %v3163
    %v3170 = vmul.f32 %v3166, 1.442695
    %v3171 = vpow.pop %v3170
    %v3172 = vmul.f32 %v3167, 1.442695
    %v3173 = vpow.pop %v3172
    %v3174 = vmul.f32 %v3168, 1.442695
    %v3175 = vpow.pop %v3174
    %v3176 = vmul.f32 %v3169, 1.442695
    %v3177 = vpow.pop %v3176
    %3182 = vset.pattern.permute.xlu0 0
    %3183 = vperm.xlu0 %3182, %v3171
    %v3184 = vpop.permute.xlu0 %3183
    %3185 = vset.pattern.permute.xlu0 0
    %3186 = vperm.xlu0 %3185, %v3173
    %v3187 = vpop.permute.xlu0 %3186
    %3188 = vset.pattern.permute.xlu0 0
    %3189 = vperm.xlu0 %3188, %v3175
    %v3190 = vpop.permute.xlu0 %3189
    %3191 = vset.pattern.permute.xlu0 0
    %3192 = vperm.xlu0 %3191, %v3177
    %v3193 = vpop.permute.xlu0 %3192
    %v3194 = vlaneseq
    %v3195 = vshrl.u32 %v3194, 7
    %v3196 = vsub.s32 %v818, %v3195
    %v3197 = vrot.slane %v3184, %v3196
    %v3198 = vlaneseq
    %v3199 = vshrl.u32 %v3198, 7
    %v3200 = vsub.s32 %v823, %v3199
    %v3201 = vrot.slane %v3187, %v3200
    %v3202 = vsel %vm828, %v3201, %v3197
    %v3203 = vlaneseq
    %v3204 = vshrl.u32 %v3203, 7
    %v3205 = vsub.s32 %v818, %v3204
    %v3206 = vrot.slane %v3190, %v3205
    %v3207 = vlaneseq
    %v3208 = vshrl.u32 %v3207, 7
    %v3209 = vsub.s32 %v823, %v3208
    %v3210 = vrot.slane %v3193, %v3209
    %v3211 = vsel %vm828, %v3210, %v3206
    %v3212 = vsel %vm329, %v3211, %v3202
    %v3214 = vsel %vm841, %v3212, 0.0
    %3215 = vadd.xlane.f32.xlu0 %v3214
    %v3216 = vpop.xlane.xlu0 %3215
    %v3217 = vrcp.pop %v3216
    %v3219 = vlaneseq
    %v3220 = vshrl.u32 %v3219, 7
    %v3221 = vsub.s32 0, %v3220
    %v3222 = vrot.slane %v3217, %v3221
    %v3223 = vlaneseq
    %v3224 = vshrl.u32 %v3223, 7
    %v3225 = vsub.s32 1, %v3224
    %v3226 = vrot.slane %v3217, %v3225
    %v3229 = vmul.f32 %v3171, %v3222
    %v3230 = vmul.f32 %v3173, %v3222
    %v3231 = vmul.f32 %v3175, %v3226
    %v3232 = vmul.f32 %v3177, %v3226
    %3234 = vset.pattern.permute.xlu0 0
    %3235 = vperm.xlu0 %3234, %v3229
    %v3236 = vpop.permute.xlu0 %3235
    %3239 = vset.pattern.permute.xlu0 0
    %3240 = vperm.xlu0 %3239, %v3230
    %v3241 = vpop.permute.xlu0 %3240
    %3244 = vset.pattern.permute.xlu0 0
    %3245 = vperm.xlu0 %3244, %v3231
    %v3246 = vpop.permute.xlu0 %3245
    %3249 = vset.pattern.permute.xlu0 0
    %3250 = vperm.xlu0 %3249, %v3232
    %v3251 = vpop.permute.xlu0 %3250
    %v3253 = vmul.f32 %v3236, %v286
    %v3254 = vmul.f32 %v3241, %v287
    %v3255 = vmul.f32 %v3246, %v288
    %v3256 = vmul.f32 %v3251, %v289
    %v3257 = vsel %vm290, %v3253, 0.0
    %v3258 = vsel %vm290, %v3254, 0.0
    %v3259 = vadd.f32 %v3257, %v3258
    %v3260 = vrot.slane %v3259, 4
    %v3261 = vadd.f32 %v3259, %v3260
    %v3262 = vrot.slane %v3261, 2
    %v3263 = vadd.f32 %v3261, %v3262
    %v3264 = vrot.slane %v3263, 1
    %v3265 = vadd.f32 %v3263, %v3264
    %v3266 = vsel %vm290, %v3255, 0.0
    %v3267 = vsel %vm290, %v3256, 0.0
    %v3268 = vadd.f32 %v3266, %v3267
    %v3269 = vrot.slane %v3268, 4
    %v3270 = vadd.f32 %v3268, %v3269
    %v3271 = vrot.slane %v3270, 2
    %v3272 = vadd.f32 %v3270, %v3271
    %v3273 = vrot.slane %v3272, 1
    %v3274 = vadd.f32 %v3272, %v3273
    %v3275 = vpack.c.bf16 %v3265, %v3265
    %v3276 = vpack.c.bf16 %v3274, %v3274
    %v3277 = vld [vmem:[#allocation18] sm:$0xf]
    %v3278 = vld [vmem:[#allocation18 + $0x4] sm:$0xf]
    %v3279 = vld [vmem:[#allocation18 + $0x8] sm:$0xf]
    %v3280 = vld [vmem:[#allocation18 + $0xc] sm:$0xf]
    %v3283 = vunpack.c.l.b16 %v3275
    %v3284 = vunpack.c.l.b16 %v3276
    %v3285 = vsel %vm329, %v3284, %v3283
    %v3286 = vpack.c.b16 %v3285, %v3285
    %v3291 = vunpack.c.l.b16 %v3277
    %v3292 = vunpack.c.l.b16 %v3278
    %v3293 = vunpack.c.l.b16 %v3279
    %v3294 = vunpack.c.l.b16 %v3280
    %v3295 = vpack.c.b16 %v3292, %v3291
    %v3296 = vpack.c.b16 %v3294, %v3293
    %v3300 = vsel %vm290, %v3286, 0
    %3302 = vmatprep.subr.bf16.mxu0 0
    %3303 = vmatpush1.bf16.msra.mxu0 %v3295
    %3304 = vmatprep.subr.bf16.mxu0 0
    %3305 = vmatpush1.bf16.msra.mxu0 %v3296
    %3306 = vmatprep.subr.bf16.mxu0 0
    %3307 = vmatpush1.bf16.msra.mxu0 0
    %3308 = vmatprep.subr.bf16.mxu0 0
    %3309 = vmatpush1.bf16.msra.mxu0 0
    %3310 = vmatprep.subr.bf16.mxu0 0
    %3311 = vmatpush1.bf16.msra.mxu0 0
    %3312 = vmatprep.subr.bf16.mxu0 0
    %3313 = vmatpush1.bf16.msra.mxu0 0
    %3314 = vmatprep.subr.bf16.mxu0 0
    %3315 = vmatpush1.bf16.msra.mxu0 0
    %3316 = vmatprep.subr.bf16.mxu0 0
    %3317 = vmatpush1.bf16.msra.mxu0 0
    %3318 = vmatprep.subr.bf16.mxu0 0
    %3319 = vmatpush1.bf16.msra.mxu0 0
    %3320 = vmatprep.subr.bf16.mxu0 0
    %3321 = vmatpush1.bf16.msra.mxu0 0
    %3322 = vmatprep.subr.bf16.mxu0 0
    %3323 = vmatpush1.bf16.msra.mxu0 0
    %3324 = vmatprep.subr.bf16.mxu0 0
    %3325 = vmatpush1.bf16.msra.mxu0 0
    %3326 = vmatprep.subr.bf16.mxu0 0
    %3327 = vmatpush1.bf16.msra.mxu0 0
    %3328 = vmatprep.subr.bf16.mxu0 0
    %3329 = vmatpush1.bf16.msra.mxu0 0
    %3330 = vmatprep.subr.bf16.mxu0 0
    %3331 = vmatpush1.bf16.msra.mxu0 0
    %3332 = vmatprep.subr.bf16.mxu0 0
    %3333 = vmatpush1.bf16.msra.mxu0 0
    %3334 = vmatprep.mubr.bf16.mxu0 0
    %3335 = vmatmul.mubr.bf16.gmra.mrb[0].mxu0 %v3300
    %v3336 = vpop.f32.mrb[0].mxu0
    %v3337 = vadd.f32 0.0, %v3336
    %v3338 = vpop.f32.mrb[0].mxu0
    %v3339 = vpop.f32.mrb[0].mxu0
    %v3340 = vpop.f32.mrb[0].mxu0
    %3341 = vdwg.mxu0
    %v3343 = vrot.slane %v2999, 6
    %v3345 = vadd.f32 %v611, %v3343
    %v3347 = vrot.slane %v3337, 6
    %v3349 = vadd.f32 %v3345, %v3347
    %v3350 = vxor.u32 %v3349, 2147483648
    %v3351 = vmul.f32 %v3350, 1.442695
    %v3352 = vpow.pop %v3351
    %v3353 = vadd.f32 %v3352, 1.0
    %v3354 = vrcp.pop %v3353
    %v3355 = vmul.f32 1.0, %v3354
    %v3356 = vtanh.pop %v3349
    %v3358 = vrot.slane %v2907, 6
    %v3360 = vmul.f32 %v3355, %v3358
    %3362 = vrot.lane.b32.xlu0 %v3356, 64
    %v3363 = vpop.permute.xlu0 %3362
    %v3365 = vmul.f32 %v3355, %v3363
    %3367 = vrot.lane.b32.xlu0 %v3365, 32
    %v3368 = vpop.permute.xlu0 %3367
    %v3370 = vadd.f32 %v3360, %v3368
    %v3371 = vtanh.pop %v3370
    %3373 = vrot.lane.b32.xlu0 %v3371, 64
    %v3374 = vpop.permute.xlu0 %3373
    %v3376 = vmul.f32 %v3355, %v3374
    %3378 = vrot.lane.b32.xlu0 %v3376, 32
    %v3379 = vpop.permute.xlu0 %3378
    %3381 = vst.msk [vmem:[#allocation2 + $0x8] sm:$0xc] %vm1529, %v3379
    %v3382 = vlaneseq
    %v3383 = vshrl.u32 %v3382, 7
    %v3384 = vsub.s32 %v818, %v3383
    %v3385 = vrot.slane %v3236, %v3384
    %v3386 = vlaneseq
    %v3387 = vshrl.u32 %v3386, 7
    %v3388 = vsub.s32 %v823, %v3387
    %v3389 = vrot.slane %v3241, %v3388
    %v3390 = vsel %vm828, %v3389, %v3385
    %v3391 = vlaneseq
    %v3392 = vshrl.u32 %v3391, 7
    %v3393 = vsub.s32 %v818, %v3392
    %v3394 = vrot.slane %v3246, %v3393
    %v3395 = vlaneseq
    %v3396 = vshrl.u32 %v3395, 7
    %v3397 = vsub.s32 %v823, %v3396
    %v3398 = vrot.slane %v3251, %v3397
    %v3399 = vsel %vm828, %v3398, %v3394
    %v3400 = vsel %vm329, %v3399, %v3390
    %s3402 = scalar_lea.vmem [#allocation32], 10
    %3403 = vst.msk [vmem:[%s3402] sm:$0x3] %vm841, %v3400
    %v3404 = vpack.c.bf16 %v3376, %v3376
    %v3405 = vld [vmem:[#allocation19] sm:$0xf]
    %v3406 = vld [vmem:[#allocation19 + $0x4] sm:$0xf]
    %v3407 = vld [vmem:[#allocation19 + $0x8] sm:$0xf]
    %v3408 = vld [vmem:[#allocation19 + $0xc] sm:$0xf]
    %v3410 = vrot.slane %v3404, 1
    %3411 = vrot.lane.b32.xlu0 %v3410, 32
    %v3412 = vpop.permute.xlu0 %3411
    %v3417 = vunpack.c.l.b16 %v3405
    %v3418 = vunpack.c.l.b16 %v3406
    %v3419 = vunpack.c.l.b16 %v3407
    %v3420 = vunpack.c.l.b16 %v3408
    %v3421 = vpack.c.b16 %v3418, %v3417
    %v3422 = vpack.c.b16 %v3420, %v3419
    %v3426 = vsel %vm290, %v3412, 0
    %3428 = vmatprep.subr.bf16.mxu0 0
    %3429 = vmatpush1.bf16.msra.mxu0 %v3421
    %3430 = vmatprep.subr.bf16.mxu0 0
    %3431 = vmatpush1.bf16.msra.mxu0 %v3422
    %3432 = vmatprep.subr.bf16.mxu0 0
    %3433 = vmatpush1.bf16.msra.mxu0 0
    %3434 = vmatprep.subr.bf16.mxu0 0
    %3435 = vmatpush1.bf16.msra.mxu0 0
    %3436 = vmatprep.subr.bf16.mxu0 0
    %3437 = vmatpush1.bf16.msra.mxu0 0
    %3438 = vmatprep.subr.bf16.mxu0 0
    %3439 = vmatpush1.bf16.msra.mxu0 0
    %3440 = vmatprep.subr.bf16.mxu0 0
    %3441 = vmatpush1.bf16.msra.mxu0 0
    %3442 = vmatprep.subr.bf16.mxu0 0
    %3443 = vmatpush1.bf16.msra.mxu0 0
    %3444 = vmatprep.subr.bf16.mxu0 0
    %3445 = vmatpush1.bf16.msra.mxu0 0
    %3446 = vmatprep.subr.bf16.mxu0 0
    %3447 = vmatpush1.bf16.msra.mxu0 0
    %3448 = vmatprep.subr.bf16.mxu0 0
    %3449 = vmatpush1.bf16.msra.mxu0 0
    %3450 = vmatprep.subr.bf16.mxu0 0
    %3451 = vmatpush1.bf16.msra.mxu0 0
    %3452 = vmatprep.subr.bf16.mxu0 0
    %3453 = vmatpush1.bf16.msra.mxu0 0
    %3454 = vmatprep.subr.bf16.mxu0 0
    %3455 = vmatpush1.bf16.msra.mxu0 0
    %3456 = vmatprep.subr.bf16.mxu0 0
    %3457 = vmatpush1.bf16.msra.mxu0 0
    %3458 = vmatprep.subr.bf16.mxu0 0
    %3459 = vmatpush1.bf16.msra.mxu0 0
    %3460 = vmatprep.mubr.bf16.mxu0 0
    %3461 = vmatmul.mubr.bf16.gmra.mrb[0].mxu0 %v3426
    %v3462 = vpop.f32.mrb[0].mxu0
    %v3463 = vadd.f32 0.0, %v3462
    %v3464 = vpop.f32.mrb[0].mxu0
    %v3465 = vpop.f32.mrb[0].mxu0
    %v3466 = vpop.f32.mrb[0].mxu0
    %3467 = vdwg.mxu0
    %v3468 = vld [vmem:[#allocation12] sm:$0xf]
    %v3469 = vld [vmem:[#allocation12 + $0x4] sm:$0xf]
    %v3470 = vld [vmem:[#allocation12 + $0x8] sm:$0xf]
    %v3471 = vld [vmem:[#allocation12 + $0xc] sm:$0xf]
    %v3472 = vld [vmem:[#allocation13] sm:$0x1]
    %v3474 = vlaneseq
    %v3475 = vshrl.u32 %v3474, 7
    %v3476 = vsub.s32 0, %v3475
    %v3477 = vrot.slane %v3472, %v3476
    %v3483 = vunpack.c.l.b16 %v3468
    %v3484 = vunpack.c.l.b16 %v3469
    %v3485 = vunpack.c.l.b16 %v3470
    %v3486 = vunpack.c.l.b16 %v3471
    %v3487 = vpack.c.b16 %v3484, %v3483
    %v3488 = vpack.c.b16 %v3486, %v3485
    %3491 = vmatprep.subr.bf16.mxu0 0
    %3492 = vmatpush1.bf16.msra.mxu0 %v3487
    %3493 = vmatprep.subr.bf16.mxu0 0
    %3494 = vmatpush1.bf16.msra.mxu0 %v3488
    %3495 = vmatprep.subr.bf16.mxu0 0
    %3496 = vmatpush1.bf16.msra.mxu0 0
    %3497 = vmatprep.subr.bf16.mxu0 0
    %3498 = vmatpush1.bf16.msra.mxu0 0
    %3499 = vmatprep.subr.bf16.mxu0 0
    %3500 = vmatpush1.bf16.msra.mxu0 0
    %3501 = vmatprep.subr.bf16.mxu0 0
    %3502 = vmatpush1.bf16.msra.mxu0 0
    %3503 = vmatprep.subr.bf16.mxu0 0
    %3504 = vmatpush1.bf16.msra.mxu0 0
    %3505 = vmatprep.subr.bf16.mxu0 0
    %3506 = vmatpush1.bf16.msra.mxu0 0
    %3507 = vmatprep.subr.bf16.mxu0 0
    %3508 = vmatpush1.bf16.msra.mxu0 0
    %3509 = vmatprep.subr.bf16.mxu0 0
    %3510 = vmatpush1.bf16.msra.mxu0 0
    %3511 = vmatprep.subr.bf16.mxu0 0
    %3512 = vmatpush1.bf16.msra.mxu0 0
    %3513 = vmatprep.subr.bf16.mxu0 0
    %3514 = vmatpush1.bf16.msra.mxu0 0
    %3515 = vmatprep.subr.bf16.mxu0 0
    %3516 = vmatpush1.bf16.msra.mxu0 0
    %3517 = vmatprep.subr.bf16.mxu0 0
    %3518 = vmatpush1.bf16.msra.mxu0 0
    %3519 = vmatprep.subr.bf16.mxu0 0
    %3520 = vmatpush1.bf16.msra.mxu0 0
    %3521 = vmatprep.subr.bf16.mxu0 0
    %3522 = vmatpush1.bf16.msra.mxu0 0
    %3523 = vmatprep.mubr.bf16.mxu0 0
    %3524 = vmatmul.mubr.bf16.gmra.mrb[0].mxu0 %v3426
    %v3525 = vpop.f32.mrb[0].mxu0
    %v3526 = vadd.f32 %v3477, %v3525
    %v3527 = vpop.f32.mrb[0].mxu0
    %v3528 = vpop.f32.mrb[0].mxu0
    %v3529 = vpop.f32.mrb[0].mxu0
    %3530 = vdwg.mxu0
    %v3533 = vunpack.c.l.s4 1966171168
    %v3534 = vunpack.c.0.s8 %v3533
    %v3535 = vlaneseq
    %v3536 = vshrl.u32 %v3535, 7
    %v3537 = vsub.s32 %v3534, %v3536
    %v3538 = vrot.slane %v3526, %v3537
    %v3539 = vcombine.high %v3538, %v3538
    %v3541 = vunpack.c.l.s4 1966171168
    %v3542 = vunpack.c.0.s8 %v3541
    %v3543 = vlaneseq
    %v3544 = vshrl.u32 %v3543, 7
    %v3545 = vsub.s32 %v3542, %v3544
    %v3546 = vrot.slane %v3538, %v3545
    %v3548 = vunpack.c.l.s4 1966171168
    %v3549 = vunpack.c.0.s8 %v3548
    %v3550 = vlaneseq
    %v3551 = vshrl.u32 %v3550, 7
    %v3552 = vsub.s32 %v3549, %v3551
    %v3553 = vrot.slane %v3539, %v3552
    %v3554 = vlaneseq
    %v3555 = vshrl.u32 %v3554, 7
    %v3556 = vsub.s32 0, %v3555
    %v3557 = vrot.slane %v3546, %v3556
    %v3558 = vlaneseq
    %v3559 = vshrl.u32 %v3558, 7
    %v3560 = vsub.s32 0, %v3559
    %v3561 = vrot.slane %v3553, %v3560
    %v3564 = vadd.f32 %v524, %v3557
    %v3565 = vadd.f32 %v527, %v3557
    %v3566 = vadd.f32 %v532, %v3561
    %v3567 = vadd.f32 %v535, %v3561
    %v3568 = vtanh.pop %v3564
    %v3569 = vtanh.pop %v3565
    %v3570 = vtanh.pop %v3566
    %v3571 = vtanh.pop %v3567
    %v3572 = vmul.f32 %v3568, %v782
    %v3573 = vmul.f32 %v3569, %v782
    %v3574 = vmul.f32 %v3570, %v782
    %v3575 = vmul.f32 %v3571, %v782
    %v3576 = vsel %vm290, %v3572, 0.0
    %3577 = vadd.xlane.f32.xlu0 %v3576
    %v3578 = vpop.xlane.xlu0 %3577
    %v3579 = vsel %vm290, %v3573, 0.0
    %3580 = vadd.xlane.f32.xlu0 %v3579
    %v3581 = vpop.xlane.xlu0 %3580
    %v3582 = vsel %vm290, %v3574, 0.0
    %3583 = vadd.xlane.f32.xlu0 %v3582
    %v3584 = vpop.xlane.xlu0 %3583
    %v3585 = vsel %vm290, %v3575, 0.0
    %3586 = vadd.xlane.f32.xlu0 %v3585
    %v3587 = vpop.xlane.xlu0 %3586
    %v3588 = vadd.f32 %v3578, %v807
    %v3589 = vadd.f32 %v3581, %v807
    %v3590 = vadd.f32 %v3584, %v807
    %v3591 = vadd.f32 %v3587, %v807
    %v3596 = vlaneseq
    %v3597 = vshrl.u32 %v3596, 7
    %v3598 = vsub.s32 %v818, %v3597
    %v3599 = vrot.slane %v3588, %v3598
    %v3600 = vlaneseq
    %v3601 = vshrl.u32 %v3600, 7
    %v3602 = vsub.s32 %v823, %v3601
    %v3603 = vrot.slane %v3589, %v3602
    %v3604 = vsel %vm828, %v3603, %v3599
    %v3605 = vlaneseq
    %v3606 = vshrl.u32 %v3605, 7
    %v3607 = vsub.s32 %v818, %v3606
    %v3608 = vrot.slane %v3590, %v3607
    %v3609 = vlaneseq
    %v3610 = vshrl.u32 %v3609, 7
    %v3611 = vsub.s32 %v823, %v3610
    %v3612 = vrot.slane %v3591, %v3611
    %v3613 = vsel %vm828, %v3612, %v3608
    %v3614 = vsel %vm329, %v3613, %v3604
    %v3616 = vsel %vm841, %v3614, -inf
    %3617 = vmax.xlane.f32.xlu0 %v3616
    %v3618 = vpop.xlane.xlu0 %3617
    %v3620 = vlaneseq
    %v3621 = vshrl.u32 %v3620, 7
    %v3622 = vsub.s32 0, %v3621
    %v3623 = vrot.slane %v3618, %v3622
    %v3624 = vlaneseq
    %v3625 = vshrl.u32 %v3624, 7
    %v3626 = vsub.s32 1, %v3625
    %v3627 = vrot.slane %v3618, %v3626
    %v3630 = vsub.f32 %v3588, %v3623
    %v3631 = vsub.f32 %v3589, %v3623
    %v3632 = vsub.f32 %v3590, %v3627
    %v3633 = vsub.f32 %v3591, %v3627
    %v3634 = vmul.f32 %v3630, 1.442695
    %v3635 = vpow.pop %v3634
    %v3636 = vmul.f32 %v3631, 1.442695
    %v3637 = vpow.pop %v3636
    %v3638 = vmul.f32 %v3632, 1.442695
    %v3639 = vpow.pop %v3638
    %v3640 = vmul.f32 %v3633, 1.442695
    %v3641 = vpow.pop %v3640
    %3646 = vset.pattern.permute.xlu0 0
    %3647 = vperm.xlu0 %3646, %v3635
    %v3648 = vpop.permute.xlu0 %3647
    %3649 = vset.pattern.permute.xlu0 0
    %3650 = vperm.xlu0 %3649, %v3637
    %v3651 = vpop.permute.xlu0 %3650
    %3652 = vset.pattern.permute.xlu0 0
    %3653 = vperm.xlu0 %3652, %v3639
    %v3654 = vpop.permute.xlu0 %3653
    %3655 = vset.pattern.permute.xlu0 0
    %3656 = vperm.xlu0 %3655, %v3641
    %v3657 = vpop.permute.xlu0 %3656
    %v3658 = vlaneseq
    %v3659 = vshrl.u32 %v3658, 7
    %v3660 = vsub.s32 %v818, %v3659
    %v3661 = vrot.slane %v3648, %v3660
    %v3662 = vlaneseq
    %v3663 = vshrl.u32 %v3662, 7
    %v3664 = vsub.s32 %v823, %v3663
    %v3665 = vrot.slane %v3651, %v3664
    %v3666 = vsel %vm828, %v3665, %v3661
    %v3667 = vlaneseq
    %v3668 = vshrl.u32 %v3667, 7
    %v3669 = vsub.s32 %v818, %v3668
    %v3670 = vrot.slane %v3654, %v3669
    %v3671 = vlaneseq
    %v3672 = vshrl.u32 %v3671, 7
    %v3673 = vsub.s32 %v823, %v3672
    %v3674 = vrot.slane %v3657, %v3673
    %v3675 = vsel %vm828, %v3674, %v3670
    %v3676 = vsel %vm329, %v3675, %v3666
    %v3678 = vsel %vm841, %v3676, 0.0
    %3679 = vadd.xlane.f32.xlu0 %v3678
    %v3680 = vpop.xlane.xlu0 %3679
    %v3681 = vrcp.pop %v3680
    %v3683 = vlaneseq
    %v3684 = vshrl.u32 %v3683, 7
    %v3685 = vsub.s32 0, %v3684
    %v3686 = vrot.slane %v3681, %v3685
    %v3687 = vlaneseq
    %v3688 = vshrl.u32 %v3687, 7
    %v3689 = vsub.s32 1, %v3688
    %v3690 = vrot.slane %v3681, %v3689
    %v3693 = vmul.f32 %v3635, %v3686
    %v3694 = vmul.f32 %v3637, %v3686
    %v3695 = vmul.f32 %v3639, %v3690
    %v3696 = vmul.f32 %v3641, %v3690
    %3698 = vset.pattern.permute.xlu0 0
    %3699 = vperm.xlu0 %3698, %v3693
    %v3700 = vpop.permute.xlu0 %3699
    %3703 = vset.pattern.permute.xlu0 0
    %3704 = vperm.xlu0 %3703, %v3694
    %v3705 = vpop.permute.xlu0 %3704
    %3708 = vset.pattern.permute.xlu0 0
    %3709 = vperm.xlu0 %3708, %v3695
    %v3710 = vpop.permute.xlu0 %3709
    %3713 = vset.pattern.permute.xlu0 0
    %3714 = vperm.xlu0 %3713, %v3696
    %v3715 = vpop.permute.xlu0 %3714
    %v3717 = vmul.f32 %v3700, %v286
    %v3718 = vmul.f32 %v3705, %v287
    %v3719 = vmul.f32 %v3710, %v288
    %v3720 = vmul.f32 %v3715, %v289
    %v3721 = vsel %vm290, %v3717, 0.0
    %v3722 = vsel %vm290, %v3718, 0.0
    %v3723 = vadd.f32 %v3721, %v3722
    %v3724 = vrot.slane %v3723, 4
    %v3725 = vadd.f32 %v3723, %v3724
    %v3726 = vrot.slane %v3725, 2
    %v3727 = vadd.f32 %v3725, %v3726
    %v3728 = vrot.slane %v3727, 1
    %v3729 = vadd.f32 %v3727, %v3728
    %v3730 = vsel %vm290, %v3719, 0.0
    %v3731 = vsel %vm290, %v3720, 0.0
    %v3732 = vadd.f32 %v3730, %v3731
    %v3733 = vrot.slane %v3732, 4
    %v3734 = vadd.f32 %v3732, %v3733
    %v3735 = vrot.slane %v3734, 2
    %v3736 = vadd.f32 %v3734, %v3735
    %v3737 = vrot.slane %v3736, 1
    %v3738 = vadd.f32 %v3736, %v3737
    %v3739 = vpack.c.bf16 %v3729, %v3729
    %v3740 = vpack.c.bf16 %v3738, %v3738
    %v3741 = vld [vmem:[#allocation18] sm:$0xf]
    %v3742 = vld [vmem:[#allocation18 + $0x4] sm:$0xf]
    %v3743 = vld [vmem:[#allocation18 + $0x8] sm:$0xf]
    %v3744 = vld [vmem:[#allocation18 + $0xc] sm:$0xf]
    %v3747 = vunpack.c.l.b16 %v3739
    %v3748 = vunpack.c.l.b16 %v3740
    %v3749 = vsel %vm329, %v3748, %v3747
    %v3750 = vpack.c.b16 %v3749, %v3749
    %v3755 = vunpack.c.l.b16 %v3741
    %v3756 = vunpack.c.l.b16 %v3742
    %v3757 = vunpack.c.l.b16 %v3743
    %v3758 = vunpack.c.l.b16 %v3744
    %v3759 = vpack.c.b16 %v3756, %v3755
    %v3760 = vpack.c.b16 %v3758, %v3757
    %v3764 = vsel %vm290, %v3750, 0
    %3766 = vmatprep.subr.bf16.mxu0 0
    %3767 = vmatpush1.bf16.msra.mxu0 %v3759
    %3768 = vmatprep.subr.bf16.mxu0 0
    %3769 = vmatpush1.bf16.msra.mxu0 %v3760
    %3770 = vmatprep.subr.bf16.mxu0 0
    %3771 = vmatpush1.bf16.msra.mxu0 0
    %3772 = vmatprep.subr.bf16.mxu0 0
    %3773 = vmatpush1.bf16.msra.mxu0 0
    %3774 = vmatprep.subr.bf16.mxu0 0
    %3775 = vmatpush1.bf16.msra.mxu0 0
    %3776 = vmatprep.subr.bf16.mxu0 0
    %3777 = vmatpush1.bf16.msra.mxu0 0
    %3778 = vmatprep.subr.bf16.mxu0 0
    %3779 = vmatpush1.bf16.msra.mxu0 0
    %3780 = vmatprep.subr.bf16.mxu0 0
    %3781 = vmatpush1.bf16.msra.mxu0 0
    %3782 = vmatprep.subr.bf16.mxu0 0
    %3783 = vmatpush1.bf16.msra.mxu0 0
    %3784 = vmatprep.subr.bf16.mxu0 0
    %3785 = vmatpush1.bf16.msra.mxu0 0
    %3786 = vmatprep.subr.bf16.mxu0 0
    %3787 = vmatpush1.bf16.msra.mxu0 0
    %3788 = vmatprep.subr.bf16.mxu0 0
    %3789 = vmatpush1.bf16.msra.mxu0 0
    %3790 = vmatprep.subr.bf16.mxu0 0
    %3791 = vmatpush1.bf16.msra.mxu0 0
    %3792 = vmatprep.subr.bf16.mxu0 0
    %3793 = vmatpush1.bf16.msra.mxu0 0
    %3794 = vmatprep.subr.bf16.mxu0 0
    %3795 = vmatpush1.bf16.msra.mxu0 0
    %3796 = vmatprep.subr.bf16.mxu0 0
    %3797 = vmatpush1.bf16.msra.mxu0 0
    %3798 = vmatprep.mubr.bf16.mxu0 0
    %3799 = vmatmul.mubr.bf16.gmra.mrb[0].mxu0 %v3764
    %v3800 = vpop.f32.mrb[0].mxu0
    %v3801 = vadd.f32 0.0, %v3800
    %v3802 = vpop.f32.mrb[0].mxu0
    %v3803 = vpop.f32.mrb[0].mxu0
    %v3804 = vpop.f32.mrb[0].mxu0
    %3805 = vdwg.mxu0
    %v3807 = vrot.slane %v3463, 4
    %v3809 = vadd.f32 %v611, %v3807
    %v3811 = vrot.slane %v3801, 4
    %v3813 = vadd.f32 %v3809, %v3811
    %v3814 = vxor.u32 %v3813, 2147483648
    %v3815 = vmul.f32 %v3814, 1.442695
    %v3816 = vpow.pop %v3815
    %v3817 = vadd.f32 %v3816, 1.0
    %v3818 = vrcp.pop %v3817
    %v3819 = vmul.f32 1.0, %v3818
    %v3820 = vtanh.pop %v3813
    %v3822 = vrot.slane %v3370, 6
    %v3824 = vmul.f32 %v3819, %v3822
    %3826 = vrot.lane.b32.xlu0 %v3820, 64
    %v3827 = vpop.permute.xlu0 %3826
    %v3829 = vmul.f32 %v3819, %v3827
    %3831 = vrot.lane.b32.xlu0 %v3829, 32
    %v3832 = vpop.permute.xlu0 %3831
    %v3834 = vadd.f32 %v3824, %v3832
    %v3835 = vtanh.pop %v3834
    %3837 = vrot.lane.b32.xlu0 %v3835, 64
    %v3838 = vpop.permute.xlu0 %3837
    %v3840 = vmul.f32 %v3819, %v3838
    %3842 = vrot.lane.b32.xlu0 %v3840, 32
    %v3843 = vpop.permute.xlu0 %3842
    %3845 = vst.msk [vmem:[#allocation2 + $0x8] sm:$0x30] %vm1994, %v3843
    %v3846 = vlaneseq
    %v3847 = vshrl.u32 %v3846, 7
    %v3848 = vsub.s32 %v818, %v3847
    %v3849 = vrot.slane %v3700, %v3848
    %v3850 = vlaneseq
    %v3851 = vshrl.u32 %v3850, 7
    %v3852 = vsub.s32 %v823, %v3851
    %v3853 = vrot.slane %v3705, %v3852
    %v3854 = vsel %vm828, %v3853, %v3849
    %v3855 = vlaneseq
    %v3856 = vshrl.u32 %v3855, 7
    %v3857 = vsub.s32 %v818, %v3856
    %v3858 = vrot.slane %v3710, %v3857
    %v3859 = vlaneseq
    %v3860 = vshrl.u32 %v3859, 7
    %v3861 = vsub.s32 %v823, %v3860
    %v3862 = vrot.slane %v3715, %v3861
    %v3863 = vsel %vm828, %v3862, %v3858
    %v3864 = vsel %vm329, %v3863, %v3854
    %s3866 = scalar_lea.vmem [#allocation32], 12
    %3867 = vst.msk [vmem:[%s3866] sm:$0x3] %vm841, %v3864
    %v3868 = vpack.c.bf16 %v3840, %v3840
    %v3869 = vld [vmem:[#allocation19] sm:$0xf]
    %v3870 = vld [vmem:[#allocation19 + $0x4] sm:$0xf]
    %v3871 = vld [vmem:[#allocation19 + $0x8] sm:$0xf]
    %v3872 = vld [vmem:[#allocation19 + $0xc] sm:$0xf]
    %v3874 = vrot.slane %v3868, 2
    %3875 = vrot.lane.b32.xlu0 %v3874, 32
    %v3876 = vpop.permute.xlu0 %3875
    %v3881 = vunpack.c.l.b16 %v3869
    %v3882 = vunpack.c.l.b16 %v3870
    %v3883 = vunpack.c.l.b16 %v3871
    %v3884 = vunpack.c.l.b16 %v3872
    %v3885 = vpack.c.b16 %v3882, %v3881
    %v3886 = vpack.c.b16 %v3884, %v3883
    %v3890 = vsel %vm290, %v3876, 0
    %3892 = vmatprep.subr.bf16.mxu0 0
    %3893 = vmatpush1.bf16.msra.mxu0 %v3885
    %3894 = vmatprep.subr.bf16.mxu0 0
    %3895 = vmatpush1.bf16.msra.mxu0 %v3886
    %3896 = vmatprep.subr.bf16.mxu0 0
    %3897 = vmatpush1.bf16.msra.mxu0 0
    %3898 = vmatprep.subr.bf16.mxu0 0
    %3899 = vmatpush1.bf16.msra.mxu0 0
    %3900 = vmatprep.subr.bf16.mxu0 0
    %3901 = vmatpush1.bf16.msra.mxu0 0
    %3902 = vmatprep.subr.bf16.mxu0 0
    %3903 = vmatpush1.bf16.msra.mxu0 0
    %3904 = vmatprep.subr.bf16.mxu0 0
    %3905 = vmatpush1.bf16.msra.mxu0 0
    %3906 = vmatprep.subr.bf16.mxu0 0
    %3907 = vmatpush1.bf16.msra.mxu0 0
    %3908 = vmatprep.subr.bf16.mxu0 0
    %3909 = vmatpush1.bf16.msra.mxu0 0
    %3910 = vmatprep.subr.bf16.mxu0 0
    %3911 = vmatpush1.bf16.msra.mxu0 0
    %3912 = vmatprep.subr.bf16.mxu0 0
    %3913 = vmatpush1.bf16.msra.mxu0 0
    %3914 = vmatprep.subr.bf16.mxu0 0
    %3915 = vmatpush1.bf16.msra.mxu0 0
    %3916 = vmatprep.subr.bf16.mxu0 0
    %3917 = vmatpush1.bf16.msra.mxu0 0
    %3918 = vmatprep.subr.bf16.mxu0 0
    %3919 = vmatpush1.bf16.msra.mxu0 0
    %3920 = vmatprep.subr.bf16.mxu0 0
    %3921 = vmatpush1.bf16.msra.mxu0 0
    %3922 = vmatprep.subr.bf16.mxu0 0
    %3923 = vmatpush1.bf16.msra.mxu0 0
    %3924 = vmatprep.mubr.bf16.mxu0 0
    %3925 = vmatmul.mubr.bf16.gmra.mrb[0].mxu0 %v3890
    %v3926 = vpop.f32.mrb[0].mxu0
    %v3927 = vadd.f32 0.0, %v3926
    %v3928 = vpop.f32.mrb[0].mxu0
    %v3929 = vpop.f32.mrb[0].mxu0
    %v3930 = vpop.f32.mrb[0].mxu0
    %3931 = vdwg.mxu0
    %v3932 = vld [vmem:[#allocation12] sm:$0xf]
    %v3933 = vld [vmem:[#allocation12 + $0x4] sm:$0xf]
    %v3934 = vld [vmem:[#allocation12 + $0x8] sm:$0xf]
    %v3935 = vld [vmem:[#allocation12 + $0xc] sm:$0xf]
    %v3936 = vld [vmem:[#allocation13] sm:$0x1]
    %v3938 = vlaneseq
    %v3939 = vshrl.u32 %v3938, 7
    %v3940 = vsub.s32 0, %v3939
    %v3941 = vrot.slane %v3936, %v3940
    %v3947 = vunpack.c.l.b16 %v3932
    %v3948 = vunpack.c.l.b16 %v3933
    %v3949 = vunpack.c.l.b16 %v3934
    %v3950 = vunpack.c.l.b16 %v3935
    %v3951 = vpack.c.b16 %v3948, %v3947
    %v3952 = vpack.c.b16 %v3950, %v3949
    %3955 = vmatprep.subr.bf16.mxu0 0
    %3956 = vmatpush1.bf16.msra.mxu0 %v3951
    %3957 = vmatprep.subr.bf16.mxu0 0
    %3958 = vmatpush1.bf16.msra.mxu0 %v3952
    %3959 = vmatprep.subr.bf16.mxu0 0
    %3960 = vmatpush1.bf16.msra.mxu0 0
    %3961 = vmatprep.subr.bf16.mxu0 0
    %3962 = vmatpush1.bf16.msra.mxu0 0
    %3963 = vmatprep.subr.bf16.mxu0 0
    %3964 = vmatpush1.bf16.msra.mxu0 0
    %3965 = vmatprep.subr.bf16.mxu0 0
    %3966 = vmatpush1.bf16.msra.mxu0 0
    %3967 = vmatprep.subr.bf16.mxu0 0
    %3968 = vmatpush1.bf16.msra.mxu0 0
    %3969 = vmatprep.subr.bf16.mxu0 0
    %3970 = vmatpush1.bf16.msra.mxu0 0
    %3971 = vmatprep.subr.bf16.mxu0 0
    %3972 = vmatpush1.bf16.msra.mxu0 0
    %3973 = vmatprep.subr.bf16.mxu0 0
    %3974 = vmatpush1.bf16.msra.mxu0 0
    %3975 = vmatprep.subr.bf16.mxu0 0
    %3976 = vmatpush1.bf16.msra.mxu0 0
    %3977 = vmatprep.subr.bf16.mxu0 0
    %3978 = vmatpush1.bf16.msra.mxu0 0
    %3979 = vmatprep.subr.bf16.mxu0 0
    %3980 = vmatpush1.bf16.msra.mxu0 0
    %3981 = vmatprep.subr.bf16.mxu0 0
    %3982 = vmatpush1.bf16.msra.mxu0 0
    %3983 = vmatprep.subr.bf16.mxu0 0
    %3984 = vmatpush1.bf16.msra.mxu0 0
    %3985 = vmatprep.subr.bf16.mxu0 0
    %3986 = vmatpush1.bf16.msra.mxu0 0
    %3987 = vmatprep.mubr.bf16.mxu0 0
    %3988 = vmatmul.mubr.bf16.gmra.mrb[0].mxu0 %v3890
    %v3989 = vpop.f32.mrb[0].mxu0
    %v3990 = vadd.f32 %v3941, %v3989
    %v3991 = vpop.f32.mrb[0].mxu0
    %v3992 = vpop.f32.mrb[0].mxu0
    %v3993 = vpop.f32.mrb[0].mxu0
    %3994 = vdwg.mxu0
    %v3997 = vunpack.c.l.s4 1966171168
    %v3998 = vunpack.c.0.s8 %v3997
    %v3999 = vlaneseq
    %v4000 = vshrl.u32 %v3999, 7
    %v4001 = vsub.s32 %v3998, %v4000
    %v4002 = vrot.slane %v3990, %v4001
    %v4003 = vcombine.high %v4002, %v4002
    %v4005 = vunpack.c.l.s4 1966171168
    %v4006 = vunpack.c.0.s8 %v4005
    %v4007 = vlaneseq
    %v4008 = vshrl.u32 %v4007, 7
    %v4009 = vsub.s32 %v4006, %v4008
    %v4010 = vrot.slane %v4002, %v4009
    %v4012 = vunpack.c.l.s4 1966171168
    %v4013 = vunpack.c.0.s8 %v4012
    %v4014 = vlaneseq
    %v4015 = vshrl.u32 %v4014, 7
    %v4016 = vsub.s32 %v4013, %v4015
    %v4017 = vrot.slane %v4003, %v4016
    %v4018 = vlaneseq
    %v4019 = vshrl.u32 %v4018, 7
    %v4020 = vsub.s32 0, %v4019
    %v4021 = vrot.slane %v4010, %v4020
    %v4022 = vlaneseq
    %v4023 = vshrl.u32 %v4022, 7
    %v4024 = vsub.s32 0, %v4023
    %v4025 = vrot.slane %v4017, %v4024
    %v4028 = vadd.f32 %v524, %v4021
    %v4029 = vadd.f32 %v527, %v4021
    %v4030 = vadd.f32 %v532, %v4025
    %v4031 = vadd.f32 %v535, %v4025
    %v4032 = vtanh.pop %v4028
    %v4033 = vtanh.pop %v4029
    %v4034 = vtanh.pop %v4030
    %v4035 = vtanh.pop %v4031
    %v4036 = vmul.f32 %v4032, %v782
    %v4037 = vmul.f32 %v4033, %v782
    %v4038 = vmul.f32 %v4034, %v782
    %v4039 = vmul.f32 %v4035, %v782
    %v4040 = vsel %vm290, %v4036, 0.0
    %4041 = vadd.xlane.f32.xlu0 %v4040
    %v4042 = vpop.xlane.xlu0 %4041
    %v4043 = vsel %vm290, %v4037, 0.0
    %4044 = vadd.xlane.f32.xlu0 %v4043
    %v4045 = vpop.xlane.xlu0 %4044
    %v4046 = vsel %vm290, %v4038, 0.0
    %4047 = vadd.xlane.f32.xlu0 %v4046
    %v4048 = vpop.xlane.xlu0 %4047
    %v4049 = vsel %vm290, %v4039, 0.0
    %4050 = vadd.xlane.f32.xlu0 %v4049
    %v4051 = vpop.xlane.xlu0 %4050
    %v4052 = vadd.f32 %v4042, %v807
    %v4053 = vadd.f32 %v4045, %v807
    %v4054 = vadd.f32 %v4048, %v807
    %v4055 = vadd.f32 %v4051, %v807
    %v4060 = vlaneseq
    %v4061 = vshrl.u32 %v4060, 7
    %v4062 = vsub.s32 %v818, %v4061
    %v4063 = vrot.slane %v4052, %v4062
    %v4064 = vlaneseq
    %v4065 = vshrl.u32 %v4064, 7
    %v4066 = vsub.s32 %v823, %v4065
    %v4067 = vrot.slane %v4053, %v4066
    %v4068 = vsel %vm828, %v4067, %v4063
    %v4069 = vlaneseq
    %v4070 = vshrl.u32 %v4069, 7
    %v4071 = vsub.s32 %v818, %v4070
    %v4072 = vrot.slane %v4054, %v4071
    %v4073 = vlaneseq
    %v4074 = vshrl.u32 %v4073, 7
    %v4075 = vsub.s32 %v823, %v4074
    %v4076 = vrot.slane %v4055, %v4075
    %v4077 = vsel %vm828, %v4076, %v4072
    %v4078 = vsel %vm329, %v4077, %v4068
    %v4080 = vsel %vm841, %v4078, -inf
    %4081 = vmax.xlane.f32.xlu0 %v4080
    %v4082 = vpop.xlane.xlu0 %4081
    %v4084 = vlaneseq
    %v4085 = vshrl.u32 %v4084, 7
    %v4086 = vsub.s32 0, %v4085
    %v4087 = vrot.slane %v4082, %v4086
    %v4088 = vlaneseq
    %v4089 = vshrl.u32 %v4088, 7
    %v4090 = vsub.s32 1, %v4089
    %v4091 = vrot.slane %v4082, %v4090
    %v4094 = vsub.f32 %v4052, %v4087
    %v4095 = vsub.f32 %v4053, %v4087
    %v4096 = vsub.f32 %v4054, %v4091
    %v4097 = vsub.f32 %v4055, %v4091
    %v4098 = vmul.f32 %v4094, 1.442695
    %v4099 = vpow.pop %v4098
    %v4100 = vmul.f32 %v4095, 1.442695
    %v4101 = vpow.pop %v4100
    %v4102 = vmul.f32 %v4096, 1.442695
    %v4103 = vpow.pop %v4102
    %v4104 = vmul.f32 %v4097, 1.442695
    %v4105 = vpow.pop %v4104
    %4110 = vset.pattern.permute.xlu0 0
    %4111 = vperm.xlu0 %4110, %v4099
    %v4112 = vpop.permute.xlu0 %4111
    %4113 = vset.pattern.permute.xlu0 0
    %4114 = vperm.xlu0 %4113, %v4101
    %v4115 = vpop.permute.xlu0 %4114
    %4116 = vset.pattern.permute.xlu0 0
    %4117 = vperm.xlu0 %4116, %v4103
    %v4118 = vpop.permute.xlu0 %4117
    %4119 = vset.pattern.permute.xlu0 0
    %4120 = vperm.xlu0 %4119, %v4105
    %v4121 = vpop.permute.xlu0 %4120
    %v4122 = vlaneseq
    %v4123 = vshrl.u32 %v4122, 7
    %v4124 = vsub.s32 %v818, %v4123
    %v4125 = vrot.slane %v4112, %v4124
    %v4126 = vlaneseq
    %v4127 = vshrl.u32 %v4126, 7
    %v4128 = vsub.s32 %v823, %v4127
    %v4129 = vrot.slane %v4115, %v4128
    %v4130 = vsel %vm828, %v4129, %v4125
    %v4131 = vlaneseq
    %v4132 = vshrl.u32 %v4131, 7
    %v4133 = vsub.s32 %v818, %v4132
    %v4134 = vrot.slane %v4118, %v4133
    %v4135 = vlaneseq
    %v4136 = vshrl.u32 %v4135, 7
    %v4137 = vsub.s32 %v823, %v4136
    %v4138 = vrot.slane %v4121, %v4137
    %v4139 = vsel %vm828, %v4138, %v4134
    %v4140 = vsel %vm329, %v4139, %v4130
    %v4142 = vsel %vm841, %v4140, 0.0
    %4143 = vadd.xlane.f32.xlu0 %v4142
    %v4144 = vpop.xlane.xlu0 %4143
    %v4145 = vrcp.pop %v4144
    %v4147 = vlaneseq
    %v4148 = vshrl.u32 %v4147, 7
    %v4149 = vsub.s32 0, %v4148
    %v4150 = vrot.slane %v4145, %v4149
    %v4151 = vlaneseq
    %v4152 = vshrl.u32 %v4151, 7
    %v4153 = vsub.s32 1, %v4152
    %v4154 = vrot.slane %v4145, %v4153
    %v4157 = vmul.f32 %v4099, %v4150
    %v4158 = vmul.f32 %v4101, %v4150
    %v4159 = vmul.f32 %v4103, %v4154
    %v4160 = vmul.f32 %v4105, %v4154
    %4162 = vset.pattern.permute.xlu0 0
    %4163 = vperm.xlu0 %4162, %v4157
    %v4164 = vpop.permute.xlu0 %4163
    %4167 = vset.pattern.permute.xlu0 0
    %4168 = vperm.xlu0 %4167, %v4158
    %v4169 = vpop.permute.xlu0 %4168
    %4172 = vset.pattern.permute.xlu0 0
    %4173 = vperm.xlu0 %4172, %v4159
    %v4174 = vpop.permute.xlu0 %4173
    %4177 = vset.pattern.permute.xlu0 0
    %4178 = vperm.xlu0 %4177, %v4160
    %v4179 = vpop.permute.xlu0 %4178
    %v4181 = vmul.f32 %v4164, %v286
    %v4182 = vmul.f32 %v4169, %v287
    %v4183 = vmul.f32 %v4174, %v288
    %v4184 = vmul.f32 %v4179, %v289
    %v4185 = vsel %vm290, %v4181, 0.0
    %v4186 = vsel %vm290, %v4182, 0.0
    %v4187 = vadd.f32 %v4185, %v4186
    %v4188 = vrot.slane %v4187, 4
    %v4189 = vadd.f32 %v4187, %v4188
    %v4190 = vrot.slane %v4189, 2
    %v4191 = vadd.f32 %v4189, %v4190
    %v4192 = vrot.slane %v4191, 1
    %v4193 = vadd.f32 %v4191, %v4192
    %v4194 = vsel %vm290, %v4183, 0.0
    %v4195 = vsel %vm290, %v4184, 0.0
    %v4196 = vadd.f32 %v4194, %v4195
    %v4197 = vrot.slane %v4196, 4
    %v4198 = vadd.f32 %v4196, %v4197
    %v4199 = vrot.slane %v4198, 2
    %v4200 = vadd.f32 %v4198, %v4199
    %v4201 = vrot.slane %v4200, 1
    %v4202 = vadd.f32 %v4200, %v4201
    %v4203 = vpack.c.bf16 %v4193, %v4193
    %v4204 = vpack.c.bf16 %v4202, %v4202
    %v4205 = vld [vmem:[#allocation18] sm:$0xf]
    %v4206 = vld [vmem:[#allocation18 + $0x4] sm:$0xf]
    %v4207 = vld [vmem:[#allocation18 + $0x8] sm:$0xf]
    %v4208 = vld [vmem:[#allocation18 + $0xc] sm:$0xf]
    %v4211 = vunpack.c.l.b16 %v4203
    %v4212 = vunpack.c.l.b16 %v4204
    %v4213 = vsel %vm329, %v4212, %v4211
    %v4214 = vpack.c.b16 %v4213, %v4213
    %v4219 = vunpack.c.l.b16 %v4205
    %v4220 = vunpack.c.l.b16 %v4206
    %v4221 = vunpack.c.l.b16 %v4207
    %v4222 = vunpack.c.l.b16 %v4208
    %v4223 = vpack.c.b16 %v4220, %v4219
    %v4224 = vpack.c.b16 %v4222, %v4221
    %v4228 = vsel %vm290, %v4214, 0
    %4230 = vmatprep.subr.bf16.mxu0 0
    %4231 = vmatpush1.bf16.msra.mxu0 %v4223
    %4232 = vmatprep.subr.bf16.mxu0 0
    %4233 = vmatpush1.bf16.msra.mxu0 %v4224
    %4234 = vmatprep.subr.bf16.mxu0 0
    %4235 = vmatpush1.bf16.msra.mxu0 0
    %4236 = vmatprep.subr.bf16.mxu0 0
    %4237 = vmatpush1.bf16.msra.mxu0 0
    %4238 = vmatprep.subr.bf16.mxu0 0
    %4239 = vmatpush1.bf16.msra.mxu0 0
    %4240 = vmatprep.subr.bf16.mxu0 0
    %4241 = vmatpush1.bf16.msra.mxu0 0
    %4242 = vmatprep.subr.bf16.mxu0 0
    %4243 = vmatpush1.bf16.msra.mxu0 0
    %4244 = vmatprep.subr.bf16.mxu0 0
    %4245 = vmatpush1.bf16.msra.mxu0 0
    %4246 = vmatprep.subr.bf16.mxu0 0
    %4247 = vmatpush1.bf16.msra.mxu0 0
    %4248 = vmatprep.subr.bf16.mxu0 0
    %4249 = vmatpush1.bf16.msra.mxu0 0
    %4250 = vmatprep.subr.bf16.mxu0 0
    %4251 = vmatpush1.bf16.msra.mxu0 0
    %4252 = vmatprep.subr.bf16.mxu0 0
    %4253 = vmatpush1.bf16.msra.mxu0 0
    %4254 = vmatprep.subr.bf16.mxu0 0
    %4255 = vmatpush1.bf16.msra.mxu0 0
    %4256 = vmatprep.subr.bf16.mxu0 0
    %4257 = vmatpush1.bf16.msra.mxu0 0
    %4258 = vmatprep.subr.bf16.mxu0 0
    %4259 = vmatpush1.bf16.msra.mxu0 0
    %4260 = vmatprep.subr.bf16.mxu0 0
    %4261 = vmatpush1.bf16.msra.mxu0 0
    %4262 = vmatprep.mubr.bf16.mxu0 0
    %4263 = vmatmul.mubr.bf16.gmra.mrb[0].mxu0 %v4228
    %v4264 = vpop.f32.mrb[0].mxu0
    %v4265 = vadd.f32 0.0, %v4264
    %v4266 = vpop.f32.mrb[0].mxu0
    %v4267 = vpop.f32.mrb[0].mxu0
    %v4268 = vpop.f32.mrb[0].mxu0
    %4269 = vdwg.mxu0
    %v4271 = vrot.slane %v3927, 2
    %v4273 = vadd.f32 %v611, %v4271
    %v4275 = vrot.slane %v4265, 2
    %v4277 = vadd.f32 %v4273, %v4275
    %v4278 = vxor.u32 %v4277, 2147483648
    %v4279 = vmul.f32 %v4278, 1.442695
    %v4280 = vpow.pop %v4279
    %v4281 = vadd.f32 %v4280, 1.0
    %v4282 = vrcp.pop %v4281
    %v4283 = vmul.f32 1.0, %v4282
    %v4284 = vtanh.pop %v4277
    %v4286 = vrot.slane %v3834, 6
    %v4288 = vmul.f32 %v4283, %v4286
    %4290 = vrot.lane.b32.xlu0 %v4284, 64
    %v4291 = vpop.permute.xlu0 %4290
    %v4293 = vmul.f32 %v4283, %v4291
    %4295 = vrot.lane.b32.xlu0 %v4293, 32
    %v4296 = vpop.permute.xlu0 %4295
    %v4298 = vadd.f32 %v4288, %v4296
    %v4299 = vtanh.pop %v4298
    %4301 = vrot.lane.b32.xlu0 %v4299, 64
    %v4302 = vpop.permute.xlu0 %4301
    %v4304 = vmul.f32 %v4283, %v4302
    %4306 = vrot.lane.b32.xlu0 %v4304, 32
    %v4307 = vpop.permute.xlu0 %4306
    %4309 = vst.msk [vmem:[#allocation2 + $0x8] sm:$0xc0] %vm2459, %v4307
    %v4310 = vlaneseq
    %v4311 = vshrl.u32 %v4310, 7
    %v4312 = vsub.s32 %v818, %v4311
    %v4313 = vrot.slane %v4164, %v4312
    %v4314 = vlaneseq
    %v4315 = vshrl.u32 %v4314, 7
    %v4316 = vsub.s32 %v823, %v4315
    %v4317 = vrot.slane %v4169, %v4316
    %v4318 = vsel %vm828, %v4317, %v4313
    %v4319 = vlaneseq
    %v4320 = vshrl.u32 %v4319, 7
    %v4321 = vsub.s32 %v818, %v4320
    %v4322 = vrot.slane %v4174, %v4321
    %v4323 = vlaneseq
    %v4324 = vshrl.u32 %v4323, 7
    %v4325 = vsub.s32 %v823, %v4324
    %v4326 = vrot.slane %v4179, %v4325
    %v4327 = vsel %vm828, %v4326, %v4322
    %v4328 = vsel %vm329, %v4327, %v4318
    %s4330 = scalar_lea.vmem [#allocation32], 14
    %4331 = vst.msk [vmem:[%s4330] sm:$0x3] %vm841, %v4328
    %v4332 = vld [vmem:[#allocation2] sm:$0xff]
    %v4333 = vld [vmem:[#allocation2 + $0x8] sm:$0xff]
    %v4334 = vpack.c.bf16 %v4333, %v4332
    %v4335 = vld [vmem:[#allocation22] sm:$0xf]
    %v4336 = vld [vmem:[#allocation22 + $0x4] sm:$0xf]
    %v4337 = vld [vmem:[#allocation22 + $0x8] sm:$0xf]
    %v4338 = vld [vmem:[#allocation22 + $0xc] sm:$0xf]
    %v4339 = vld [vmem:[#allocation24] sm:$0x1]
    %v4341 = vlaneseq
    %v4342 = vshrl.u32 %v4341, 7
    %v4343 = vsub.s32 0, %v4342
    %v4344 = vrot.slane %v4339, %v4343
    %v4350 = vunpack.c.l.b16 %v4335
    %v4351 = vunpack.c.l.b16 %v4336
    %v4352 = vunpack.c.l.b16 %v4337
    %v4353 = vunpack.c.l.b16 %v4338
    %v4354 = vpack.c.b16 %v4351, %v4350
    %v4355 = vpack.c.b16 %v4353, %v4352
    %v4359 = vsel %vm290, %v4334, 0
    %4361 = vmatprep.subr.bf16.mxu0 0
    %4362 = vmatpush1.bf16.msra.mxu0 %v4354
    %4363 = vmatprep.subr.bf16.mxu0 0
    %4364 = vmatpush1.bf16.msra.mxu0 %v4355
    %4365 = vmatprep.subr.bf16.mxu0 0
    %4366 = vmatpush1.bf16.msra.mxu0 0
    %4367 = vmatprep.subr.bf16.mxu0 0
    %4368 = vmatpush1.bf16.msra.mxu0 0
    %4369 = vmatprep.subr.bf16.mxu0 0
    %4370 = vmatpush1.bf16.msra.mxu0 0
    %4371 = vmatprep.subr.bf16.mxu0 0
    %4372 = vmatpush1.bf16.msra.mxu0 0
    %4373 = vmatprep.subr.bf16.mxu0 0
    %4374 = vmatpush1.bf16.msra.mxu0 0
    %4375 = vmatprep.subr.bf16.mxu0 0
    %4376 = vmatpush1.bf16.msra.mxu0 0
    %4377 = vmatprep.subr.bf16.mxu0 0
    %4378 = vmatpush1.bf16.msra.mxu0 0
    %4379 = vmatprep.subr.bf16.mxu0 0
    %4380 = vmatpush1.bf16.msra.mxu0 0
    %4381 = vmatprep.subr.bf16.mxu0 0
    %4382 = vmatpush1.bf16.msra.mxu0 0
    %4383 = vmatprep.subr.bf16.mxu0 0
    %4384 = vmatpush1.bf16.msra.mxu0 0
    %4385 = vmatprep.subr.bf16.mxu0 0
    %4386 = vmatpush1.bf16.msra.mxu0 0
    %4387 = vmatprep.subr.bf16.mxu0 0
    %4388 = vmatpush1.bf16.msra.mxu0 0
    %4389 = vmatprep.subr.bf16.mxu0 0
    %4390 = vmatpush1.bf16.msra.mxu0 0
    %4391 = vmatprep.subr.bf16.mxu0 0
    %4392 = vmatpush1.bf16.msra.mxu0 0
    %4393 = vmatprep.mubr.bf16.mxu0 0
    %4394 = vmatmul.mubr.bf16.gmra.mrb[0].mxu0 %v4359
    %v4395 = vpop.f32.mrb[0].mxu0
    %v4396 = vadd.f32 %v4344, %v4395
    %v4397 = vpop.f32.mrb[0].mxu0
    %v4398 = vpop.f32.mrb[0].mxu0
    %v4399 = vadd.f32 %v4344, %v4398
    %v4400 = vpop.f32.mrb[0].mxu0
    %4401 = vdwg.mxu0
    %4402 = vst [vmem:[#allocation31] sm:$0xff] %v4396
    %4403 = vst [vmem:[#allocation31 + $0x8] sm:$0xff] %v4399
    // Predicated region
    $region142: #{tpu_custom_call.1} parent=1 // pred_check
      _
    $region143: #{tpu_custom_call.1} parent=1 // pred_check_branch
      %4405 = sbr.rel (0) target = $region145
    $region144: #{tpu_custom_call.1} parent=1 // pred_region
      %s4407 = ssub.s32 256, 256
      %4408 = vsyncadd [#allocation6], %s4407
      %s4409 = sshll.u32 [#allocation31], 4
      %s4410 = int_to_ptr.vmem [resolvable:$true] %s4409
      %4415 = dma.vmem_to_hbm [thread:$0]  %s4410, 256, %s18, [#allocation6], 128, 128, 8
    $region145: #{tpu_custom_call.1} parent=1 // pred_fallthru
      _
    // Predicated region
    $region146: #{tpu_custom_call.1} parent=1 // pred_check
      _
    $region147: #{tpu_custom_call.1} parent=1 // pred_check_branch
      %4417 = sbr.rel (0) target = $region149
    $region148: #{tpu_custom_call.1} parent=1 // pred_region
      %s4419 = ssub.s32 256, 256
      %4420 = vsyncadd [#allocation33], %s4419
      %s4421 = sshll.u32 [#allocation32], 4
      %s4422 = int_to_ptr.vmem [resolvable:$true] %s4421
      %4427 = dma.vmem_to_hbm [thread:$0]  %s4422, 256, %s19, [#allocation33], 32, 32, 2
    $region149: #{tpu_custom_call.1} parent=1 // pred_fallthru
      _
    // Predicated region
    $region150: #{tpu_custom_call.1} parent=1 // pred_check
      _
    $region151: #{tpu_custom_call.1} parent=1 // pred_check_branch
      %4429 = sbr.rel (0) target = $region153
    $region152: #{tpu_custom_call.1} parent=1 // pred_region
      %4430 = dma.done [#allocation6], 256
    $region153: #{tpu_custom_call.1} parent=1 // pred_fallthru
      _
    // Predicated region
    $region154: #{tpu_custom_call.1} parent=1 // pred_check
      _
    $region155: #{tpu_custom_call.1} parent=1 // pred_check_branch
      %4432 = sbr.rel (0) target = $region157
    $region156: #{tpu_custom_call.1} parent=1 // pred_region
      %4433 = dma.done [#allocation33], 256
    $region157: #{tpu_custom_call.1} parent=1 // pred_fallthru
      _
    %4434 = vsyncpa [#allocation5], 1
    %4435 = vsyncpa [#allocation8], 1
    %4436 = vsyncpa [#allocation11], 1
    %4437 = vsyncpa [#allocation14], 1
    %4438 = vsyncpa [#allocation17], 1
    %4439 = vsyncpa [#allocation20], 1
    %4440 = vsyncpa [#allocation23], 1
    %4441 = vsyncpa [#allocation26], 1
    %4442 = vsyncpa [#allocation29], 1
    %4443 = vsyncpa [#allocation6], 1
    %4444 = vsyncpa [#allocation33], 1

</llo_original>
